<compile_context>
chip_gen: v7x
topology: tpu7x:2x2x1
jax: 0.10.0
libtpu: 0.0.40
codegen_flags: <defaults>
</compile_context>

<pallas_src>
import functools

import jax
import jax.numpy as jnp
from jax.experimental import pallas as pl
from jax.experimental.pallas import tpu as pltpu

# ---- sizes implied by MambaG2G(config, dim_in, dim_out) with expand=1 --------
D_MODEL = 32                          # config['d_model'] (== d_inner, expand=1)
D_STATE = 16                          # config['d_state']
D_CONV = 4                            # config['d_conv']
DT_RANK = max(1, -(-D_MODEL // 16))   # ceil(d_model / 16) = 2
DIM_IN = 16                           # self.D
DIM_OUT = 8
BATCH = 2
SEQLEN = 8
NUM_SNAPSHOTS = 4                     # G: graph snapshots batched into one launch
OUT_COLS = DIM_IN + 2 * DIM_OUT       # 32: packed [x | mu | sigma]


def _silu(v):
    return v / (1.0 + jnp.exp(-v))


def _elu(v):
    # exp() only ever sees non-positive arguments -> no overflow on the dead branch.
    return jnp.where(v > 0.0, v, jnp.exp(jnp.minimum(v, 0.0)) - 1.0)


def mamba_g2g_kernel(
    x_ref,                                  # (B*L, 32)   one snapshot, batch folded
    w_in_x_ref, w_in_z_ref,                 # (32, 32) x2 in_proj split (no col slice)
    conv_w_ref, conv_b_ref,                 # (4, 32), (1, 32)
    w_dt_ref, b_dt_ref,                     # (32, 32) = x_proj[:, :R] @ dt_proj, (1, 32)
    w_b_ref, w_c_ref,                       # (32, 16) x2  x_proj B / C columns
    a_ref, d_ref,                           # (16, 32) = (-exp(A_log)).T, (1, 32)
    w_of_ref, b_of_ref,                     # (32, 16) = out_proj @ out_fc, (1, 16)
    w_head_ref, b_head_ref,                 # (16, 16) = [w_mu | w_sigma], (1, 16)
    out_ref,                                # (B, 32)  packed [x | mu | sigma]
    da_scr, dbx_scr, cz_scr,                # VMEM (L, N, B*DI) scan-operand staging
    *, batch, seqlen):
    B, L = batch, seqlen
    LB = B * L
    DI, N, K = D_MODEL, D_STATE, D_CONV

    x2 = x_ref[...]                                               # (LB, 32)

    # ---- in_proj (bias-free), split into x/z weights -> no activation slicing --
    xc = jnp.dot(x2, w_in_x_ref[...], preferred_element_type=jnp.float32)   # (LB, 32)
    zg = jnp.dot(x2, w_in_z_ref[...], preferred_element_type=jnp.float32)   # (LB, 32)

    # ---- causal depthwise conv1d: sublane roll (XLU) + start-of-seq mask --------
    pos = jax.lax.broadcasted_iota(jnp.int32, (LB, DI), 0) % L
    acc_c = jnp.zeros((LB, DI), jnp.float32)
    for k in range(K):                                            # K = 4, static
        s = K - 1 - k                                             # causal shift
        wk = conv_w_ref[k:k + 1, :]                               # (1, 32)
        if s == 0:
            acc_c = acc_c + xc * wk
        else:
            shifted = pltpu.roll(xc, shift=s, axis=0)             # rows move down by s
            acc_c = acc_c + jnp.where(pos >= s, shifted, 0.0) * wk
    xs = _silu(acc_c + conv_b_ref[...])                           # (LB, 32)
    zs = _silu(zg)                                                # SiLU(z) gate

    # ---- x_proj (dt_proj pre-folded host-side) + softplus -----------------------
    dt = jnp.dot(xs, w_dt_ref[...], preferred_element_type=jnp.float32) + b_dt_ref[...]
    # overflow-free softplus; equals torch softplus(threshold=20) within f32.
    dt = jnp.maximum(dt, 0.0) + jnp.log(1.0 + jnp.exp(-jnp.abs(dt)))        # (LB, 32)
    Bm = jnp.dot(xs, w_b_ref[...], preferred_element_type=jnp.float32)      # (LB, 16)
    Cm = jnp.dot(xs, w_c_ref[...], preferred_element_type=jnp.float32)      # (LB, 16)

    du = dt * xs                                                  # (LB, 32)
    A = a_ref[...]                                                # (16, 32)

    # ---- vectorized precompute of the scan operands (off the serial chain) ------
    # batch packed along lanes: (L, N, B*DI) = (8, 16, 64), staged in VMEM scratch.
    dtA = jnp.concatenate(
        [dt[b * L:(b + 1) * L][:, None, :] * A[None, :, :] for b in range(B)], axis=2)
    da_scr[...] = jnp.exp(dtA)                                    # one vectorized exp
    dbx_scr[...] = jnp.concatenate(
        [Bm[b * L:(b + 1) * L][:, :, None] * du[b * L:(b + 1) * L][:, None, :]
         for b in range(B)], axis=2)
    # C columns with the SiLU(z) gate pre-folded -> per-step reduce directly yields
    # the gated output contribution.
    cz_scr[...] = jnp.concatenate(
        [Cm[b * L:(b + 1) * L][:, :, None] * zs[b * L:(b + 1) * L][:, None, :]
         for b in range(B)], axis=2)

    # ---- selective scan: L serial steps, both batch chains packed along lanes ---
    h = jnp.zeros((N, B * DI), jnp.float32)
    acc_y = jnp.zeros((1, B * DI), jnp.float32)                   # sum_t y_t * silu(z_t)
    for t in range(L):                                            # L = 8, static
        h = da_scr[t] * h + dbx_scr[t]                            # only serial dependence
        # consumes h, feeds nothing back into the recurrence
        acc_y = acc_y + jnp.sum(h * cz_scr[t], axis=0, keepdims=True)

    # ---- D-skip (gated), mean over L, folded out_proj.out_fc --------------------
    skip = xs * zs * d_ref[...]                                   # (LB, 32)
    inv_l = 1.0 / L
    rows = []
    for b in range(B):
        ssum = jnp.sum(skip[b * L:(b + 1) * L, :], axis=0, keepdims=True)   # (1, 32)
        rows.append((acc_y[:, b * DI:(b + 1) * DI] + ssum) * inv_l)
    acc = jnp.concatenate(rows, axis=0)                           # (B, 32)

    # mean-over-L commutes with out_proj only because out_proj has no bias (true
    # for Mamba's nn.Linear(bias=False)); out_proj is folded into out_fc host-side.
    xh = _elu(jnp.tanh(
        jnp.dot(acc, w_of_ref[...], preferred_element_type=jnp.float32) + b_of_ref[...]))
    ms = jnp.dot(xh, w_head_ref[...], preferred_element_type=jnp.float32) + b_head_ref[...]
    mu = ms[:, :DIM_OUT]
    sg = _elu(ms[:, DIM_OUT:]) + (1.0 + 1e-14)                    # ELU(sigma) + 1 + 1e-14

    # single packed store: [x | mu | sigma] -> (B, 32), split in the wrapper
    out_ref[...] = jnp.concatenate([xh, mu, sg], axis=1)


def mamba_g2g_forward(x, weights):
    """x: (G, B, L, d_model) stacked snapshots (or (B, L, d_model) for G=1).

    Returns (x_emb (G,B,DIM_IN), mu (G,B,DIM_OUT), sigma (G,B,DIM_OUT))."""
    if x.ndim == 3:
        x = x[None]
    G, B, L, DM = x.shape
    LB = B * L
    x2 = x.reshape(G, LB, DM)                 # fold batch into the matmul M dimension

    def const_spec(shape):
        return pl.BlockSpec(shape, lambda g: (0,) * len(shape))   # weight resident in VMEM

    in_specs = [pl.BlockSpec((None, LB, DM), lambda g: (g, 0, 0))]
    in_specs += [const_spec(w.shape) for w in weights]

    DI, N, K = D_MODEL, D_STATE, D_CONV
    flops_per = (2 * LB * DM * (2 * DI)            # in_proj
                 + 2 * LB * DI * K                 # depthwise conv
                 + 2 * LB * DI * (DI + 2 * N)      # dt_eff + B + C projections
                 + 10 * L * N * B * DI             # scan + operand precompute
                 + 2 * B * DI * DIM_IN + 4 * B * DIM_IN * DIM_OUT)
    trans_per = L * N * B * DI + 4 * LB * DI + 4 * B * DIM_IN
    bytes_w = sum(int(w.size) * w.dtype.itemsize for w in weights)
    bytes_per = LB * DM * 4 + B * OUT_COLS * 4

    out = pl.pallas_call(
        functools.partial(mamba_g2g_kernel, batch=B, seqlen=L),
        grid=(G,),
        in_specs=in_specs,
        out_specs=pl.BlockSpec((None, B, OUT_COLS), lambda g: (g, 0, 0)),
        out_shape=jax.ShapeDtypeStruct((G, B, OUT_COLS), jnp.float32),
        scratch_shapes=[
            pltpu.VMEM((L, D_STATE, B * D_MODEL), jnp.float32),   # dA
            pltpu.VMEM((L, D_STATE, B * D_MODEL), jnp.float32),   # dB*x
            pltpu.VMEM((L, D_STATE, B * D_MODEL), jnp.float32),   # C * silu(z)
        ],
        compiler_params=pltpu.CompilerParams(dimension_semantics=("parallel",)),
        cost_estimate=pl.CostEstimate(flops=G * flops_per,
                                      transcendentals=G * trans_per,
                                      bytes_accessed=bytes_w + G * bytes_per),
    )(x2, *weights)

    xh = out[:, :, :DIM_IN]
    mu = out[:, :, DIM_IN:DIM_IN + DIM_OUT]
    sg = out[:, :, DIM_IN + DIM_OUT:]
    return xh, mu, sg


def init_params(key):
    """The 15 logical parameters (all Linear weights pre-transposed to (in, out))."""
    DI = D_MODEL
    ks = jax.random.split(key, 12)
    s = 0.1
    w_in_t = jax.random.normal(ks[0], (D_MODEL, 2 * DI), jnp.float32) * s
    conv_w_t = jax.random.normal(ks[1], (D_CONV, DI), jnp.float32) * s   # weight[c,0,k].T
    conv_b = jax.random.normal(ks[2], (1, DI), jnp.float32) * s
    w_xp_t = jax.random.normal(ks[3], (DI, DT_RANK + 2 * D_STATE), jnp.float32) * s
    w_dt_t = jax.random.normal(ks[4], (DT_RANK, DI), jnp.float32) * s
    b_dt = jax.random.normal(ks[5], (1, DI), jnp.float32) * s
    # S4D-real init: A_log[c, n] = log(n+1)  ->  pass A = -exp(A_log) transposed (N, DI)
    a_neg_t = -(jnp.arange(1, D_STATE + 1, dtype=jnp.float32)[:, None]
                * jnp.ones((1, DI), jnp.float32))
    d_row = jnp.ones((1, DI), jnp.float32)                               # skip-connection D
    w_outp_t = jax.random.normal(ks[6], (DI, D_MODEL), jnp.float32) * s
    w_ofc_t = jax.random.normal(ks[7], (D_MODEL, DIM_IN), jnp.float32) * s
    b_ofc = jax.random.normal(ks[8], (1, DIM_IN), jnp.float32) * s
    w_mu_t = jax.random.normal(ks[9], (DIM_IN, DIM_OUT), jnp.float32) * s
    b_mu = jax.random.normal(ks[10], (1, DIM_OUT), jnp.float32) * s
    w_sg_t = jax.random.normal(ks[11], (DIM_IN, DIM_OUT), jnp.float32) * s
    b_sg = jnp.zeros((1, DIM_OUT), jnp.float32)
    return [w_in_t, conv_w_t, conv_b, w_xp_t, w_dt_t, b_dt, a_neg_t, d_row,
            w_outp_t, w_ofc_t, b_ofc, w_mu_t, b_mu, w_sg_t, b_sg]


def pack_params(params):
    """Fold linear compositions and emit the 14 lane-aligned kernel weights (host side)."""
    (w_in_t, conv_w_t, conv_b, w_xp_t, w_dt_t, b_dt, a_neg_t, d_row,
     w_outp_t, w_ofc_t, b_ofc, w_mu_t, b_mu, w_sg_t, b_sg) = params
    R, N = DT_RANK, D_STATE
    w_in_x = w_in_t[:, :D_MODEL]                        # (32, 32)
    w_in_z = w_in_t[:, D_MODEL:]                        # (32, 32)
    w_dt_eff = w_xp_t[:, :R] @ w_dt_t                   # (32, 32)  dt_proj folded into x_proj
    w_b = w_xp_t[:, R:R + N]                            # (32, 16)
    w_c = w_xp_t[:, R + N:]                             # (32, 16)
    w_of_eff = w_outp_t @ w_ofc_t                       # (32, 16)  out_proj folded into out_fc
    w_head = jnp.concatenate([w_mu_t, w_sg_t], axis=1)  # (16, 16)  [mu | sigma] head
    b_head = jnp.concatenate([b_mu, b_sg], axis=1)      # (1, 16)
    return (w_in_x, w_in_z, conv_w_t, conv_b, w_dt_eff, b_dt,
            w_b, w_c, a_neg_t, d_row, w_of_eff, b_ofc, w_head, b_head)


def reference_forward(x, params):
    """Straightforward pure-JAX reference of MambaG2G.forward (eval mode), unfused."""
    (w_in_t, conv_w_t, conv_b, w_xp_t, w_dt_t, b_dt, a_neg_t, d_row,
     w_outp_t, w_ofc_t, b_ofc, w_mu_t, b_mu, w_sg_t, b_sg) = params
    B, L, _ = x.shape
    DI, N, K, R = D_MODEL, D_STATE, D_CONV, DT_RANK
    silu = lambda v: v / (1.0 + jnp.exp(-v))
    elu = lambda v: jnp.where(v > 0, v, jnp.exp(jnp.minimum(v, 0.0)) - 1.0)

    xz = x @ w_in_t
    xc, zg = xz[..., :DI], xz[..., DI:]
    conv = jnp.zeros_like(xc)
    for k in range(K):
        shift = K - 1 - k
        sh = xc if shift == 0 else jnp.concatenate(
            [jnp.zeros((B, shift, DI), xc.dtype), xc[:, :L - shift, :]], axis=1)
        conv = conv + sh * conv_w_t[k][None, None, :]
    xs = silu(conv + conv_b[None, :, :])
    dbc = xs @ w_xp_t
    dt = dbc[..., :R] @ w_dt_t + b_dt
    dt = jnp.where(dt > 20.0, dt, jnp.log(1.0 + jnp.exp(jnp.minimum(dt, 20.0))))
    Bm, Cm = dbc[..., R:R + N], dbc[..., R + N:]
    A = a_neg_t.T                                                    # (DI, N)
    h = jnp.zeros((B, DI, N), jnp.float32)
    ys = []
    for t in range(L):
        dA = jnp.exp(dt[:, t, :, None] * A[None])
        h = dA * h + dt[:, t, :, None] * Bm[:, t, None, :] * xs[:, t, :, None]
        ys.append(jnp.sum(h * Cm[:, t, None, :], axis=-1) + d_row[0] * xs[:, t])
    y = jnp.stack(ys, axis=1) * silu(zg)
    e = (y @ w_outp_t).mean(axis=1)
    xh = elu(jnp.tanh(e @ w_ofc_t + b_ofc))
    mu = xh @ w_mu_t + b_mu
    sg = elu(xh @ w_sg_t + b_sg) + 1.0 + 1e-14
    return xh, mu, sg


if __name__ == "__main__":
    key = jax.random.PRNGKey(0)
    k_x, k_p = jax.random.split(key)
    # G graph snapshots, each (B, L, d_model). edge_index is unused by forward.
    x = jax.random.normal(k_x, (NUM_SNAPSHOTS, BATCH, SEQLEN, D_MODEL), jnp.float32)
    params = init_params(k_p)
    weights = pack_params(params)

    xh, mu, sg = mamba_g2g_forward(x, weights)
    jax.block_until_ready((xh, mu, sg))

    for g in range(NUM_SNAPSHOTS):
        xh_r, mu_r, sg_r = reference_forward(x[g], params)
        for name, got, want in (("x", xh[g], xh_r), ("mu", mu[g], mu_r), ("sigma", sg[g], sg_r)):
            err = float(jnp.max(jnp.abs(got - want)))
            assert err < 5e-4, f"snapshot {g} {name} mismatch: max abs err = {err}"

    # TODO(synk): dropout is treated as identity (eval mode); train-mode RNG dropout
    # would need pltpu.prng_seed / prng_random_bits and is intentionally omitted.
    print("KERNEL_OK")
</pallas_src>

<mosaic_0001>
module attributes {stable_mosaic.version = 11 : i64} {
  func.func @mamba_g2g_kernel(%arg0: i32, %arg1: memref<1x16x32xf32, #tpu.memory_space<vmem>>, %arg2: memref<32x32xf32, #tpu.memory_space<vmem>>, %arg3: memref<32x32xf32, #tpu.memory_space<vmem>>, %arg4: memref<4x32xf32, #tpu.memory_space<vmem>>, %arg5: memref<1x32xf32, #tpu.memory_space<vmem>>, %arg6: memref<32x32xf32, #tpu.memory_space<vmem>>, %arg7: memref<1x32xf32, #tpu.memory_space<vmem>>, %arg8: memref<32x16xf32, #tpu.memory_space<vmem>>, %arg9: memref<32x16xf32, #tpu.memory_space<vmem>>, %arg10: memref<16x32xf32, #tpu.memory_space<vmem>>, %arg11: memref<1x32xf32, #tpu.memory_space<vmem>>, %arg12: memref<32x16xf32, #tpu.memory_space<vmem>>, %arg13: memref<1x16xf32, #tpu.memory_space<vmem>>, %arg14: memref<16x16xf32, #tpu.memory_space<vmem>>, %arg15: memref<1x16xf32, #tpu.memory_space<vmem>>, %arg16: memref<1x2x32xf32, #tpu.memory_space<vmem>>, %arg17: memref<8x16x64xf32, #tpu.memory_space<vmem>>, %arg18: memref<8x16x64xf32, #tpu.memory_space<vmem>>, %arg19: memref<8x16x64xf32, #tpu.memory_space<vmem>>) attributes {dimension_semantics = [#tpu.dimension_semantics<parallel>], iteration_bounds = array<i64: 4>, scalar_prefetch = 0 : i64, scratch_operands = 3 : i64, tpu.core_type = #tpu.core_type<tc>, window_params = [{transform_indices = @transform_0, window_bounds = array<i64: 1, 16, 32>}, {pipeline_mode = #tpu.pipeline_mode<synchronous>, transform_indices = @transform_1, window_bounds = array<i64: 32, 32>}, {pipeline_mode = #tpu.pipeline_mode<synchronous>, transform_indices = @transform_2, window_bounds = array<i64: 32, 32>}, {pipeline_mode = #tpu.pipeline_mode<synchronous>, transform_indices = @transform_3, window_bounds = array<i64: 4, 32>}, {pipeline_mode = #tpu.pipeline_mode<synchronous>, transform_indices = @transform_4, window_bounds = array<i64: 1, 32>}, {pipeline_mode = #tpu.pipeline_mode<synchronous>, transform_indices = @transform_5, window_bounds = array<i64: 32, 32>}, {pipeline_mode = #tpu.pipeline_mode<synchronous>, transform_indices = @transform_6, window_bounds = array<i64: 1, 32>}, {pipeline_mode = #tpu.pipeline_mode<synchronous>, transform_indices = @transform_7, window_bounds = array<i64: 32, 16>}, {pipeline_mode = #tpu.pipeline_mode<synchronous>, transform_indices = @transform_8, window_bounds = array<i64: 32, 16>}, {pipeline_mode = #tpu.pipeline_mode<synchronous>, transform_indices = @transform_9, window_bounds = array<i64: 16, 32>}, {pipeline_mode = #tpu.pipeline_mode<synchronous>, transform_indices = @transform_10, window_bounds = array<i64: 1, 32>}, {pipeline_mode = #tpu.pipeline_mode<synchronous>, transform_indices = @transform_11, window_bounds = array<i64: 32, 16>}, {pipeline_mode = #tpu.pipeline_mode<synchronous>, transform_indices = @transform_12, window_bounds = array<i64: 1, 16>}, {pipeline_mode = #tpu.pipeline_mode<synchronous>, transform_indices = @transform_13, window_bounds = array<i64: 16, 16>}, {pipeline_mode = #tpu.pipeline_mode<synchronous>, transform_indices = @transform_14, window_bounds = array<i64: 1, 16>}, {transform_indices = @transform_15, window_bounds = array<i64: 1, 2, 32>}]} {
    %c0 = arith.constant 0 : index
    %c0_0 = arith.constant 0 : index
    %c0_1 = arith.constant 0 : index
    %0 = vector.load %arg1[%c0, %c0_0, %c0_1] : memref<1x16x32xf32, #tpu.memory_space<vmem>>, vector<1x16x32xf32>
    %1 = vector.shape_cast %0 : vector<1x16x32xf32> to vector<16x32xf32>
    %c0_2 = arith.constant 0 : index
    %c0_3 = arith.constant 0 : index
    %2 = vector.load %arg2[%c0_2, %c0_3] : memref<32x32xf32, #tpu.memory_space<vmem>>, vector<32x32xf32>
    %cst = arith.constant dense<0.000000e+00> : vector<16x32xf32>
    %3 = tpu.matmul %1, %2, %cst {dimension_numbers = #tpu.dot_dimension_numbers<[1], [0], [0], [1], [0, 0, 1, 1], [], []>} : vector<16x32xf32>, vector<32x32xf32>, vector<16x32xf32> -> vector<16x32xf32>
    %c0_4 = arith.constant 0 : index
    %c0_5 = arith.constant 0 : index
    %4 = vector.load %arg3[%c0_4, %c0_5] : memref<32x32xf32, #tpu.memory_space<vmem>>, vector<32x32xf32>
    %cst_6 = arith.constant dense<0.000000e+00> : vector<16x32xf32>
    %5 = tpu.matmul %1, %4, %cst_6 {dimension_numbers = #tpu.dot_dimension_numbers<[1], [0], [0], [1], [0, 0, 1, 1], [], []>} : vector<16x32xf32>, vector<32x32xf32>, vector<16x32xf32> -> vector<16x32xf32>
    %6 = tpu.iota {dimensions = array<i32: 0>} : vector<16x32xi32>
    %c8_i32 = arith.constant 8 : i32
    %c0_i32 = arith.constant 0 : i32
    %7 = arith.cmpi eq, %c8_i32, %c0_i32 : i32
    %c1_i32 = arith.constant 1 : i32
    %8 = arith.select %7, %c1_i32, %c8_i32 : i32
    %9 = vector.broadcast %8 : i32 to vector<16x32xi32>
    %10 = arith.remsi %6, %9 : vector<16x32xi32>
    %c0_i32_7 = arith.constant 0 : i32
    %11 = vector.broadcast %c0_i32_7 : i32 to vector<16x32xi32>
    %12 = arith.cmpi ne, %10, %11 : vector<16x32xi32>
    %c0_i32_8 = arith.constant 0 : i32
    %13 = vector.broadcast %c0_i32_8 : i32 to vector<16x32xi32>
    %14 = arith.cmpi slt, %10, %13 : vector<16x32xi32>
    %c0_i32_9 = arith.constant 0 : i32
    %15 = arith.cmpi slt, %8, %c0_i32_9 : i32
    %16 = vector.broadcast %15 : i1 to vector<16x32xi1>
    %17 = vector.broadcast %16 : vector<16x32xi1> to vector<16x32xi1>
    %18 = arith.xori %14, %17 : vector<16x32xi1>
    %19 = arith.andi %18, %12 : vector<16x32xi1>
    %20 = vector.broadcast %8 : i32 to vector<16x32xi32>
    %21 = arith.addi %10, %20 : vector<16x32xi32>
    %22 = arith.select %19, %21, %10 : vector<16x32xi1>, vector<16x32xi32>
    %cst_10 = arith.constant 0.000000e+00 : f32
    %23 = vector.broadcast %cst_10 : f32 to vector<16x32xf32>
    %c0_11 = arith.constant 0 : index
    %c0_12 = arith.constant 0 : index
    %24 = vector.load %arg4[%c0_11, %c0_12] : memref<4x32xf32, #tpu.memory_space<vmem>>, vector<1x32xf32>
    %c3_i32 = arith.constant 3 : i32
    %25 = tpu.dynamic_rotate %3 by %c3_i32 dim 0 : vector<16x32xf32>, i32 -> vector<16x32xf32>
    %c3_i32_13 = arith.constant 3 : i32
    %26 = vector.broadcast %c3_i32_13 : i32 to vector<16x32xi32>
    %27 = arith.cmpi sge, %22, %26 : vector<16x32xi32>
    %cst_14 = arith.constant 0.000000e+00 : f32
    %28 = vector.broadcast %cst_14 : f32 to vector<16x32xf32>
    %29 = arith.select %27, %25, %28 : vector<16x32xi1>, vector<16x32xf32>
    %30 = vector.broadcast %24 : vector<1x32xf32> to vector<16x32xf32>
    %31 = arith.mulf %29, %30 : vector<16x32xf32>
    %32 = arith.addf %23, %31 : vector<16x32xf32>
    %c1 = arith.constant 1 : index
    %c0_15 = arith.constant 0 : index
    %33 = vector.load %arg4[%c1, %c0_15] : memref<4x32xf32, #tpu.memory_space<vmem>>, vector<1x32xf32>
    %c2_i32 = arith.constant 2 : i32
    %34 = tpu.dynamic_rotate %3 by %c2_i32 dim 0 : vector<16x32xf32>, i32 -> vector<16x32xf32>
    %c2_i32_16 = arith.constant 2 : i32
    %35 = vector.broadcast %c2_i32_16 : i32 to vector<16x32xi32>
    %36 = arith.cmpi sge, %22, %35 : vector<16x32xi32>
    %cst_17 = arith.constant 0.000000e+00 : f32
    %37 = vector.broadcast %cst_17 : f32 to vector<16x32xf32>
    %38 = arith.select %36, %34, %37 : vector<16x32xi1>, vector<16x32xf32>
    %39 = vector.broadcast %33 : vector<1x32xf32> to vector<16x32xf32>
    %40 = arith.mulf %38, %39 : vector<16x32xf32>
    %41 = arith.addf %32, %40 : vector<16x32xf32>
    %c2 = arith.constant 2 : index
    %c0_18 = arith.constant 0 : index
    %42 = vector.load %arg4[%c2, %c0_18] : memref<4x32xf32, #tpu.memory_space<vmem>>, vector<1x32xf32>
    %c1_i32_19 = arith.constant 1 : i32
    %43 = tpu.dynamic_rotate %3 by %c1_i32_19 dim 0 : vector<16x32xf32>, i32 -> vector<16x32xf32>
    %c1_i32_20 = arith.constant 1 : i32
    %44 = vector.broadcast %c1_i32_20 : i32 to vector<16x32xi32>
    %45 = arith.cmpi sge, %22, %44 : vector<16x32xi32>
    %cst_21 = arith.constant 0.000000e+00 : f32
    %46 = vector.broadcast %cst_21 : f32 to vector<16x32xf32>
    %47 = arith.select %45, %43, %46 : vector<16x32xi1>, vector<16x32xf32>
    %48 = vector.broadcast %42 : vector<1x32xf32> to vector<16x32xf32>
    %49 = arith.mulf %47, %48 : vector<16x32xf32>
    %50 = arith.addf %41, %49 : vector<16x32xf32>
    %c3 = arith.constant 3 : index
    %c0_22 = arith.constant 0 : index
    %51 = vector.load %arg4[%c3, %c0_22] : memref<4x32xf32, #tpu.memory_space<vmem>>, vector<1x32xf32>
    %52 = vector.broadcast %51 : vector<1x32xf32> to vector<16x32xf32>
    %53 = arith.mulf %3, %52 : vector<16x32xf32>
    %54 = arith.addf %50, %53 : vector<16x32xf32>
    %c0_23 = arith.constant 0 : index
    %c0_24 = arith.constant 0 : index
    %55 = vector.load %arg5[%c0_23, %c0_24] : memref<1x32xf32, #tpu.memory_space<vmem>>, vector<1x32xf32>
    %56 = vector.broadcast %55 : vector<1x32xf32> to vector<16x32xf32>
    %57 = arith.addf %54, %56 : vector<16x32xf32>
    %cst_25 = arith.constant 0.000000e+00 : f32
    %58 = vector.broadcast %cst_25 : f32 to vector<16x32xf32>
    %59 = arith.subf %58, %57 : vector<16x32xf32>
    %60 = math.exp %59 : vector<16x32xf32>
    %cst_26 = arith.constant 1.000000e+00 : f32
    %61 = vector.broadcast %cst_26 : f32 to vector<16x32xf32>
    %62 = arith.addf %61, %60 : vector<16x32xf32>
    %63 = arith.divf %57, %62 : vector<16x32xf32>
    %cst_27 = arith.constant 0.000000e+00 : f32
    %64 = vector.broadcast %cst_27 : f32 to vector<16x32xf32>
    %65 = arith.subf %64, %5 : vector<16x32xf32>
    %66 = math.exp %65 : vector<16x32xf32>
    %cst_28 = arith.constant 1.000000e+00 : f32
    %67 = vector.broadcast %cst_28 : f32 to vector<16x32xf32>
    %68 = arith.addf %67, %66 : vector<16x32xf32>
    %69 = arith.divf %5, %68 : vector<16x32xf32>
    %c0_29 = arith.constant 0 : index
    %c0_30 = arith.constant 0 : index
    %70 = vector.load %arg6[%c0_29, %c0_30] : memref<32x32xf32, #tpu.memory_space<vmem>>, vector<32x32xf32>
    %cst_31 = arith.constant dense<0.000000e+00> : vector<16x32xf32>
    %71 = tpu.matmul %63, %70, %cst_31 {dimension_numbers = #tpu.dot_dimension_numbers<[1], [0], [0], [1], [0, 0, 1, 1], [], []>} : vector<16x32xf32>, vector<32x32xf32>, vector<16x32xf32> -> vector<16x32xf32>
    %c0_32 = arith.constant 0 : index
    %c0_33 = arith.constant 0 : index
    %72 = vector.load %arg7[%c0_32, %c0_33] : memref<1x32xf32, #tpu.memory_space<vmem>>, vector<1x32xf32>
    %73 = vector.broadcast %72 : vector<1x32xf32> to vector<16x32xf32>
    %74 = arith.addf %71, %73 : vector<16x32xf32>
    %cst_34 = arith.constant 0.000000e+00 : f32
    %75 = vector.broadcast %cst_34 : f32 to vector<16x32xf32>
    %76 = arith.maximumf %74, %75 : vector<16x32xf32>
    %77 = math.absf %74 : vector<16x32xf32>
    %cst_35 = arith.constant 0.000000e+00 : f32
    %78 = vector.broadcast %cst_35 : f32 to vector<16x32xf32>
    %79 = arith.subf %78, %77 : vector<16x32xf32>
    %80 = math.exp %79 : vector<16x32xf32>
    %cst_36 = arith.constant 1.000000e+00 : f32
    %81 = vector.broadcast %cst_36 : f32 to vector<16x32xf32>
    %82 = arith.addf %81, %80 : vector<16x32xf32>
    %83 = math.log %82 : vector<16x32xf32>
    %84 = arith.addf %76, %83 : vector<16x32xf32>
    %c0_37 = arith.constant 0 : index
    %c0_38 = arith.constant 0 : index
    %85 = vector.load %arg8[%c0_37, %c0_38] : memref<32x16xf32, #tpu.memory_space<vmem>>, vector<32x16xf32>
    %cst_39 = arith.constant dense<0.000000e+00> : vector<16x16xf32>
    %86 = tpu.matmul %63, %85, %cst_39 {dimension_numbers = #tpu.dot_dimension_numbers<[1], [0], [0], [1], [0, 0, 1, 1], [], []>} : vector<16x32xf32>, vector<32x16xf32>, vector<16x16xf32> -> vector<16x16xf32>
    %c0_40 = arith.constant 0 : index
    %c0_41 = arith.constant 0 : index
    %87 = vector.load %arg9[%c0_40, %c0_41] : memref<32x16xf32, #tpu.memory_space<vmem>>, vector<32x16xf32>
    %cst_42 = arith.constant dense<0.000000e+00> : vector<16x16xf32>
    %88 = tpu.matmul %63, %87, %cst_42 {dimension_numbers = #tpu.dot_dimension_numbers<[1], [0], [0], [1], [0, 0, 1, 1], [], []>} : vector<16x32xf32>, vector<32x16xf32>, vector<16x16xf32> -> vector<16x16xf32>
    %89 = arith.mulf %84, %63 : vector<16x32xf32>
    %c0_43 = arith.constant 0 : index
    %c0_44 = arith.constant 0 : index
    %90 = vector.load %arg10[%c0_43, %c0_44] : memref<16x32xf32, #tpu.memory_space<vmem>>, vector<16x32xf32>
    %91 = vector.extract_strided_slice %84 {offsets = [0, 0], sizes = [8, 32], strides = [1, 1]} : vector<16x32xf32> to vector<8x32xf32>
    %92 = vector.shape_cast %91 : vector<8x32xf32> to vector<8x1x32xf32>
    %93 = vector.shape_cast %90 : vector<16x32xf32> to vector<1x16x32xf32>
    %94 = vector.broadcast %92 : vector<8x1x32xf32> to vector<8x16x32xf32>
    %95 = vector.broadcast %93 : vector<1x16x32xf32> to vector<8x16x32xf32>
    %96 = arith.mulf %94, %95 : vector<8x16x32xf32>
    %97 = vector.extract_strided_slice %84 {offsets = [8, 0], sizes = [8, 32], strides = [1, 1]} : vector<16x32xf32> to vector<8x32xf32>
    %98 = vector.shape_cast %97 : vector<8x32xf32> to vector<8x1x32xf32>
    %99 = vector.shape_cast %90 : vector<16x32xf32> to vector<1x16x32xf32>
    %100 = vector.broadcast %98 : vector<8x1x32xf32> to vector<8x16x32xf32>
    %101 = vector.broadcast %99 : vector<1x16x32xf32> to vector<8x16x32xf32>
    %102 = arith.mulf %100, %101 : vector<8x16x32xf32>
    %103 = tpu.concatenate %96, %102 in 2 : vector<8x16x32xf32>, vector<8x16x32xf32> -> vector<8x16x64xf32>
    %104 = math.exp %103 : vector<8x16x64xf32>
    %c0_45 = arith.constant 0 : index
    %c0_46 = arith.constant 0 : index
    %c0_47 = arith.constant 0 : index
    %105 = vector.load %arg17[%c0_45, %c0_46, %c0_47] : memref<8x16x64xf32, #tpu.memory_space<vmem>>, vector<8x16x64xf32>
    tpu.vector_store %arg17[%c0_45, %c0_46, %c0_47], %104 {strides = array<i32>} : memref<8x16x64xf32, #tpu.memory_space<vmem>>, vector<8x16x64xf32>,
    %106 = vector.extract_strided_slice %86 {offsets = [0, 0], sizes = [8, 16], strides = [1, 1]} : vector<16x16xf32> to vector<8x16xf32>
    %107 = vector.shape_cast %106 : vector<8x16xf32> to vector<8x16x1xf32>
    %108 = vector.extract_strided_slice %89 {offsets = [0, 0], sizes = [8, 32], strides = [1, 1]} : vector<16x32xf32> to vector<8x32xf32>
    %109 = vector.shape_cast %108 : vector<8x32xf32> to vector<8x1x32xf32>
    %110 = vector.broadcast %107 : vector<8x16x1xf32> to vector<8x16x32xf32>
    %111 = vector.broadcast %109 : vector<8x1x32xf32> to vector<8x16x32xf32>
    %112 = arith.mulf %110, %111 : vector<8x16x32xf32>
    %113 = vector.extract_strided_slice %86 {offsets = [8, 0], sizes = [8, 16], strides = [1, 1]} : vector<16x16xf32> to vector<8x16xf32>
    %114 = vector.shape_cast %113 : vector<8x16xf32> to vector<8x16x1xf32>
    %115 = vector.extract_strided_slice %89 {offsets = [8, 0], sizes = [8, 32], strides = [1, 1]} : vector<16x32xf32> to vector<8x32xf32>
    %116 = vector.shape_cast %115 : vector<8x32xf32> to vector<8x1x32xf32>
    %117 = vector.broadcast %114 : vector<8x16x1xf32> to vector<8x16x32xf32>
    %118 = vector.broadcast %116 : vector<8x1x32xf32> to vector<8x16x32xf32>
    %119 = arith.mulf %117, %118 : vector<8x16x32xf32>
    %120 = tpu.concatenate %112, %119 in 2 : vector<8x16x32xf32>, vector<8x16x32xf32> -> vector<8x16x64xf32>
    %c0_48 = arith.constant 0 : index
    %c0_49 = arith.constant 0 : index
    %c0_50 = arith.constant 0 : index
    %121 = vector.load %arg18[%c0_48, %c0_49, %c0_50] : memref<8x16x64xf32, #tpu.memory_space<vmem>>, vector<8x16x64xf32>
    tpu.vector_store %arg18[%c0_48, %c0_49, %c0_50], %120 {strides = array<i32>} : memref<8x16x64xf32, #tpu.memory_space<vmem>>, vector<8x16x64xf32>,
    %122 = vector.extract_strided_slice %88 {offsets = [0, 0], sizes = [8, 16], strides = [1, 1]} : vector<16x16xf32> to vector<8x16xf32>
    %123 = vector.shape_cast %122 : vector<8x16xf32> to vector<8x16x1xf32>
    %124 = vector.extract_strided_slice %69 {offsets = [0, 0], sizes = [8, 32], strides = [1, 1]} : vector<16x32xf32> to vector<8x32xf32>
    %125 = vector.shape_cast %124 : vector<8x32xf32> to vector<8x1x32xf32>
    %126 = vector.broadcast %123 : vector<8x16x1xf32> to vector<8x16x32xf32>
    %127 = vector.broadcast %125 : vector<8x1x32xf32> to vector<8x16x32xf32>
    %128 = arith.mulf %126, %127 : vector<8x16x32xf32>
    %129 = vector.extract_strided_slice %88 {offsets = [8, 0], sizes = [8, 16], strides = [1, 1]} : vector<16x16xf32> to vector<8x16xf32>
    %130 = vector.shape_cast %129 : vector<8x16xf32> to vector<8x16x1xf32>
    %131 = vector.extract_strided_slice %69 {offsets = [8, 0], sizes = [8, 32], strides = [1, 1]} : vector<16x32xf32> to vector<8x32xf32>
    %132 = vector.shape_cast %131 : vector<8x32xf32> to vector<8x1x32xf32>
    %133 = vector.broadcast %130 : vector<8x16x1xf32> to vector<8x16x32xf32>
    %134 = vector.broadcast %132 : vector<8x1x32xf32> to vector<8x16x32xf32>
    %135 = arith.mulf %133, %134 : vector<8x16x32xf32>
    %136 = tpu.concatenate %128, %135 in 2 : vector<8x16x32xf32>, vector<8x16x32xf32> -> vector<8x16x64xf32>
    %c0_51 = arith.constant 0 : index
    %c0_52 = arith.constant 0 : index
    %c0_53 = arith.constant 0 : index
    %137 = vector.load %arg19[%c0_51, %c0_52, %c0_53] : memref<8x16x64xf32, #tpu.memory_space<vmem>>, vector<8x16x64xf32>
    tpu.vector_store %arg19[%c0_51, %c0_52, %c0_53], %136 {strides = array<i32>} : memref<8x16x64xf32, #tpu.memory_space<vmem>>, vector<8x16x64xf32>,
    %cst_54 = arith.constant 0.000000e+00 : f32
    %138 = vector.broadcast %cst_54 : f32 to vector<16x64xf32>
    %cst_55 = arith.constant 0.000000e+00 : f32
    %139 = vector.broadcast %cst_55 : f32 to vector<1x64xf32>
    %c0_56 = arith.constant 0 : index
    %c0_57 = arith.constant 0 : index
    %c0_58 = arith.constant 0 : index
    %140 = vector.load %arg17[%c0_56, %c0_57, %c0_58] : memref<8x16x64xf32, #tpu.memory_space<vmem>>, vector<1x16x64xf32>
    %141 = vector.shape_cast %140 : vector<1x16x64xf32> to vector<16x64xf32>
    %142 = arith.mulf %141, %138 : vector<16x64xf32>
    %c0_59 = arith.constant 0 : index
    %c0_60 = arith.constant 0 : index
    %c0_61 = arith.constant 0 : index
    %143 = vector.load %arg18[%c0_59, %c0_60, %c0_61] : memref<8x16x64xf32, #tpu.memory_space<vmem>>, vector<1x16x64xf32>
    %144 = vector.shape_cast %143 : vector<1x16x64xf32> to vector<16x64xf32>
    %145 = arith.addf %142, %144 : vector<16x64xf32>
    %c0_62 = arith.constant 0 : index
    %c0_63 = arith.constant 0 : index
    %c0_64 = arith.constant 0 : index
    %146 = vector.load %arg19[%c0_62, %c0_63, %c0_64] : memref<8x16x64xf32, #tpu.memory_space<vmem>>, vector<1x16x64xf32>
    %147 = vector.shape_cast %146 : vector<1x16x64xf32> to vector<16x64xf32>
    %148 = arith.mulf %145, %147 : vector<16x64xf32>
    %cst_65 = arith.constant dense<0.000000e+00> : vector<64xf32>
    %149 = vector.multi_reduction <add>, %148, %cst_65 [0] : vector<16x64xf32> to vector<64xf32>
    %150 = vector.shape_cast %149 : vector<64xf32> to vector<1x64xf32>
    %151 = arith.addf %139, %150 : vector<1x64xf32>
    %c1_66 = arith.constant 1 : index
    %c0_67 = arith.constant 0 : index
    %c0_68 = arith.constant 0 : index
    %152 = vector.load %arg17[%c1_66, %c0_67, %c0_68] : memref<8x16x64xf32, #tpu.memory_space<vmem>>, vector<1x16x64xf32>
    %153 = vector.shape_cast %152 : vector<1x16x64xf32> to vector<16x64xf32>
    %154 = arith.mulf %153, %145 : vector<16x64xf32>
    %c1_69 = arith.constant 1 : index
    %c0_70 = arith.constant 0 : index
    %c0_71 = arith.constant 0 : index
    %155 = vector.load %arg18[%c1_69, %c0_70, %c0_71] : memref<8x16x64xf32, #tpu.memory_space<vmem>>, vector<1x16x64xf32>
    %156 = vector.shape_cast %155 : vector<1x16x64xf32> to vector<16x64xf32>
    %157 = arith.addf %154, %156 : vector<16x64xf32>
    %c1_72 = arith.constant 1 : index
    %c0_73 = arith.constant 0 : index
    %c0_74 = arith.constant 0 : index
    %158 = vector.load %arg19[%c1_72, %c0_73, %c0_74] : memref<8x16x64xf32, #tpu.memory_space<vmem>>, vector<1x16x64xf32>
    %159 = vector.shape_cast %158 : vector<1x16x64xf32> to vector<16x64xf32>
    %160 = arith.mulf %157, %159 : vector<16x64xf32>
    %cst_75 = arith.constant dense<0.000000e+00> : vector<64xf32>
    %161 = vector.multi_reduction <add>, %160, %cst_75 [0] : vector<16x64xf32> to vector<64xf32>
    %162 = vector.shape_cast %161 : vector<64xf32> to vector<1x64xf32>
    %163 = arith.addf %151, %162 : vector<1x64xf32>
    %c2_76 = arith.constant 2 : index
    %c0_77 = arith.constant 0 : index
    %c0_78 = arith.constant 0 : index
    %164 = vector.load %arg17[%c2_76, %c0_77, %c0_78] : memref<8x16x64xf32, #tpu.memory_space<vmem>>, vector<1x16x64xf32>
    %165 = vector.shape_cast %164 : vector<1x16x64xf32> to vector<16x64xf32>
    %166 = arith.mulf %165, %157 : vector<16x64xf32>
    %c2_79 = arith.constant 2 : index
    %c0_80 = arith.constant 0 : index
    %c0_81 = arith.constant 0 : index
    %167 = vector.load %arg18[%c2_79, %c0_80, %c0_81] : memref<8x16x64xf32, #tpu.memory_space<vmem>>, vector<1x16x64xf32>
    %168 = vector.shape_cast %167 : vector<1x16x64xf32> to vector<16x64xf32>
    %169 = arith.addf %166, %168 : vector<16x64xf32>
    %c2_82 = arith.constant 2 : index
    %c0_83 = arith.constant 0 : index
    %c0_84 = arith.constant 0 : index
    %170 = vector.load %arg19[%c2_82, %c0_83, %c0_84] : memref<8x16x64xf32, #tpu.memory_space<vmem>>, vector<1x16x64xf32>
    %171 = vector.shape_cast %170 : vector<1x16x64xf32> to vector<16x64xf32>
    %172 = arith.mulf %169, %171 : vector<16x64xf32>
    %cst_85 = arith.constant dense<0.000000e+00> : vector<64xf32>
    %173 = vector.multi_reduction <add>, %172, %cst_85 [0] : vector<16x64xf32> to vector<64xf32>
    %174 = vector.shape_cast %173 : vector<64xf32> to vector<1x64xf32>
    %175 = arith.addf %163, %174 : vector<1x64xf32>
    %c3_86 = arith.constant 3 : index
    %c0_87 = arith.constant 0 : index
    %c0_88 = arith.constant 0 : index
    %176 = vector.load %arg17[%c3_86, %c0_87, %c0_88] : memref<8x16x64xf32, #tpu.memory_space<vmem>>, vector<1x16x64xf32>
    %177 = vector.shape_cast %176 : vector<1x16x64xf32> to vector<16x64xf32>
    %178 = arith.mulf %177, %169 : vector<16x64xf32>
    %c3_89 = arith.constant 3 : index
    %c0_90 = arith.constant 0 : index
    %c0_91 = arith.constant 0 : index
    %179 = vector.load %arg18[%c3_89, %c0_90, %c0_91] : memref<8x16x64xf32, #tpu.memory_space<vmem>>, vector<1x16x64xf32>
    %180 = vector.shape_cast %179 : vector<1x16x64xf32> to vector<16x64xf32>
    %181 = arith.addf %178, %180 : vector<16x64xf32>
    %c3_92 = arith.constant 3 : index
    %c0_93 = arith.constant 0 : index
    %c0_94 = arith.constant 0 : index
    %182 = vector.load %arg19[%c3_92, %c0_93, %c0_94] : memref<8x16x64xf32, #tpu.memory_space<vmem>>, vector<1x16x64xf32>
    %183 = vector.shape_cast %182 : vector<1x16x64xf32> to vector<16x64xf32>
    %184 = arith.mulf %181, %183 : vector<16x64xf32>
    %cst_95 = arith.constant dense<0.000000e+00> : vector<64xf32>
    %185 = vector.multi_reduction <add>, %184, %cst_95 [0] : vector<16x64xf32> to vector<64xf32>
    %186 = vector.shape_cast %185 : vector<64xf32> to vector<1x64xf32>
    %187 = arith.addf %175, %186 : vector<1x64xf32>
    %c4 = arith.constant 4 : index
    %c0_96 = arith.constant 0 : index
    %c0_97 = arith.constant 0 : index
    %188 = vector.load %arg17[%c4, %c0_96, %c0_97] : memref<8x16x64xf32, #tpu.memory_space<vmem>>, vector<1x16x64xf32>
    %189 = vector.shape_cast %188 : vector<1x16x64xf32> to vector<16x64xf32>
    %190 = arith.mulf %189, %181 : vector<16x64xf32>
    %c4_98 = arith.constant 4 : index
    %c0_99 = arith.constant 0 : index
    %c0_100 = arith.constant 0 : index
    %191 = vector.load %arg18[%c4_98, %c0_99, %c0_100] : memref<8x16x64xf32, #tpu.memory_space<vmem>>, vector<1x16x64xf32>
    %192 = vector.shape_cast %191 : vector<1x16x64xf32> to vector<16x64xf32>
    %193 = arith.addf %190, %192 : vector<16x64xf32>
    %c4_101 = arith.constant 4 : index
    %c0_102 = arith.constant 0 : index
    %c0_103 = arith.constant 0 : index
    %194 = vector.load %arg19[%c4_101, %c0_102, %c0_103] : memref<8x16x64xf32, #tpu.memory_space<vmem>>, vector<1x16x64xf32>
    %195 = vector.shape_cast %194 : vector<1x16x64xf32> to vector<16x64xf32>
    %196 = arith.mulf %193, %195 : vector<16x64xf32>
    %cst_104 = arith.constant dense<0.000000e+00> : vector<64xf32>
    %197 = vector.multi_reduction <add>, %196, %cst_104 [0] : vector<16x64xf32> to vector<64xf32>
    %198 = vector.shape_cast %197 : vector<64xf32> to vector<1x64xf32>
    %199 = arith.addf %187, %198 : vector<1x64xf32>
    %c5 = arith.constant 5 : index
    %c0_105 = arith.constant 0 : index
    %c0_106 = arith.constant 0 : index
    %200 = vector.load %arg17[%c5, %c0_105, %c0_106] : memref<8x16x64xf32, #tpu.memory_space<vmem>>, vector<1x16x64xf32>
    %201 = vector.shape_cast %200 : vector<1x16x64xf32> to vector<16x64xf32>
    %202 = arith.mulf %201, %193 : vector<16x64xf32>
    %c5_107 = arith.constant 5 : index
    %c0_108 = arith.constant 0 : index
    %c0_109 = arith.constant 0 : index
    %203 = vector.load %arg18[%c5_107, %c0_108, %c0_109] : memref<8x16x64xf32, #tpu.memory_space<vmem>>, vector<1x16x64xf32>
    %204 = vector.shape_cast %203 : vector<1x16x64xf32> to vector<16x64xf32>
    %205 = arith.addf %202, %204 : vector<16x64xf32>
    %c5_110 = arith.constant 5 : index
    %c0_111 = arith.constant 0 : index
    %c0_112 = arith.constant 0 : index
    %206 = vector.load %arg19[%c5_110, %c0_111, %c0_112] : memref<8x16x64xf32, #tpu.memory_space<vmem>>, vector<1x16x64xf32>
    %207 = vector.shape_cast %206 : vector<1x16x64xf32> to vector<16x64xf32>
    %208 = arith.mulf %205, %207 : vector<16x64xf32>
    %cst_113 = arith.constant dense<0.000000e+00> : vector<64xf32>
    %209 = vector.multi_reduction <add>, %208, %cst_113 [0] : vector<16x64xf32> to vector<64xf32>
    %210 = vector.shape_cast %209 : vector<64xf32> to vector<1x64xf32>
    %211 = arith.addf %199, %210 : vector<1x64xf32>
    %c6 = arith.constant 6 : index
    %c0_114 = arith.constant 0 : index
    %c0_115 = arith.constant 0 : index
    %212 = vector.load %arg17[%c6, %c0_114, %c0_115] : memref<8x16x64xf32, #tpu.memory_space<vmem>>, vector<1x16x64xf32>
    %213 = vector.shape_cast %212 : vector<1x16x64xf32> to vector<16x64xf32>
    %214 = arith.mulf %213, %205 : vector<16x64xf32>
    %c6_116 = arith.constant 6 : index
    %c0_117 = arith.constant 0 : index
    %c0_118 = arith.constant 0 : index
    %215 = vector.load %arg18[%c6_116, %c0_117, %c0_118] : memref<8x16x64xf32, #tpu.memory_space<vmem>>, vector<1x16x64xf32>
    %216 = vector.shape_cast %215 : vector<1x16x64xf32> to vector<16x64xf32>
    %217 = arith.addf %214, %216 : vector<16x64xf32>
    %c6_119 = arith.constant 6 : index
    %c0_120 = arith.constant 0 : index
    %c0_121 = arith.constant 0 : index
    %218 = vector.load %arg19[%c6_119, %c0_120, %c0_121] : memref<8x16x64xf32, #tpu.memory_space<vmem>>, vector<1x16x64xf32>
    %219 = vector.shape_cast %218 : vector<1x16x64xf32> to vector<16x64xf32>
    %220 = arith.mulf %217, %219 : vector<16x64xf32>
    %cst_122 = arith.constant dense<0.000000e+00> : vector<64xf32>
    %221 = vector.multi_reduction <add>, %220, %cst_122 [0] : vector<16x64xf32> to vector<64xf32>
    %222 = vector.shape_cast %221 : vector<64xf32> to vector<1x64xf32>
    %223 = arith.addf %211, %222 : vector<1x64xf32>
    %c7 = arith.constant 7 : index
    %c0_123 = arith.constant 0 : index
    %c0_124 = arith.constant 0 : index
    %224 = vector.load %arg17[%c7, %c0_123, %c0_124] : memref<8x16x64xf32, #tpu.memory_space<vmem>>, vector<1x16x64xf32>
    %225 = vector.shape_cast %224 : vector<1x16x64xf32> to vector<16x64xf32>
    %226 = arith.mulf %225, %217 : vector<16x64xf32>
    %c7_125 = arith.constant 7 : index
    %c0_126 = arith.constant 0 : index
    %c0_127 = arith.constant 0 : index
    %227 = vector.load %arg18[%c7_125, %c0_126, %c0_127] : memref<8x16x64xf32, #tpu.memory_space<vmem>>, vector<1x16x64xf32>
    %228 = vector.shape_cast %227 : vector<1x16x64xf32> to vector<16x64xf32>
    %229 = arith.addf %226, %228 : vector<16x64xf32>
    %c7_128 = arith.constant 7 : index
    %c0_129 = arith.constant 0 : index
    %c0_130 = arith.constant 0 : index
    %230 = vector.load %arg19[%c7_128, %c0_129, %c0_130] : memref<8x16x64xf32, #tpu.memory_space<vmem>>, vector<1x16x64xf32>
    %231 = vector.shape_cast %230 : vector<1x16x64xf32> to vector<16x64xf32>
    %232 = arith.mulf %229, %231 : vector<16x64xf32>
    %cst_131 = arith.constant dense<0.000000e+00> : vector<64xf32>
    %233 = vector.multi_reduction <add>, %232, %cst_131 [0] : vector<16x64xf32> to vector<64xf32>
    %234 = vector.shape_cast %233 : vector<64xf32> to vector<1x64xf32>
    %235 = arith.addf %223, %234 : vector<1x64xf32>
    %236 = arith.mulf %63, %69 : vector<16x32xf32>
    %c0_132 = arith.constant 0 : index
    %c0_133 = arith.constant 0 : index
    %237 = vector.load %arg11[%c0_132, %c0_133] : memref<1x32xf32, #tpu.memory_space<vmem>>, vector<1x32xf32>
    %238 = vector.broadcast %237 : vector<1x32xf32> to vector<16x32xf32>
    %239 = arith.mulf %236, %238 : vector<16x32xf32>
    %240 = vector.extract_strided_slice %239 {offsets = [0, 0], sizes = [8, 32], strides = [1, 1]} : vector<16x32xf32> to vector<8x32xf32>
    %cst_134 = arith.constant dense<0.000000e+00> : vector<32xf32>
    %241 = vector.multi_reduction <add>, %240, %cst_134 [0] : vector<8x32xf32> to vector<32xf32>
    %242 = vector.shape_cast %241 : vector<32xf32> to vector<1x32xf32>
    %243 = vector.extract_strided_slice %235 {offsets = [0, 0], sizes = [1, 32], strides = [1, 1]} : vector<1x64xf32> to vector<1x32xf32>
    %244 = arith.addf %243, %242 : vector<1x32xf32>
    %cst_135 = arith.constant 1.250000e-01 : f32
    %245 = vector.broadcast %cst_135 : f32 to vector<1x32xf32>
    %246 = arith.mulf %244, %245 : vector<1x32xf32>
    %247 = vector.extract_strided_slice %239 {offsets = [8, 0], sizes = [8, 32], strides = [1, 1]} : vector<16x32xf32> to vector<8x32xf32>
    %cst_136 = arith.constant dense<0.000000e+00> : vector<32xf32>
    %248 = vector.multi_reduction <add>, %247, %cst_136 [0] : vector<8x32xf32> to vector<32xf32>
    %249 = vector.shape_cast %248 : vector<32xf32> to vector<1x32xf32>
    %250 = vector.extract_strided_slice %235 {offsets = [0, 32], sizes = [1, 32], strides = [1, 1]} : vector<1x64xf32> to vector<1x32xf32>
    %251 = arith.addf %250, %249 : vector<1x32xf32>
    %cst_137 = arith.constant 1.250000e-01 : f32
    %252 = vector.broadcast %cst_137 : f32 to vector<1x32xf32>
    %253 = arith.mulf %251, %252 : vector<1x32xf32>
    %254 = tpu.concatenate %246, %253 in 0 : vector<1x32xf32>, vector<1x32xf32> -> vector<2x32xf32>
    %c0_138 = arith.constant 0 : index
    %c0_139 = arith.constant 0 : index
    %255 = vector.load %arg12[%c0_138, %c0_139] : memref<32x16xf32, #tpu.memory_space<vmem>>, vector<32x16xf32>
    %cst_140 = arith.constant dense<0.000000e+00> : vector<2x16xf32>
    %256 = tpu.matmul %254, %255, %cst_140 {dimension_numbers = #tpu.dot_dimension_numbers<[1], [0], [0], [1], [0, 0, 1, 1], [], []>} : vector<2x32xf32>, vector<32x16xf32>, vector<2x16xf32> -> vector<2x16xf32>
    %c0_141 = arith.constant 0 : index
    %c0_142 = arith.constant 0 : index
    %257 = vector.load %arg13[%c0_141, %c0_142] : memref<1x16xf32, #tpu.memory_space<vmem>>, vector<1x16xf32>
    %258 = vector.broadcast %257 : vector<1x16xf32> to vector<2x16xf32>
    %259 = arith.addf %256, %258 : vector<2x16xf32>
    %260 = math.tanh %259 : vector<2x16xf32>
    %cst_143 = arith.constant 0.000000e+00 : f32
    %261 = vector.broadcast %cst_143 : f32 to vector<2x16xf32>
    %262 = arith.cmpf ogt, %260, %261 : vector<2x16xf32>
    %cst_144 = arith.constant 0.000000e+00 : f32
    %263 = vector.broadcast %cst_144 : f32 to vector<2x16xf32>
    %264 = arith.minimumf %260, %263 : vector<2x16xf32>
    %265 = math.exp %264 : vector<2x16xf32>
    %cst_145 = arith.constant 1.000000e+00 : f32
    %266 = vector.broadcast %cst_145 : f32 to vector<2x16xf32>
    %267 = arith.subf %265, %266 : vector<2x16xf32>
    %268 = arith.select %262, %260, %267 : vector<2x16xi1>, vector<2x16xf32>
    %c0_146 = arith.constant 0 : index
    %c0_147 = arith.constant 0 : index
    %269 = vector.load %arg14[%c0_146, %c0_147] : memref<16x16xf32, #tpu.memory_space<vmem>>, vector<16x16xf32>
    %cst_148 = arith.constant dense<0.000000e+00> : vector<2x16xf32>
    %270 = tpu.matmul %268, %269, %cst_148 {dimension_numbers = #tpu.dot_dimension_numbers<[1], [0], [0], [1], [0, 0, 1, 1], [], []>} : vector<2x16xf32>, vector<16x16xf32>, vector<2x16xf32> -> vector<2x16xf32>
    %c0_149 = arith.constant 0 : index
    %c0_150 = arith.constant 0 : index
    %271 = vector.load %arg15[%c0_149, %c0_150] : memref<1x16xf32, #tpu.memory_space<vmem>>, vector<1x16xf32>
    %272 = vector.broadcast %271 : vector<1x16xf32> to vector<2x16xf32>
    %273 = arith.addf %270, %272 : vector<2x16xf32>
    %274 = vector.extract_strided_slice %273 {offsets = [0, 0], sizes = [2, 8], strides = [1, 1]} : vector<2x16xf32> to vector<2x8xf32>
    %275 = vector.extract_strided_slice %273 {offsets = [0, 8], sizes = [2, 8], strides = [1, 1]} : vector<2x16xf32> to vector<2x8xf32>
    %cst_151 = arith.constant 0.000000e+00 : f32
    %276 = vector.broadcast %cst_151 : f32 to vector<2x8xf32>
    %277 = arith.cmpf ogt, %275, %276 : vector<2x8xf32>
    %cst_152 = arith.constant 0.000000e+00 : f32
    %278 = vector.broadcast %cst_152 : f32 to vector<2x8xf32>
    %279 = arith.minimumf %275, %278 : vector<2x8xf32>
    %280 = math.exp %279 : vector<2x8xf32>
    %cst_153 = arith.constant 1.000000e+00 : f32
    %281 = vector.broadcast %cst_153 : f32 to vector<2x8xf32>
    %282 = arith.subf %280, %281 : vector<2x8xf32>
    %283 = arith.select %277, %275, %282 : vector<2x8xi1>, vector<2x8xf32>
    %cst_154 = arith.constant 1.000000e+00 : f32
    %284 = vector.broadcast %cst_154 : f32 to vector<2x8xf32>
    %285 = arith.addf %283, %284 : vector<2x8xf32>
    %286 = tpu.concatenate %268, %274, %285 in 1 : vector<2x16xf32>, vector<2x8xf32>, vector<2x8xf32> -> vector<2x32xf32>
    %c0_155 = arith.constant 0 : index
    %c0_156 = arith.constant 0 : index
    %c0_157 = arith.constant 0 : index
    %287 = vector.load %arg16[%c0_155, %c0_156, %c0_157] : memref<1x2x32xf32, #tpu.memory_space<vmem>>, vector<1x2x32xf32>
    %288 = vector.shape_cast %287 : vector<1x2x32xf32> to vector<2x32xf32>
    %289 = vector.shape_cast %286 : vector<2x32xf32> to vector<1x2x32xf32>
    tpu.vector_store %arg16[%c0_155, %c0_156, %c0_157], %289 {strides = array<i32>} : memref<1x2x32xf32, #tpu.memory_space<vmem>>, vector<1x2x32xf32>,
    return
  }
  func.func @transform_0(%arg0: i32) -> (i32, i32, i32) {
    %c0_i32 = arith.constant 0 : i32
    %c0_i32_0 = arith.constant 0 : i32
    %c0_i32_1 = arith.constant 0 : i32
    return %arg0, %c0_i32, %c0_i32_0 : i32, i32, i32
  }
  func.func @transform_1(%arg0: i32) -> (i32, i32) {
    %c0_i32 = arith.constant 0 : i32
    %c0_i32_0 = arith.constant 0 : i32
    %c0_i32_1 = arith.constant 0 : i32
    return %c0_i32, %c0_i32_0 : i32, i32
  }
  func.func @transform_2(%arg0: i32) -> (i32, i32) {
    %c0_i32 = arith.constant 0 : i32
    %c0_i32_0 = arith.constant 0 : i32
    %c0_i32_1 = arith.constant 0 : i32
    return %c0_i32, %c0_i32_0 : i32, i32
  }
  func.func @transform_3(%arg0: i32) -> (i32, i32) {
    %c0_i32 = arith.constant 0 : i32
    %c0_i32_0 = arith.constant 0 : i32
    %c0_i32_1 = arith.constant 0 : i32
    return %c0_i32, %c0_i32_0 : i32, i32
  }
  func.func @transform_4(%arg0: i32) -> (i32, i32) {
    %c0_i32 = arith.constant 0 : i32
    %c0_i32_0 = arith.constant 0 : i32
    %c0_i32_1 = arith.constant 0 : i32
    return %c0_i32, %c0_i32_0 : i32, i32
  }
  func.func @transform_5(%arg0: i32) -> (i32, i32) {
    %c0_i32 = arith.constant 0 : i32
    %c0_i32_0 = arith.constant 0 : i32
    %c0_i32_1 = arith.constant 0 : i32
    return %c0_i32, %c0_i32_0 : i32, i32
  }
  func.func @transform_6(%arg0: i32) -> (i32, i32) {
    %c0_i32 = arith.constant 0 : i32
    %c0_i32_0 = arith.constant 0 : i32
    %c0_i32_1 = arith.constant 0 : i32
    return %c0_i32, %c0_i32_0 : i32, i32
  }
  func.func @transform_7(%arg0: i32) -> (i32, i32) {
    %c0_i32 = arith.constant 0 : i32
    %c0_i32_0 = arith.constant 0 : i32
    %c0_i32_1 = arith.constant 0 : i32
    return %c0_i32, %c0_i32_0 : i32, i32
  }
  func.func @transform_8(%arg0: i32) -> (i32, i32) {
    %c0_i32 = arith.constant 0 : i32
    %c0_i32_0 = arith.constant 0 : i32
    %c0_i32_1 = arith.constant 0 : i32
    return %c0_i32, %c0_i32_0 : i32, i32
  }
  func.func @transform_9(%arg0: i32) -> (i32, i32) {
    %c0_i32 = arith.constant 0 : i32
    %c0_i32_0 = arith.constant 0 : i32
    %c0_i32_1 = arith.constant 0 : i32
    return %c0_i32, %c0_i32_0 : i32, i32
  }
  func.func @transform_10(%arg0: i32) -> (i32, i32) {
    %c0_i32 = arith.constant 0 : i32
    %c0_i32_0 = arith.constant 0 : i32
    %c0_i32_1 = arith.constant 0 : i32
    return %c0_i32, %c0_i32_0 : i32, i32
  }
  func.func @transform_11(%arg0: i32) -> (i32, i32) {
    %c0_i32 = arith.constant 0 : i32
    %c0_i32_0 = arith.constant 0 : i32
    %c0_i32_1 = arith.constant 0 : i32
    return %c0_i32, %c0_i32_0 : i32, i32
  }
  func.func @transform_12(%arg0: i32) -> (i32, i32) {
    %c0_i32 = arith.constant 0 : i32
    %c0_i32_0 = arith.constant 0 : i32
    %c0_i32_1 = arith.constant 0 : i32
    return %c0_i32, %c0_i32_0 : i32, i32
  }
  func.func @transform_13(%arg0: i32) -> (i32, i32) {
    %c0_i32 = arith.constant 0 : i32
    %c0_i32_0 = arith.constant 0 : i32
    %c0_i32_1 = arith.constant 0 : i32
    return %c0_i32, %c0_i32_0 : i32, i32
  }
  func.func @transform_14(%arg0: i32) -> (i32, i32) {
    %c0_i32 = arith.constant 0 : i32
    %c0_i32_0 = arith.constant 0 : i32
    %c0_i32_1 = arith.constant 0 : i32
    return %c0_i32, %c0_i32_0 : i32, i32
  }
  func.func @transform_15(%arg0: i32) -> (i32, i32, i32) {
    %c0_i32 = arith.constant 0 : i32
    %c0_i32_0 = arith.constant 0 : i32
    %c0_i32_1 = arith.constant 0 : i32
    return %arg0, %c0_i32, %c0_i32_0 : i32, i32, i32
  }
}

</mosaic_0001>

<llo_original>
// kernel: tpu_custom_call.1
$region0: #{tpu_custom_call.1}
  #allocation0 [shape = 'u32[]', space=smem, size = 0x4, offset = 0x4, fixed_abs, tag = 'smem constant byte address 0x4 - core index']
  #allocation1 [shape = 'u32[144,128]{1,0:T(1,128)}', space=vmem, size = 0x12000, scoped, tag = 'internal scratch']
  #allocation2 [shape = 'f32[8,16,64]{2,1,0:T(8,128)}', space=vmem, size = 0x10000, scoped, tag = 'scratch operand']
  #allocation3 [shape = 'f32[8,16,64]{2,1,0:T(8,128)}', space=vmem, size = 0x10000, scoped, tag = 'scratch operand']
  #allocation4 [shape = 'f32[8,16,64]{2,1,0:T(8,128)}', space=vmem, size = 0x10000, scoped, tag = 'scratch operand']
  %s0 = inlined_call_operand.vmem [shape: f32[4,16,32], index: 0, kind: input, shape index: {}]
  %s1 = inlined_call_operand.vmem [shape: f32[32,32], index: 1, kind: input, shape index: {}]
  %s2 = inlined_call_operand.vmem [shape: f32[32,32], index: 2, kind: input, shape index: {}]
  %s3 = inlined_call_operand.hbm [shape: f32[4,32], index: 3, kind: input, shape index: {}]
  %s4 = inlined_call_operand.vmem [shape: f32[1,32], index: 4, kind: input, shape index: {}]
  %s5 = inlined_call_operand.vmem [shape: f32[32,32], index: 5, kind: input, shape index: {}]
  %s6 = inlined_call_operand.hbm [shape: f32[1,32], index: 6, kind: input, shape index: {}]
  %s7 = inlined_call_operand.vmem [shape: f32[32,16], index: 7, kind: input, shape index: {}]
  %s8 = inlined_call_operand.vmem [shape: f32[32,16], index: 8, kind: input, shape index: {}]
  %s9 = inlined_call_operand.hbm [shape: f32[16,32], index: 9, kind: input, shape index: {}]
  %s10 = inlined_call_operand.hbm [shape: f32[1,32], index: 10, kind: input, shape index: {}]
  %s11 = inlined_call_operand.vmem [shape: f32[32,16], index: 11, kind: input, shape index: {}]
  %s12 = inlined_call_operand.hbm [shape: f32[1,16], index: 12, kind: input, shape index: {}]
  %s13 = inlined_call_operand.vmem [shape: f32[16,16], index: 13, kind: input, shape index: {}]
  %s14 = inlined_call_operand.vmem [shape: f32[1,16], index: 14, kind: input, shape index: {}]
  %s15 = inlined_call_operand.hbm [shape: f32[4,2,32], index: 15, kind: output, shape index: {}]
  %s16 = sld [smem:[#allocation0]]
  $region113: #{tpu_custom_call.1} parent=0
    _
  %s18 = ssub.s32 1, %s16
  %s19 = scalar_select 0, %s18, %s16
  $region1: #{tpu_custom_call.1} parent=0
    #allocation5 [shape = 'u8[2048]{0}', space=vmem, size = 0x800, scoped, tag = 'input window, operand 3, single buffered']
    #allocation6 [shape = 's32[2]{0}', space=sflag, size = 0x8, scoped, tag = 'scoped memory for tpu_custom_call.1']
    #allocation7 [shape = 's32[2]{0}', space=sflag, size = 0x8, scoped, tag = 'scoped memory for tpu_custom_call.1']
    #allocation8 [shape = 'u8[512]{0}', space=vmem, size = 0x400, scoped, tag = 'input window, operand 6, single buffered']
    #allocation9 [shape = 's32[1]{0}', space=sflag, size = 0x4, scoped, tag = 'scoped memory for tpu_custom_call.1']
    #allocation10 [shape = 'u8[8192]{0}', space=vmem, size = 0x2000, scoped, tag = 'input window, operand 9, single buffered']
    #allocation11 [shape = 'u8[512]{0}', space=vmem, size = 0x400, scoped, tag = 'input window, operand 10, single buffered']
    #allocation12 [shape = 's32[1]{0}', space=sflag, size = 0x4, scoped, tag = 'scoped memory for tpu_custom_call.1']
    #allocation13 [shape = 'u8[512]{0}', space=vmem, size = 0x400, scoped, tag = 'input window, operand 12, single buffered']
    #allocation14 [shape = 'u8[2048]{0}', space=vmem, size = 0x800, scoped, tag = 'output window, operand 0']
    %20 = vsyncpa [#allocation6], 0
    %21 = vsyncpa [#allocation9], 0
    %22 = vsyncpa [#allocation12], 0
    %23 = vsyncpa [#allocation7], 0
    %s24 = scalar_lea.sflag [#allocation7], 1
    %25 = vsyncpa %s24, 0
    loop: start=0, step=1, limit=6
    $region2: #{tpu_custom_call.1} parent=1 // loop_pre_header
      _
    $region3: #{tpu_custom_call.1} parent=1 // loop_header
      %s27 = sphi 0, %s31
      %p28 = scmp.ge.s32.totalorder %s27, 6
      %s37 = sphi 0, %s39
      %s40 = sphi 0, %s37
      %s41 = sphi 0, %s40
      %s57 = sphi 0, %s41
      %s61 = sphi 0, %s61
      %s63 = sphi 0, %s61
      %s64 = sphi 0, %s63
      %s78 = sphi 0, %s64
      %s82 = sphi 0, %s82
      %s84 = sphi 0, %s82
      %s85 = sphi 0, %s84
      %s99 = sphi 0, %s85
      %s103 = sphi 0, %s103
      %s105 = sphi 0, %s103
      %s106 = sphi 0, %s105
      %s120 = sphi 0, %s106
      %s124 = sphi 0, %s124
      %s126 = sphi 0, %s124
      %s127 = sphi 0, %s126
      %s141 = sphi 0, %s127
      %s145 = sphi 0, %s145
      %s147 = sphi 0, %s145
      %s148 = sphi 0, %s147
      %s162 = sphi 0, %s148
      %s166 = sphi 0, %s166
      %s168 = sphi 0, %s166
      %s169 = sphi 0, %s168
      %s183 = sphi 0, %s169
      %s187 = sphi 0, %s187
      %s189 = sphi 0, %s187
      %s190 = sphi 0, %s189
      %s204 = sphi 0, %s190
      %s208 = sphi 0, %s208
      %s210 = sphi 0, %s208
      %s211 = sphi 0, %s210
      %s225 = sphi 0, %s211
      %s229 = sphi 0, %s229
      %s231 = sphi 0, %s229
      %s232 = sphi 0, %s231
      %s246 = sphi 0, %s232
      %s250 = sphi 0, %s250
      %s252 = sphi 0, %s250
      %s253 = sphi 0, %s252
      %s267 = sphi 0, %s253
      %s271 = sphi 0, %s271
      %s273 = sphi 0, %s271
      %s274 = sphi 0, %s273
      %s288 = sphi 0, %s274
      %s292 = sphi 0, %s292
      %s294 = sphi 0, %s292
      %s295 = sphi 0, %s294
      %s309 = sphi 0, %s295
      %s313 = sphi 0, %s313
      %s315 = sphi 0, %s313
      %s316 = sphi 0, %s315
      %s330 = sphi 0, %s316
      %s334 = sphi 0, %s334
      %s336 = sphi 0, %s334
      %s337 = sphi 0, %s336
      %s351 = sphi 0, %s337
      %s357 = sphi 0, %s359
      %s360 = sphi 0, %s357
      %s361 = sphi 0, %s360
      %s377 = sphi 0, %s361
    $region4: #{tpu_custom_call.1} parent=1 // loop_header_branch
      %30 = sbr.rel (%p28) target = $region8
    $region5: #{tpu_custom_call.1} parent=1 // loop_body
      %s32 = ssub.s32 %s27, 1
      %s33 = ssub.s32 %s27, 2
      %s34 = sadd.s32 %s27, 1
      %s35 = ssub.s32 %s27, %s34
      %p36 = scmp.eq.s32.totalorder %s35, 0
      %s38 = sadd.s32 %s37, 1
      %s39 = scalar_select %p36, %s37, %s38
      %p42 = pneg %p36
      %p43 = scmp.eq.s32.totalorder %s27, 3
      %p44 = por %p42, %p43
      %p45 = scmp.ne.s32.totalorder %s37, %s40
      %p46 = scmp.eq.s32.totalorder %s27, 0
      %p47 = por %p45, %p46
      %p48 = scmp.ne.s32.totalorder %s37, %s40
      %p49 = scmp.eq.s32.totalorder %s32, 3
      %p50 = por %p48, %p49
      %p51 = scmp.ne.s32.totalorder %s40, %s41
      %p52 = scmp.eq.s32.totalorder %s32, 0
      %p53 = por %p51, %p52
      %p54 = scmp.ne.s32.totalorder %s40, %s41
      %p55 = scmp.eq.s32.totalorder %s33, 3
      %p56 = por %p54, %p55
      %p58 = scmp.ne.s32.totalorder %s41, %s57
      %p59 = scmp.eq.s32.totalorder %s33, 0
      %p60 = por %p58, %p59
      %s62 = sadd.s32 %s61, 1
      %p65 = scmp.eq.s32.totalorder %s27, 3
      %p66 = scmp.ne.s32.totalorder %s61, %s63
      %p67 = scmp.eq.s32.totalorder %s27, 0
      %p68 = por %p66, %p67
      %p69 = scmp.ne.s32.totalorder %s61, %s63
      %p70 = scmp.eq.s32.totalorder %s32, 3
      %p71 = por %p69, %p70
      %p72 = scmp.ne.s32.totalorder %s63, %s64
      %p73 = scmp.eq.s32.totalorder %s32, 0
      %p74 = por %p72, %p73
      %p75 = scmp.ne.s32.totalorder %s63, %s64
      %p76 = scmp.eq.s32.totalorder %s33, 3
      %p77 = por %p75, %p76
      %p79 = scmp.ne.s32.totalorder %s64, %s78
      %p80 = scmp.eq.s32.totalorder %s33, 0
      %p81 = por %p79, %p80
      %s83 = sadd.s32 %s82, 1
      %p86 = scmp.eq.s32.totalorder %s27, 3
      %p87 = scmp.ne.s32.totalorder %s82, %s84
      %p88 = scmp.eq.s32.totalorder %s27, 0
      %p89 = por %p87, %p88
      %p90 = scmp.ne.s32.totalorder %s82, %s84
      %p91 = scmp.eq.s32.totalorder %s32, 3
      %p92 = por %p90, %p91
      %p93 = scmp.ne.s32.totalorder %s84, %s85
      %p94 = scmp.eq.s32.totalorder %s32, 0
      %p95 = por %p93, %p94
      %p96 = scmp.ne.s32.totalorder %s84, %s85
      %p97 = scmp.eq.s32.totalorder %s33, 3
      %p98 = por %p96, %p97
      %p100 = scmp.ne.s32.totalorder %s85, %s99
      %p101 = scmp.eq.s32.totalorder %s33, 0
      %p102 = por %p100, %p101
      %s104 = sadd.s32 %s103, 1
      %p107 = scmp.eq.s32.totalorder %s27, 3
      %p108 = scmp.ne.s32.totalorder %s103, %s105
      %p109 = scmp.eq.s32.totalorder %s27, 0
      %p110 = por %p108, %p109
      %p111 = scmp.ne.s32.totalorder %s103, %s105
      %p112 = scmp.eq.s32.totalorder %s32, 3
      %p113 = por %p111, %p112
      %p114 = scmp.ne.s32.totalorder %s105, %s106
      %p115 = scmp.eq.s32.totalorder %s32, 0
      %p116 = por %p114, %p115
      %p117 = scmp.ne.s32.totalorder %s105, %s106
      %p118 = scmp.eq.s32.totalorder %s33, 3
      %p119 = por %p117, %p118
      %p121 = scmp.ne.s32.totalorder %s106, %s120
      %p122 = scmp.eq.s32.totalorder %s33, 0
      %p123 = por %p121, %p122
      %s125 = sadd.s32 %s124, 1
      %p128 = scmp.eq.s32.totalorder %s27, 3
      %p129 = scmp.ne.s32.totalorder %s124, %s126
      %p130 = scmp.eq.s32.totalorder %s27, 0
      %p131 = por %p129, %p130
      %p132 = scmp.ne.s32.totalorder %s124, %s126
      %p133 = scmp.eq.s32.totalorder %s32, 3
      %p134 = por %p132, %p133
      %p135 = scmp.ne.s32.totalorder %s126, %s127
      %p136 = scmp.eq.s32.totalorder %s32, 0
      %p137 = por %p135, %p136
      %p138 = scmp.ne.s32.totalorder %s126, %s127
      %p139 = scmp.eq.s32.totalorder %s33, 3
      %p140 = por %p138, %p139
      %p142 = scmp.ne.s32.totalorder %s127, %s141
      %p143 = scmp.eq.s32.totalorder %s33, 0
      %p144 = por %p142, %p143
      %s146 = sadd.s32 %s145, 1
      %p149 = scmp.eq.s32.totalorder %s27, 3
      %p150 = scmp.ne.s32.totalorder %s145, %s147
      %p151 = scmp.eq.s32.totalorder %s27, 0
      %p152 = por %p150, %p151
      %p153 = scmp.ne.s32.totalorder %s145, %s147
      %p154 = scmp.eq.s32.totalorder %s32, 3
      %p155 = por %p153, %p154
      %p156 = scmp.ne.s32.totalorder %s147, %s148
      %p157 = scmp.eq.s32.totalorder %s32, 0
      %p158 = por %p156, %p157
      %p159 = scmp.ne.s32.totalorder %s147, %s148
      %p160 = scmp.eq.s32.totalorder %s33, 3
      %p161 = por %p159, %p160
      %p163 = scmp.ne.s32.totalorder %s148, %s162
      %p164 = scmp.eq.s32.totalorder %s33, 0
      %p165 = por %p163, %p164
      %s167 = sadd.s32 %s166, 1
      %p170 = scmp.eq.s32.totalorder %s27, 3
      %p171 = scmp.ne.s32.totalorder %s166, %s168
      %p172 = scmp.eq.s32.totalorder %s27, 0
      %p173 = por %p171, %p172
      %p174 = scmp.ne.s32.totalorder %s166, %s168
      %p175 = scmp.eq.s32.totalorder %s32, 3
      %p176 = por %p174, %p175
      %p177 = scmp.ne.s32.totalorder %s168, %s169
      %p178 = scmp.eq.s32.totalorder %s32, 0
      %p179 = por %p177, %p178
      %p180 = scmp.ne.s32.totalorder %s168, %s169
      %p181 = scmp.eq.s32.totalorder %s33, 3
      %p182 = por %p180, %p181
      %p184 = scmp.ne.s32.totalorder %s169, %s183
      %p185 = scmp.eq.s32.totalorder %s33, 0
      %p186 = por %p184, %p185
      %s188 = sadd.s32 %s187, 1
      %p191 = scmp.eq.s32.totalorder %s27, 3
      %p192 = scmp.ne.s32.totalorder %s187, %s189
      %p193 = scmp.eq.s32.totalorder %s27, 0
      %p194 = por %p192, %p193
      %p195 = scmp.ne.s32.totalorder %s187, %s189
      %p196 = scmp.eq.s32.totalorder %s32, 3
      %p197 = por %p195, %p196
      %p198 = scmp.ne.s32.totalorder %s189, %s190
      %p199 = scmp.eq.s32.totalorder %s32, 0
      %p200 = por %p198, %p199
      %p201 = scmp.ne.s32.totalorder %s189, %s190
      %p202 = scmp.eq.s32.totalorder %s33, 3
      %p203 = por %p201, %p202
      %p205 = scmp.ne.s32.totalorder %s190, %s204
      %p206 = scmp.eq.s32.totalorder %s33, 0
      %p207 = por %p205, %p206
      %s209 = sadd.s32 %s208, 1
      %p212 = scmp.eq.s32.totalorder %s27, 3
      %p213 = scmp.ne.s32.totalorder %s208, %s210
      %p214 = scmp.eq.s32.totalorder %s27, 0
      %p215 = por %p213, %p214
      %p216 = scmp.ne.s32.totalorder %s208, %s210
      %p217 = scmp.eq.s32.totalorder %s32, 3
      %p218 = por %p216, %p217
      %p219 = scmp.ne.s32.totalorder %s210, %s211
      %p220 = scmp.eq.s32.totalorder %s32, 0
      %p221 = por %p219, %p220
      %p222 = scmp.ne.s32.totalorder %s210, %s211
      %p223 = scmp.eq.s32.totalorder %s33, 3
      %p224 = por %p222, %p223
      %p226 = scmp.ne.s32.totalorder %s211, %s225
      %p227 = scmp.eq.s32.totalorder %s33, 0
      %p228 = por %p226, %p227
      %s230 = sadd.s32 %s229, 1
      %p233 = scmp.eq.s32.totalorder %s27, 3
      %p234 = scmp.ne.s32.totalorder %s229, %s231
      %p235 = scmp.eq.s32.totalorder %s27, 0
      %p236 = por %p234, %p235
      %p237 = scmp.ne.s32.totalorder %s229, %s231
      %p238 = scmp.eq.s32.totalorder %s32, 3
      %p239 = por %p237, %p238
      %p240 = scmp.ne.s32.totalorder %s231, %s232
      %p241 = scmp.eq.s32.totalorder %s32, 0
      %p242 = por %p240, %p241
      %p243 = scmp.ne.s32.totalorder %s231, %s232
      %p244 = scmp.eq.s32.totalorder %s33, 3
      %p245 = por %p243, %p244
      %p247 = scmp.ne.s32.totalorder %s232, %s246
      %p248 = scmp.eq.s32.totalorder %s33, 0
      %p249 = por %p247, %p248
      %s251 = sadd.s32 %s250, 1
      %p254 = scmp.eq.s32.totalorder %s27, 3
      %p255 = scmp.ne.s32.totalorder %s250, %s252
      %p256 = scmp.eq.s32.totalorder %s27, 0
      %p257 = por %p255, %p256
      %p258 = scmp.ne.s32.totalorder %s250, %s252
      %p259 = scmp.eq.s32.totalorder %s32, 3
      %p260 = por %p258, %p259
      %p261 = scmp.ne.s32.totalorder %s252, %s253
      %p262 = scmp.eq.s32.totalorder %s32, 0
      %p263 = por %p261, %p262
      %p264 = scmp.ne.s32.totalorder %s252, %s253
      %p265 = scmp.eq.s32.totalorder %s33, 3
      %p266 = por %p264, %p265
      %p268 = scmp.ne.s32.totalorder %s253, %s267
      %p269 = scmp.eq.s32.totalorder %s33, 0
      %p270 = por %p268, %p269
      %s272 = sadd.s32 %s271, 1
      %p275 = scmp.eq.s32.totalorder %s27, 3
      %p276 = scmp.ne.s32.totalorder %s271, %s273
      %p277 = scmp.eq.s32.totalorder %s27, 0
      %p278 = por %p276, %p277
      %p279 = scmp.ne.s32.totalorder %s271, %s273
      %p280 = scmp.eq.s32.totalorder %s32, 3
      %p281 = por %p279, %p280
      %p282 = scmp.ne.s32.totalorder %s273, %s274
      %p283 = scmp.eq.s32.totalorder %s32, 0
      %p284 = por %p282, %p283
      %p285 = scmp.ne.s32.totalorder %s273, %s274
      %p286 = scmp.eq.s32.totalorder %s33, 3
      %p287 = por %p285, %p286
      %p289 = scmp.ne.s32.totalorder %s274, %s288
      %p290 = scmp.eq.s32.totalorder %s33, 0
      %p291 = por %p289, %p290
      %s293 = sadd.s32 %s292, 1
      %p296 = scmp.eq.s32.totalorder %s27, 3
      %p297 = scmp.ne.s32.totalorder %s292, %s294
      %p298 = scmp.eq.s32.totalorder %s27, 0
      %p299 = por %p297, %p298
      %p300 = scmp.ne.s32.totalorder %s292, %s294
      %p301 = scmp.eq.s32.totalorder %s32, 3
      %p302 = por %p300, %p301
      %p303 = scmp.ne.s32.totalorder %s294, %s295
      %p304 = scmp.eq.s32.totalorder %s32, 0
      %p305 = por %p303, %p304
      %p306 = scmp.ne.s32.totalorder %s294, %s295
      %p307 = scmp.eq.s32.totalorder %s33, 3
      %p308 = por %p306, %p307
      %p310 = scmp.ne.s32.totalorder %s295, %s309
      %p311 = scmp.eq.s32.totalorder %s33, 0
      %p312 = por %p310, %p311
      %s314 = sadd.s32 %s313, 1
      %p317 = scmp.eq.s32.totalorder %s27, 3
      %p318 = scmp.ne.s32.totalorder %s313, %s315
      %p319 = scmp.eq.s32.totalorder %s27, 0
      %p320 = por %p318, %p319
      %p321 = scmp.ne.s32.totalorder %s313, %s315
      %p322 = scmp.eq.s32.totalorder %s32, 3
      %p323 = por %p321, %p322
      %p324 = scmp.ne.s32.totalorder %s315, %s316
      %p325 = scmp.eq.s32.totalorder %s32, 0
      %p326 = por %p324, %p325
      %p327 = scmp.ne.s32.totalorder %s315, %s316
      %p328 = scmp.eq.s32.totalorder %s33, 3
      %p329 = por %p327, %p328
      %p331 = scmp.ne.s32.totalorder %s316, %s330
      %p332 = scmp.eq.s32.totalorder %s33, 0
      %p333 = por %p331, %p332
      %s335 = sadd.s32 %s334, 1
      %p338 = scmp.eq.s32.totalorder %s27, 3
      %p339 = scmp.ne.s32.totalorder %s334, %s336
      %p340 = scmp.eq.s32.totalorder %s27, 0
      %p341 = por %p339, %p340
      %p342 = scmp.ne.s32.totalorder %s334, %s336
      %p343 = scmp.eq.s32.totalorder %s32, 3
      %p344 = por %p342, %p343
      %p345 = scmp.ne.s32.totalorder %s336, %s337
      %p346 = scmp.eq.s32.totalorder %s32, 0
      %p347 = por %p345, %p346
      %p348 = scmp.ne.s32.totalorder %s336, %s337
      %p349 = scmp.eq.s32.totalorder %s33, 3
      %p350 = por %p348, %p349
      %p352 = scmp.ne.s32.totalorder %s337, %s351
      %p353 = scmp.eq.s32.totalorder %s33, 0
      %p354 = por %p352, %p353
      %s355 = ssub.s32 %s27, %s34
      %p356 = scmp.eq.s32.totalorder %s355, 0
      %s358 = sadd.s32 %s357, 1
      %s359 = scalar_select %p356, %s357, %s358
      %p362 = pneg %p356
      %p363 = scmp.eq.s32.totalorder %s27, 3
      %p364 = por %p362, %p363
      %p365 = scmp.ne.s32.totalorder %s357, %s360
      %p366 = scmp.eq.s32.totalorder %s27, 0
      %p367 = por %p365, %p366
      %p368 = scmp.ne.s32.totalorder %s357, %s360
      %p369 = scmp.eq.s32.totalorder %s32, 3
      %p370 = por %p368, %p369
      %p371 = scmp.ne.s32.totalorder %s360, %s361
      %p372 = scmp.eq.s32.totalorder %s32, 0
      %p373 = por %p371, %p372
      %p374 = scmp.ne.s32.totalorder %s360, %s361
      %p375 = scmp.eq.s32.totalorder %s33, 3
      %p376 = por %p374, %p375
      %p378 = scmp.ne.s32.totalorder %s361, %s377
      %p379 = scmp.eq.s32.totalorder %s33, 0
      %p380 = por %p378, %p379
      %p381 = scmp.le.s32.totalorder 1, %s27
      %p382 = scmp.lt.s32.totalorder %s27, 5
      %p383 = pnand %p381, %p382
      %p384 = pneg %p383
      // Predicated region
      $region9: #{tpu_custom_call.1} parent=5 // pred_check
        _
      $region10: #{tpu_custom_call.1} parent=5 // pred_check_branch
        %386 = sbr.rel (%p383) target = $region12
      $region11: #{tpu_custom_call.1} parent=5 // pred_region
        %s387 = ssub.s32 %s27, 1
        // Predicated region
        $region13: #{tpu_custom_call.1} parent=11 // pred_check
          %p388 = pneg %p74
        $region14: #{tpu_custom_call.1} parent=11 // pred_check_branch
          %390 = sbr.rel (%p388) target = $region16
        $region15: #{tpu_custom_call.1} parent=11 // pred_region
          _
        $region16: #{tpu_custom_call.1} parent=11 // pred_fallthru
          _
        // Predicated region
        $region17: #{tpu_custom_call.1} parent=11 // pred_check
          %p391 = pneg %p95
        $region18: #{tpu_custom_call.1} parent=11 // pred_check_branch
          %393 = sbr.rel (%p391) target = $region20
        $region19: #{tpu_custom_call.1} parent=11 // pred_region
          _
        $region20: #{tpu_custom_call.1} parent=11 // pred_fallthru
          _
        // Predicated region
        $region21: #{tpu_custom_call.1} parent=11 // pred_check
          %p394 = pneg %p116
        $region22: #{tpu_custom_call.1} parent=11 // pred_check_branch
          %396 = sbr.rel (%p394) target = $region24
        $region23: #{tpu_custom_call.1} parent=11 // pred_region
          %s398 = ssub.s32 64, 64
          %399 = vsyncadd [#allocation6], %s398
          %s401 = sshll.u32 [#allocation5], 4
          %s402 = int_to_ptr.vmem [resolvable:$true] %s401
          %404 = dma.hbm_to_vmem [thread:$0]  %s3, 64, %s402, [#allocation6]
        $region24: #{tpu_custom_call.1} parent=11 // pred_fallthru
          _
        // Predicated region
        $region25: #{tpu_custom_call.1} parent=11 // pred_check
          %p405 = pneg %p137
        $region26: #{tpu_custom_call.1} parent=11 // pred_check_branch
          %407 = sbr.rel (%p405) target = $region28
        $region27: #{tpu_custom_call.1} parent=11 // pred_region
          _
        $region28: #{tpu_custom_call.1} parent=11 // pred_fallthru
          _
        // Predicated region
        $region29: #{tpu_custom_call.1} parent=11 // pred_check
          %p408 = pneg %p158
        $region30: #{tpu_custom_call.1} parent=11 // pred_check_branch
          %410 = sbr.rel (%p408) target = $region32
        $region31: #{tpu_custom_call.1} parent=11 // pred_region
          _
        $region32: #{tpu_custom_call.1} parent=11 // pred_fallthru
          _
        // Predicated region
        $region33: #{tpu_custom_call.1} parent=11 // pred_check
          %p411 = pneg %p179
        $region34: #{tpu_custom_call.1} parent=11 // pred_check_branch
          %413 = sbr.rel (%p411) target = $region36
        $region35: #{tpu_custom_call.1} parent=11 // pred_region
          %s415 = ssub.s32 16, 16
          %416 = vsyncadd [#allocation9], %s415
          %s418 = sshll.u32 [#allocation8], 4
          %s419 = int_to_ptr.vmem [resolvable:$true] %s418
          %421 = dma.hbm_to_vmem [thread:$0]  %s6, 16, %s419, [#allocation9]
        $region36: #{tpu_custom_call.1} parent=11 // pred_fallthru
          _
        // Predicated region
        $region37: #{tpu_custom_call.1} parent=11 // pred_check
          %p422 = pneg %p200
        $region38: #{tpu_custom_call.1} parent=11 // pred_check_branch
          %424 = sbr.rel (%p422) target = $region40
        $region39: #{tpu_custom_call.1} parent=11 // pred_region
          _
        $region40: #{tpu_custom_call.1} parent=11 // pred_fallthru
          _
        // Predicated region
        $region41: #{tpu_custom_call.1} parent=11 // pred_check
          %p425 = pneg %p221
        $region42: #{tpu_custom_call.1} parent=11 // pred_check_branch
          %427 = sbr.rel (%p425) target = $region44
        $region43: #{tpu_custom_call.1} parent=11 // pred_region
          _
        $region44: #{tpu_custom_call.1} parent=11 // pred_fallthru
          _
        // Predicated region
        $region45: #{tpu_custom_call.1} parent=11 // pred_check
          %p428 = pneg %p242
        $region46: #{tpu_custom_call.1} parent=11 // pred_check_branch
          %430 = sbr.rel (%p428) target = $region48
        $region47: #{tpu_custom_call.1} parent=11 // pred_region
          %s432 = ssub.s32 256, 256
          %433 = vsyncadd [#allocation9], %s432
          %s434 = sshll.u32 [#allocation10], 4
          %s435 = int_to_ptr.vmem [resolvable:$true] %s434
          %440 = dma.hbm_to_vmem [thread:$0]  %s9, 256, %s435, [#allocation9], 128, 128, 8
        $region48: #{tpu_custom_call.1} parent=11 // pred_fallthru
          _
        // Predicated region
        $region49: #{tpu_custom_call.1} parent=11 // pred_check
          %p441 = pneg %p263
        $region50: #{tpu_custom_call.1} parent=11 // pred_check_branch
          %443 = sbr.rel (%p441) target = $region52
        $region51: #{tpu_custom_call.1} parent=11 // pred_region
          %s445 = ssub.s32 16, 16
          %446 = vsyncadd [#allocation12], %s445
          %s448 = sshll.u32 [#allocation11], 4
          %s449 = int_to_ptr.vmem [resolvable:$true] %s448
          %451 = dma.hbm_to_vmem [thread:$0]  %s10, 16, %s449, [#allocation12]
        $region52: #{tpu_custom_call.1} parent=11 // pred_fallthru
          _
        // Predicated region
        $region53: #{tpu_custom_call.1} parent=11 // pred_check
          %p452 = pneg %p284
        $region54: #{tpu_custom_call.1} parent=11 // pred_check_branch
          %454 = sbr.rel (%p452) target = $region56
        $region55: #{tpu_custom_call.1} parent=11 // pred_region
          _
        $region56: #{tpu_custom_call.1} parent=11 // pred_fallthru
          _
        // Predicated region
        $region57: #{tpu_custom_call.1} parent=11 // pred_check
          %p455 = pneg %p305
        $region58: #{tpu_custom_call.1} parent=11 // pred_check_branch
          %457 = sbr.rel (%p455) target = $region60
        $region59: #{tpu_custom_call.1} parent=11 // pred_region
          %s459 = ssub.s32 16, 16
          %460 = vsyncadd [#allocation12], %s459
          %s462 = sshll.u32 [#allocation13], 4
          %s463 = int_to_ptr.vmem [resolvable:$true] %s462
          %465 = dma.hbm_to_vmem [thread:$0]  %s12, 16, %s463, [#allocation12]
        $region60: #{tpu_custom_call.1} parent=11 // pred_fallthru
          _
        // Predicated region
        $region61: #{tpu_custom_call.1} parent=11 // pred_check
          %p466 = pneg %p326
        $region62: #{tpu_custom_call.1} parent=11 // pred_check_branch
          %468 = sbr.rel (%p466) target = $region64
        $region63: #{tpu_custom_call.1} parent=11 // pred_region
          _
        $region64: #{tpu_custom_call.1} parent=11 // pred_fallthru
          _
        // Predicated region
        $region65: #{tpu_custom_call.1} parent=11 // pred_check
          %p469 = pneg %p347
        $region66: #{tpu_custom_call.1} parent=11 // pred_check_branch
          %471 = sbr.rel (%p469) target = $region68
        $region67: #{tpu_custom_call.1} parent=11 // pred_region
          _
        $region68: #{tpu_custom_call.1} parent=11 // pred_fallthru
          _
      $region12: #{tpu_custom_call.1} parent=5 // pred_fallthru
        _
      %p472 = scmp.lt.s32.totalorder %s27, 4
      // Predicated region
      $region69: #{tpu_custom_call.1} parent=5 // pred_check
        %p473 = pneg %p472
      $region70: #{tpu_custom_call.1} parent=5 // pred_check_branch
        %475 = sbr.rel (%p473) target = $region72
      $region71: #{tpu_custom_call.1} parent=5 // pred_region
        // Predicated region
        $region73: #{tpu_custom_call.1} parent=71 // pred_check
          %p476 = pneg %p47
        $region74: #{tpu_custom_call.1} parent=71 // pred_check_branch
          %478 = sbr.rel (%p476) target = $region76
        $region75: #{tpu_custom_call.1} parent=71 // pred_region
          %p479 = scmp.lt.s32.totalorder %s27, 3
          %s480 = scalar_select %p479, %s27, 3
          %s481 = smul.addr %s480, 2
          %s482 = smul.addr %s481, 8
          %s483 = scalar_lea.vmem %s0, %s482
        $region76: #{tpu_custom_call.1} parent=71 // pred_fallthru
          _
      $region72: #{tpu_custom_call.1} parent=5 // pred_fallthru
        _
      %p484 = scmp.le.s32.totalorder 1, %s27
      %p485 = scmp.lt.s32.totalorder %s27, 5
      %p486 = pnand %p484, %p485
      %p487 = pneg %p486
      // Predicated region
      $region77: #{tpu_custom_call.1} parent=5 // pred_check
        _
      $region78: #{tpu_custom_call.1} parent=5 // pred_check_branch
        %489 = sbr.rel (%p486) target = $region80
      $region79: #{tpu_custom_call.1} parent=5 // pred_region
        %s490 = ssub.s32 %s27, 1
        // Predicated region
        $region81: #{tpu_custom_call.1} parent=79 // pred_check
          %p491 = pneg %p116
        $region82: #{tpu_custom_call.1} parent=79 // pred_check_branch
          %493 = sbr.rel (%p491) target = $region84
        $region83: #{tpu_custom_call.1} parent=79 // pred_region
          %494 = dma.done [#allocation6], 64
        $region84: #{tpu_custom_call.1} parent=79 // pred_fallthru
          _
        // Predicated region
        $region85: #{tpu_custom_call.1} parent=79 // pred_check
          %p495 = pneg %p179
        $region86: #{tpu_custom_call.1} parent=79 // pred_check_branch
          %497 = sbr.rel (%p495) target = $region88
        $region87: #{tpu_custom_call.1} parent=79 // pred_region
          %498 = dma.done [#allocation9], 16
        $region88: #{tpu_custom_call.1} parent=79 // pred_fallthru
          _
        // Predicated region
        $region89: #{tpu_custom_call.1} parent=79 // pred_check
          %p499 = pneg %p242
        $region90: #{tpu_custom_call.1} parent=79 // pred_check_branch
          %501 = sbr.rel (%p499) target = $region92
        $region91: #{tpu_custom_call.1} parent=79 // pred_region
          %502 = dma.done [#allocation9], 256
        $region92: #{tpu_custom_call.1} parent=79 // pred_fallthru
          _
        // Predicated region
        $region93: #{tpu_custom_call.1} parent=79 // pred_check
          %p503 = pneg %p263
        $region94: #{tpu_custom_call.1} parent=79 // pred_check_branch
          %505 = sbr.rel (%p503) target = $region96
        $region95: #{tpu_custom_call.1} parent=79 // pred_region
          %506 = dma.done [#allocation12], 16
        $region96: #{tpu_custom_call.1} parent=79 // pred_fallthru
          _
        // Predicated region
        $region97: #{tpu_custom_call.1} parent=79 // pred_check
          %p507 = pneg %p305
        $region98: #{tpu_custom_call.1} parent=79 // pred_check_branch
          %509 = sbr.rel (%p507) target = $region100
        $region99: #{tpu_custom_call.1} parent=79 // pred_region
          %510 = dma.done [#allocation12], 16
        $region100: #{tpu_custom_call.1} parent=79 // pred_fallthru
          _
        %p511 = scmp.lt.s32.totalorder %s32, 3
        %s512 = scalar_select %p511, %s32, 3
        %s513 = smul.addr %s512, 2
        %s514 = smul.addr %s513, 8
        %s515 = scalar_lea.vmem %s0, %s514
        %p516 = pneg %p53
        %p517 = pneg %p50
        %p518 = pneg %p74
        %p519 = pneg %p71
        %p520 = pneg %p95
        %p521 = pneg %p92
        %p522 = pneg %p116
        %p523 = pneg %p113
        %p524 = pneg %p137
        %p525 = pneg %p134
        %p526 = pneg %p158
        %p527 = pneg %p155
        %p528 = pneg %p179
        %p529 = pneg %p176
        %p530 = pneg %p200
        %p531 = pneg %p197
        %p532 = pneg %p221
        %p533 = pneg %p218
        %p534 = pneg %p242
        %p535 = pneg %p239
        %p536 = pneg %p263
        %p537 = pneg %p260
        %p538 = pneg %p284
        %p539 = pneg %p281
        %p540 = pneg %p305
        %p541 = pneg %p302
        %p542 = pneg %p326
        %p543 = pneg %p323
        %p544 = pneg %p347
        %p545 = pneg %p344
        %p546 = pneg %p373
        %p547 = pneg %p370
        %s548 = sand.u32 %s360, 1
        %s549 = scalar_lea.sflag [#allocation7], %s548
        %s550 = sand.u32 %s360, 1
        %s551 = smul.addr %s550, 2
        %s552 = scalar_lea.vmem [#allocation14], %s551
        %p553 = scmp.lt.s32.totalorder %s32, 3
        %s554 = scalar_select %p553, %s32, 3
        %s555 = smul.addr %s554, 2
        %s556 = smul.addr %s555, 8
        %s557 = scalar_lea.vmem %s0, %s556
        %v558 = vld [vmem:[%s557] sm:$0xff]
        %v559 = vld [vmem:[%s557 + $0x8] sm:$0xff]
        %v560 = vld [vmem:[%s1] sm:$0xff]
        %v561 = vld [vmem:[%s1 + $0x8] sm:$0xff]
        %v562 = vld [vmem:[%s1 + $0x10] sm:$0xff]
        %v563 = vld [vmem:[%s1 + $0x18] sm:$0xff]
        %vm564 = vcmask 261120
        %v566 = vsel %vm564, %v558, 0
        %v569 = vsel %vm564, %v559, 0
        %571 = vmatprep.subr.mxu0 0.0
        %572 = vmatpush1.msra.mxu0 %v560
        %573 = vmatprep.subr.mxu0 0.0
        %574 = vmatpush1.msra.mxu0 %v561
        %575 = vmatprep.subr.mxu0 0.0
        %576 = vmatpush1.msra.mxu0 %v562
        %577 = vmatprep.subr.mxu0 0.0
        %578 = vmatpush1.msra.mxu0 %v563
        %579 = vmatprep.subr.mxu0 0.0
        %580 = vmatpush1.msra.mxu0 0.0
        %581 = vmatprep.subr.mxu0 0.0
        %582 = vmatpush1.msra.mxu0 0.0
        %583 = vmatprep.subr.mxu0 0.0
        %584 = vmatpush1.msra.mxu0 0.0
        %585 = vmatprep.subr.mxu0 0.0
        %586 = vmatpush1.msra.mxu0 0.0
        %587 = vmatprep.subr.mxu0 0.0
        %588 = vmatpush1.msra.mxu0 0.0
        %589 = vmatprep.subr.mxu0 0.0
        %590 = vmatpush1.msra.mxu0 0.0
        %591 = vmatprep.subr.mxu0 0.0
        %592 = vmatpush1.msra.mxu0 0.0
        %593 = vmatprep.subr.mxu0 0.0
        %594 = vmatpush1.msra.mxu0 0.0
        %595 = vmatprep.subr.mxu0 0.0
        %596 = vmatpush1.msra.mxu0 0.0
        %597 = vmatprep.subr.mxu0 0.0
        %598 = vmatpush1.msra.mxu0 0.0
        %599 = vmatprep.subr.mxu0 0.0
        %600 = vmatpush1.msra.mxu0 0.0
        %601 = vmatprep.subr.mxu0 0.0
        %602 = vmatpush1.msra.mxu0 0.0
        %603 = vmatprep.subr.mxu0 0.0
        %604 = vmatpush1.msra.mxu0 0.0
        %605 = vmatprep.subr.mxu0 0.0
        %606 = vmatpush1.msra.mxu0 0.0
        %607 = vmatprep.subr.mxu0 0.0
        %608 = vmatpush1.msra.mxu0 0.0
        %609 = vmatprep.subr.mxu0 0.0
        %610 = vmatpush1.msra.mxu0 0.0
        %611 = vmatprep.subr.mxu0 0.0
        %612 = vmatpush1.msra.mxu0 0.0
        %613 = vmatprep.subr.mxu0 0.0
        %614 = vmatpush1.msra.mxu0 0.0
        %615 = vmatprep.subr.mxu0 0.0
        %616 = vmatpush1.msra.mxu0 0.0
        %617 = vmatprep.subr.mxu0 0.0
        %618 = vmatpush1.msra.mxu0 0.0
        %619 = vmatprep.subr.mxu0 0.0
        %620 = vmatpush1.msra.mxu0 0.0
        %621 = vmatprep.subr.mxu0 0.0
        %622 = vmatpush1.msra.mxu0 0.0
        %623 = vmatprep.subr.mxu0 0.0
        %624 = vmatpush1.msra.mxu0 0.0
        %625 = vmatprep.subr.mxu0 0.0
        %626 = vmatpush1.msra.mxu0 0.0
        %627 = vmatprep.subr.mxu0 0.0
        %628 = vmatpush1.msra.mxu0 0.0
        %629 = vmatprep.subr.mxu0 0.0
        %630 = vmatpush1.msra.mxu0 0.0
        %631 = vmatprep.subr.mxu0 0.0
        %632 = vmatpush1.msra.mxu0 0.0
        %633 = vmatprep.subr.mxu0 0.0
        %634 = vmatpush1.msra.mxu0 0.0
        %635 = vmatprep.mubr.f32.mxu0 0.0
        %636 = vmatmul.mubr.f32.gmra.mrb[0].mxu0 %v566
        %v637 = vpop.f32.mrb[0].mxu0
        %v638 = vadd.f32 0.0, %v637
        %v639 = vpop.f32.mrb[0].mxu0
        %640 = vmatprep.mubr.f32.mxu0 0.0
        %641 = vmatmul.mubr.f32.gmra.mrb[0].mxu0 %v569
        %v642 = vpop.f32.mrb[0].mxu0
        %v643 = vadd.f32 0.0, %v642
        %v644 = vpop.f32.mrb[0].mxu0
        %645 = vdwg.mxu0
        %v646 = vld [vmem:[%s2] sm:$0xff]
        %v647 = vld [vmem:[%s2 + $0x8] sm:$0xff]
        %v648 = vld [vmem:[%s2 + $0x10] sm:$0xff]
        %v649 = vld [vmem:[%s2 + $0x18] sm:$0xff]
        %650 = vmatprep.subr.mxu0 0.0
        %651 = vmatpush1.msra.mxu0 %v646
        %652 = vmatprep.subr.mxu0 0.0
        %653 = vmatpush1.msra.mxu0 %v647
        %654 = vmatprep.subr.mxu0 0.0
        %655 = vmatpush1.msra.mxu0 %v648
        %656 = vmatprep.subr.mxu0 0.0
        %657 = vmatpush1.msra.mxu0 %v649
        %658 = vmatprep.subr.mxu0 0.0
        %659 = vmatpush1.msra.mxu0 0.0
        %660 = vmatprep.subr.mxu0 0.0
        %661 = vmatpush1.msra.mxu0 0.0
        %662 = vmatprep.subr.mxu0 0.0
        %663 = vmatpush1.msra.mxu0 0.0
        %664 = vmatprep.subr.mxu0 0.0
        %665 = vmatpush1.msra.mxu0 0.0
        %666 = vmatprep.subr.mxu0 0.0
        %667 = vmatpush1.msra.mxu0 0.0
        %668 = vmatprep.subr.mxu0 0.0
        %669 = vmatpush1.msra.mxu0 0.0
        %670 = vmatprep.subr.mxu0 0.0
        %671 = vmatpush1.msra.mxu0 0.0
        %672 = vmatprep.subr.mxu0 0.0
        %673 = vmatpush1.msra.mxu0 0.0
        %674 = vmatprep.subr.mxu0 0.0
        %675 = vmatpush1.msra.mxu0 0.0
        %676 = vmatprep.subr.mxu0 0.0
        %677 = vmatpush1.msra.mxu0 0.0
        %678 = vmatprep.subr.mxu0 0.0
        %679 = vmatpush1.msra.mxu0 0.0
        %680 = vmatprep.subr.mxu0 0.0
        %681 = vmatpush1.msra.mxu0 0.0
        %682 = vmatprep.subr.mxu0 0.0
        %683 = vmatpush1.msra.mxu0 0.0
        %684 = vmatprep.subr.mxu0 0.0
        %685 = vmatpush1.msra.mxu0 0.0
        %686 = vmatprep.subr.mxu0 0.0
        %687 = vmatpush1.msra.mxu0 0.0
        %688 = vmatprep.subr.mxu0 0.0
        %689 = vmatpush1.msra.mxu0 0.0
        %690 = vmatprep.subr.mxu0 0.0
        %691 = vmatpush1.msra.mxu0 0.0
        %692 = vmatprep.subr.mxu0 0.0
        %693 = vmatpush1.msra.mxu0 0.0
        %694 = vmatprep.subr.mxu0 0.0
        %695 = vmatpush1.msra.mxu0 0.0
        %696 = vmatprep.subr.mxu0 0.0
        %697 = vmatpush1.msra.mxu0 0.0
        %698 = vmatprep.subr.mxu0 0.0
        %699 = vmatpush1.msra.mxu0 0.0
        %700 = vmatprep.subr.mxu0 0.0
        %701 = vmatpush1.msra.mxu0 0.0
        %702 = vmatprep.subr.mxu0 0.0
        %703 = vmatpush1.msra.mxu0 0.0
        %704 = vmatprep.subr.mxu0 0.0
        %705 = vmatpush1.msra.mxu0 0.0
        %706 = vmatprep.subr.mxu0 0.0
        %707 = vmatpush1.msra.mxu0 0.0
        %708 = vmatprep.subr.mxu0 0.0
        %709 = vmatpush1.msra.mxu0 0.0
        %710 = vmatprep.subr.mxu0 0.0
        %711 = vmatpush1.msra.mxu0 0.0
        %712 = vmatprep.subr.mxu0 0.0
        %713 = vmatpush1.msra.mxu0 0.0
        %714 = vmatprep.mubr.f32.mxu0 0.0
        %715 = vmatmul.mubr.f32.gmra.mrb[0].mxu0 %v566
        %v716 = vpop.f32.mrb[0].mxu0
        %v717 = vadd.f32 0.0, %v716
        %v718 = vpop.f32.mrb[0].mxu0
        %719 = vmatprep.mubr.f32.mxu0 0.0
        %720 = vmatmul.mubr.f32.gmra.mrb[0].mxu0 %v569
        %v721 = vpop.f32.mrb[0].mxu0
        %v722 = vadd.f32 0.0, %v721
        %v723 = vpop.f32.mrb[0].mxu0
        %724 = vdwg.mxu0
        %v725 = vlaneseq
        %v726 = vshrl.u32 %v725, 7
        %v727 = vadd.s32 %v726, 8
        %vm728 = vcmp.lt.s32.totalorder %v726, 0
        %v729 = vsub.s32 0, %v726
        %v730 = vsel %vm728, %v729, %v726
        %v731 = vshrl.u32 %v730, 3
        %v732 = vand.u32 %v730, 7
        %v733 = vsub.s32 0, %v732
        %v734 = vsel %vm728, %v733, %v732
        %vm735 = vcmp.lt.s32.totalorder %v727, 0
        %v736 = vsub.s32 0, %v727
        %v737 = vsel %vm735, %v736, %v727
        %v738 = vshrl.u32 %v737, 3
        %v739 = vand.u32 %v737, 7
        %v740 = vsub.s32 0, %v739
        %v741 = vsel %vm735, %v740, %v739
        %vm742 = vcmp.ne.s32.totalorder %v734, 0
        %vm743 = vcmp.ne.s32.totalorder %v741, 0
        %vm744 = vcmp.lt.s32.totalorder %v734, 0
        %vm745 = vcmp.lt.s32.totalorder %v741, 0
        %vm746 = vmand %vm744, %vm742
        %vm747 = vmand %vm745, %vm743
        %v748 = vadd.s32 %v734, 8
        %v749 = vadd.s32 %v741, 8
        %v750 = vsel %vm746, %v748, %v734
        %v751 = vsel %vm747, %v749, %v741
        %v752 = vld [vmem:[#allocation5] sm:$0x1]
        %v753 = vrot.slane %v638, 5
        %v754 = vrot.slane %v643, 5
        %vm755 = vcmp.lt.s32.totalorder %v726, 3
        %v756 = vsel %vm755, %v753, %v754
        %v757 = vsel %vm755, %v754, %v753
        %vm758 = vcmp.ge.s32.totalorder %v750, 3
        %vm759 = vcmp.ge.s32.totalorder %v751, 3
        %v760 = vsel %vm758, %v757, 0.0
        %v761 = vsel %vm759, %v756, 0.0
        %v762 = vlaneseq
        %v763 = vshrl.u32 %v762, 7
        %v764 = vsub.s32 0, %v763
        %v765 = vrot.slane %v752, %v764
        %v766 = vmul.f32 %v760, %v765
        %v767 = vmul.f32 %v761, %v765
        %v768 = vadd.f32 %v766, 0.0
        %v769 = vadd.f32 %v767, 0.0
        %v770 = vld [vmem:[#allocation5 + $0x1] sm:$0x1]
        %v771 = vrot.slane %v638, 6
        %v772 = vrot.slane %v643, 6
        %vm773 = vcmp.lt.s32.totalorder %v726, 2
        %v774 = vsel %vm773, %v771, %v772
        %v775 = vsel %vm773, %v772, %v771
        %vm776 = vcmp.ge.s32.totalorder %v750, 2
        %vm777 = vcmp.ge.s32.totalorder %v751, 2
        %v778 = vsel %vm776, %v775, 0.0
        %v779 = vsel %vm777, %v774, 0.0
        %v780 = vlaneseq
        %v781 = vshrl.u32 %v780, 7
        %v782 = vsub.s32 0, %v781
        %v783 = vrot.slane %v770, %v782
        %v784 = vmul.f32 %v778, %v783
        %v785 = vmul.f32 %v779, %v783
        %v786 = vadd.f32 %v768, %v784
        %v787 = vadd.f32 %v769, %v785
        %v788 = vld [vmem:[#allocation5 + $0x2] sm:$0x1]
        %v789 = vrot.slane %v638, 7
        %v790 = vrot.slane %v643, 7
        %vm791 = vcmp.lt.s32.totalorder %v726, 1
        %v792 = vsel %vm791, %v789, %v790
        %v793 = vsel %vm791, %v790, %v789
        %vm794 = vcmp.ge.s32.totalorder %v750, 1
        %vm795 = vcmp.ge.s32.totalorder %v751, 1
        %v796 = vsel %vm794, %v793, 0.0
        %v797 = vsel %vm795, %v792, 0.0
        %v798 = vlaneseq
        %v799 = vshrl.u32 %v798, 7
        %v800 = vsub.s32 0, %v799
        %v801 = vrot.slane %v788, %v800
        %v802 = vmul.f32 %v796, %v801
        %v803 = vmul.f32 %v797, %v801
        %v804 = vadd.f32 %v786, %v802
        %v805 = vadd.f32 %v787, %v803
        %v806 = vld [vmem:[#allocation5 + $0x3] sm:$0x1]
        %v807 = vlaneseq
        %v808 = vshrl.u32 %v807, 7
        %v809 = vsub.s32 0, %v808
        %v810 = vrot.slane %v806, %v809
        %v811 = vmul.f32 %v638, %v810
        %v812 = vmul.f32 %v643, %v810
        %v813 = vadd.f32 %v804, %v811
        %v814 = vadd.f32 %v805, %v812
        %v815 = vld [vmem:[%s4] sm:$0x1]
        %v817 = vlaneseq
        %v818 = vshrl.u32 %v817, 7
        %v819 = vsub.s32 0, %v818
        %v820 = vrot.slane %v815, %v819
        %v822 = vadd.f32 %v813, %v820
        %v823 = vadd.f32 %v814, %v820
        %v824 = vsub.f32 0.0, %v822
        %v825 = vsub.f32 0.0, %v823
        %v826 = vmul.f32 %v824, 1.442695
        %v827 = vpow.pop %v826
        %v828 = vmul.f32 %v825, 1.442695
        %v829 = vpow.pop %v828
        %v830 = vadd.f32 %v827, 1.0
        %v831 = vadd.f32 %v829, 1.0
        %v832 = vrcp.pop %v830
        %v833 = vmul.f32 %v822, %v832
        %v834 = vrcp.pop %v831
        %v835 = vmul.f32 %v823, %v834
        %v836 = vsub.f32 0.0, %v717
        %v837 = vsub.f32 0.0, %v722
        %v838 = vmul.f32 %v836, 1.442695
        %v839 = vpow.pop %v838
        %v840 = vmul.f32 %v837, 1.442695
        %v841 = vpow.pop %v840
        %v842 = vadd.f32 %v839, 1.0
        %v843 = vadd.f32 %v841, 1.0
        %v844 = vrcp.pop %v842
        %v845 = vmul.f32 %v717, %v844
        %v846 = vrcp.pop %v843
        %v847 = vmul.f32 %v722, %v846
        %v848 = vld [vmem:[%s5] sm:$0xff]
        %v849 = vld [vmem:[%s5 + $0x8] sm:$0xff]
        %v850 = vld [vmem:[%s5 + $0x10] sm:$0xff]
        %v851 = vld [vmem:[%s5 + $0x18] sm:$0xff]
        %v852 = vld [vmem:[#allocation8] sm:$0x1]
        %v854 = vlaneseq
        %v855 = vshrl.u32 %v854, 7
        %v856 = vsub.s32 0, %v855
        %v857 = vrot.slane %v852, %v856
        %v860 = vsel %vm564, %v833, 0
        %v863 = vsel %vm564, %v835, 0
        %865 = vmatprep.subr.mxu0 0.0
        %866 = vmatpush1.msra.mxu0 %v848
        %867 = vmatprep.subr.mxu0 0.0
        %868 = vmatpush1.msra.mxu0 %v849
        %869 = vmatprep.subr.mxu0 0.0
        %870 = vmatpush1.msra.mxu0 %v850
        %871 = vmatprep.subr.mxu0 0.0
        %872 = vmatpush1.msra.mxu0 %v851
        %873 = vmatprep.subr.mxu0 0.0
        %874 = vmatpush1.msra.mxu0 0.0
        %875 = vmatprep.subr.mxu0 0.0
        %876 = vmatpush1.msra.mxu0 0.0
        %877 = vmatprep.subr.mxu0 0.0
        %878 = vmatpush1.msra.mxu0 0.0
        %879 = vmatprep.subr.mxu0 0.0
        %880 = vmatpush1.msra.mxu0 0.0
        %881 = vmatprep.subr.mxu0 0.0
        %882 = vmatpush1.msra.mxu0 0.0
        %883 = vmatprep.subr.mxu0 0.0
        %884 = vmatpush1.msra.mxu0 0.0
        %885 = vmatprep.subr.mxu0 0.0
        %886 = vmatpush1.msra.mxu0 0.0
        %887 = vmatprep.subr.mxu0 0.0
        %888 = vmatpush1.msra.mxu0 0.0
        %889 = vmatprep.subr.mxu0 0.0
        %890 = vmatpush1.msra.mxu0 0.0
        %891 = vmatprep.subr.mxu0 0.0
        %892 = vmatpush1.msra.mxu0 0.0
        %893 = vmatprep.subr.mxu0 0.0
        %894 = vmatpush1.msra.mxu0 0.0
        %895 = vmatprep.subr.mxu0 0.0
        %896 = vmatpush1.msra.mxu0 0.0
        %897 = vmatprep.subr.mxu0 0.0
        %898 = vmatpush1.msra.mxu0 0.0
        %899 = vmatprep.subr.mxu0 0.0
        %900 = vmatpush1.msra.mxu0 0.0
        %901 = vmatprep.subr.mxu0 0.0
        %902 = vmatpush1.msra.mxu0 0.0
        %903 = vmatprep.subr.mxu0 0.0
        %904 = vmatpush1.msra.mxu0 0.0
        %905 = vmatprep.subr.mxu0 0.0
        %906 = vmatpush1.msra.mxu0 0.0
        %907 = vmatprep.subr.mxu0 0.0
        %908 = vmatpush1.msra.mxu0 0.0
        %909 = vmatprep.subr.mxu0 0.0
        %910 = vmatpush1.msra.mxu0 0.0
        %911 = vmatprep.subr.mxu0 0.0
        %912 = vmatpush1.msra.mxu0 0.0
        %913 = vmatprep.subr.mxu0 0.0
        %914 = vmatpush1.msra.mxu0 0.0
        %915 = vmatprep.subr.mxu0 0.0
        %916 = vmatpush1.msra.mxu0 0.0
        %917 = vmatprep.subr.mxu0 0.0
        %918 = vmatpush1.msra.mxu0 0.0
        %919 = vmatprep.subr.mxu0 0.0
        %920 = vmatpush1.msra.mxu0 0.0
        %921 = vmatprep.subr.mxu0 0.0
        %922 = vmatpush1.msra.mxu0 0.0
        %923 = vmatprep.subr.mxu0 0.0
        %924 = vmatpush1.msra.mxu0 0.0
        %925 = vmatprep.subr.mxu0 0.0
        %926 = vmatpush1.msra.mxu0 0.0
        %927 = vmatprep.subr.mxu0 0.0
        %928 = vmatpush1.msra.mxu0 0.0
        %929 = vmatprep.mubr.f32.mxu0 0.0
        %930 = vmatmul.mubr.f32.gmra.mrb[0].mxu0 %v860
        %v931 = vpop.f32.mrb[0].mxu0
        %v932 = vadd.f32 %v857, %v931
        %v933 = vpop.f32.mrb[0].mxu0
        %934 = vmatprep.mubr.f32.mxu0 0.0
        %935 = vmatmul.mubr.f32.gmra.mrb[0].mxu0 %v863
        %v936 = vpop.f32.mrb[0].mxu0
        %v937 = vadd.f32 %v857, %v936
        %v938 = vpop.f32.mrb[0].mxu0
        %939 = vdwg.mxu0
        %v940 = vmax.f32 %v932, 0.0
        %v941 = vmax.f32 %v937, 0.0
        %v942 = vand.u32 2147483647, %v932
        %v943 = vand.u32 2147483647, %v937
        %v944 = vsub.f32 0.0, %v942
        %v945 = vsub.f32 0.0, %v943
        %v946 = vmul.f32 %v944, 1.442695
        %v947 = vpow.pop %v946
        %v948 = vmul.f32 %v945, 1.442695
        %v949 = vpow.pop %v948
        %v950 = vadd.f32 %v947, 1.0
        %v951 = vadd.f32 %v949, 1.0
        %v952 = vlog2.pop %v950
        %v953 = vmul.f32 %v952, 0.6931472
        %v954 = vlog2.pop %v951
        %v955 = vmul.f32 %v954, 0.6931472
        %v956 = vadd.f32 %v940, %v953
        %v957 = vadd.f32 %v941, %v955
        %v958 = vld [vmem:[%s7] sm:$0xff]
        %v959 = vld [vmem:[%s7 + $0x8] sm:$0xff]
        %v960 = vld [vmem:[%s7 + $0x10] sm:$0xff]
        %v961 = vld [vmem:[%s7 + $0x18] sm:$0xff]
        %962 = vmatprep.subr.mxu0 0.0
        %963 = vmatpush1.msra.mxu0 %v958
        %964 = vmatprep.subr.mxu0 0.0
        %965 = vmatpush1.msra.mxu0 %v959
        %966 = vmatprep.subr.mxu0 0.0
        %967 = vmatpush1.msra.mxu0 %v960
        %968 = vmatprep.subr.mxu0 0.0
        %969 = vmatpush1.msra.mxu0 %v961
        %970 = vmatprep.subr.mxu0 0.0
        %971 = vmatpush1.msra.mxu0 0.0
        %972 = vmatprep.subr.mxu0 0.0
        %973 = vmatpush1.msra.mxu0 0.0
        %974 = vmatprep.subr.mxu0 0.0
        %975 = vmatpush1.msra.mxu0 0.0
        %976 = vmatprep.subr.mxu0 0.0
        %977 = vmatpush1.msra.mxu0 0.0
        %978 = vmatprep.subr.mxu0 0.0
        %979 = vmatpush1.msra.mxu0 0.0
        %980 = vmatprep.subr.mxu0 0.0
        %981 = vmatpush1.msra.mxu0 0.0
        %982 = vmatprep.subr.mxu0 0.0
        %983 = vmatpush1.msra.mxu0 0.0
        %984 = vmatprep.subr.mxu0 0.0
        %985 = vmatpush1.msra.mxu0 0.0
        %986 = vmatprep.subr.mxu0 0.0
        %987 = vmatpush1.msra.mxu0 0.0
        %988 = vmatprep.subr.mxu0 0.0
        %989 = vmatpush1.msra.mxu0 0.0
        %990 = vmatprep.subr.mxu0 0.0
        %991 = vmatpush1.msra.mxu0 0.0
        %992 = vmatprep.subr.mxu0 0.0
        %993 = vmatpush1.msra.mxu0 0.0
        %994 = vmatprep.subr.mxu0 0.0
        %995 = vmatpush1.msra.mxu0 0.0
        %996 = vmatprep.subr.mxu0 0.0
        %997 = vmatpush1.msra.mxu0 0.0
        %998 = vmatprep.subr.mxu0 0.0
        %999 = vmatpush1.msra.mxu0 0.0
        %1000 = vmatprep.subr.mxu0 0.0
        %1001 = vmatpush1.msra.mxu0 0.0
        %1002 = vmatprep.subr.mxu0 0.0
        %1003 = vmatpush1.msra.mxu0 0.0
        %1004 = vmatprep.subr.mxu0 0.0
        %1005 = vmatpush1.msra.mxu0 0.0
        %1006 = vmatprep.subr.mxu0 0.0
        %1007 = vmatpush1.msra.mxu0 0.0
        %1008 = vmatprep.subr.mxu0 0.0
        %1009 = vmatpush1.msra.mxu0 0.0
        %1010 = vmatprep.subr.mxu0 0.0
        %1011 = vmatpush1.msra.mxu0 0.0
        %1012 = vmatprep.subr.mxu0 0.0
        %1013 = vmatpush1.msra.mxu0 0.0
        %1014 = vmatprep.subr.mxu0 0.0
        %1015 = vmatpush1.msra.mxu0 0.0
        %1016 = vmatprep.subr.mxu0 0.0
        %1017 = vmatpush1.msra.mxu0 0.0
        %1018 = vmatprep.subr.mxu0 0.0
        %1019 = vmatpush1.msra.mxu0 0.0
        %1020 = vmatprep.subr.mxu0 0.0
        %1021 = vmatpush1.msra.mxu0 0.0
        %1022 = vmatprep.subr.mxu0 0.0
        %1023 = vmatpush1.msra.mxu0 0.0
        %1024 = vmatprep.subr.mxu0 0.0
        %1025 = vmatpush1.msra.mxu0 0.0
        %1026 = vmatprep.mubr.f32.mxu0 0.0
        %1027 = vmatmul.mubr.f32.gmra.mrb[0].mxu0 %v860
        %v1028 = vpop.f32.mrb[0].mxu0
        %v1029 = vadd.f32 0.0, %v1028
        %v1030 = vpop.f32.mrb[0].mxu0
        %1031 = vmatprep.mubr.f32.mxu0 0.0
        %1032 = vmatmul.mubr.f32.gmra.mrb[0].mxu0 %v863
        %v1033 = vpop.f32.mrb[0].mxu0
        %v1034 = vadd.f32 0.0, %v1033
        %v1035 = vpop.f32.mrb[0].mxu0
        %1036 = vdwg.mxu0
        %v1037 = vld [vmem:[%s8] sm:$0xff]
        %v1038 = vld [vmem:[%s8 + $0x8] sm:$0xff]
        %v1039 = vld [vmem:[%s8 + $0x10] sm:$0xff]
        %v1040 = vld [vmem:[%s8 + $0x18] sm:$0xff]
        %1041 = vmatprep.subr.mxu0 0.0
        %1042 = vmatpush1.msra.mxu0 %v1037
        %1043 = vmatprep.subr.mxu0 0.0
        %1044 = vmatpush1.msra.mxu0 %v1038
        %1045 = vmatprep.subr.mxu0 0.0
        %1046 = vmatpush1.msra.mxu0 %v1039
        %1047 = vmatprep.subr.mxu0 0.0
        %1048 = vmatpush1.msra.mxu0 %v1040
        %1049 = vmatprep.subr.mxu0 0.0
        %1050 = vmatpush1.msra.mxu0 0.0
        %1051 = vmatprep.subr.mxu0 0.0
        %1052 = vmatpush1.msra.mxu0 0.0
        %1053 = vmatprep.subr.mxu0 0.0
        %1054 = vmatpush1.msra.mxu0 0.0
        %1055 = vmatprep.subr.mxu0 0.0
        %1056 = vmatpush1.msra.mxu0 0.0
        %1057 = vmatprep.subr.mxu0 0.0
        %1058 = vmatpush1.msra.mxu0 0.0
        %1059 = vmatprep.subr.mxu0 0.0
        %1060 = vmatpush1.msra.mxu0 0.0
        %1061 = vmatprep.subr.mxu0 0.0
        %1062 = vmatpush1.msra.mxu0 0.0
        %1063 = vmatprep.subr.mxu0 0.0
        %1064 = vmatpush1.msra.mxu0 0.0
        %1065 = vmatprep.subr.mxu0 0.0
        %1066 = vmatpush1.msra.mxu0 0.0
        %1067 = vmatprep.subr.mxu0 0.0
        %1068 = vmatpush1.msra.mxu0 0.0
        %1069 = vmatprep.subr.mxu0 0.0
        %1070 = vmatpush1.msra.mxu0 0.0
        %1071 = vmatprep.subr.mxu0 0.0
        %1072 = vmatpush1.msra.mxu0 0.0
        %1073 = vmatprep.subr.mxu0 0.0
        %1074 = vmatpush1.msra.mxu0 0.0
        %1075 = vmatprep.subr.mxu0 0.0
        %1076 = vmatpush1.msra.mxu0 0.0
        %1077 = vmatprep.subr.mxu0 0.0
        %1078 = vmatpush1.msra.mxu0 0.0
        %1079 = vmatprep.subr.mxu0 0.0
        %1080 = vmatpush1.msra.mxu0 0.0
        %1081 = vmatprep.subr.mxu0 0.0
        %1082 = vmatpush1.msra.mxu0 0.0
        %1083 = vmatprep.subr.mxu0 0.0
        %1084 = vmatpush1.msra.mxu0 0.0
        %1085 = vmatprep.subr.mxu0 0.0
        %1086 = vmatpush1.msra.mxu0 0.0
        %1087 = vmatprep.subr.mxu0 0.0
        %1088 = vmatpush1.msra.mxu0 0.0
        %1089 = vmatprep.subr.mxu0 0.0
        %1090 = vmatpush1.msra.mxu0 0.0
        %1091 = vmatprep.subr.mxu0 0.0
        %1092 = vmatpush1.msra.mxu0 0.0
        %1093 = vmatprep.subr.mxu0 0.0
        %1094 = vmatpush1.msra.mxu0 0.0
        %1095 = vmatprep.subr.mxu0 0.0
        %1096 = vmatpush1.msra.mxu0 0.0
        %1097 = vmatprep.subr.mxu0 0.0
        %1098 = vmatpush1.msra.mxu0 0.0
        %1099 = vmatprep.subr.mxu0 0.0
        %1100 = vmatpush1.msra.mxu0 0.0
        %1101 = vmatprep.subr.mxu0 0.0
        %1102 = vmatpush1.msra.mxu0 0.0
        %1103 = vmatprep.subr.mxu0 0.0
        %1104 = vmatpush1.msra.mxu0 0.0
        %1105 = vmatprep.mubr.f32.mxu0 0.0
        %1106 = vmatmul.mubr.f32.gmra.mrb[0].mxu0 %v860
        %v1107 = vpop.f32.mrb[0].mxu0
        %v1108 = vadd.f32 0.0, %v1107
        %v1109 = vpop.f32.mrb[0].mxu0
        %1110 = vmatprep.mubr.f32.mxu0 0.0
        %1111 = vmatmul.mubr.f32.gmra.mrb[0].mxu0 %v863
        %v1112 = vpop.f32.mrb[0].mxu0
        %v1113 = vadd.f32 0.0, %v1112
        %v1114 = vpop.f32.mrb[0].mxu0
        %1115 = vdwg.mxu0
        %v1116 = vmul.f32 %v956, %v833
        %v1117 = vmul.f32 %v957, %v835
        %v1118 = vld [vmem:[#allocation10] sm:$0xff]
        %v1119 = vld [vmem:[#allocation10 + $0x8] sm:$0xff]
        %v1121 = vcombine.high %v956, %v956
        %v1123 = vunpack.c.l.s4 1966171168
        %v1124 = vunpack.c.0.s8 %v1123
        %v1125 = vlaneseq
        %v1126 = vshrl.u32 %v1125, 7
        %v1127 = vsub.s32 %v1124, %v1126
        %v1128 = vrot.slane %v956, %v1127
        %v1130 = vunpack.c.l.s4 1966171168
        %v1131 = vunpack.c.0.s8 %v1130
        %v1132 = vlaneseq
        %v1133 = vshrl.u32 %v1132, 7
        %v1134 = vsub.s32 %v1131, %v1133
        %v1135 = vrot.slane %v1121, %v1134
        %v1136 = vcombine.high %v1128, %v1128
        %v1137 = vcombine.high %v1135, %v1135
        %v1139 = vunpack.c.l.s4 1966171168
        %v1140 = vunpack.c.0.s8 %v1139
        %v1141 = vlaneseq
        %v1142 = vshrl.u32 %v1141, 7
        %v1143 = vsub.s32 %v1140, %v1142
        %v1144 = vrot.slane %v1128, %v1143
        %v1146 = vunpack.c.l.s4 1966171168
        %v1147 = vunpack.c.0.s8 %v1146
        %v1148 = vlaneseq
        %v1149 = vshrl.u32 %v1148, 7
        %v1150 = vsub.s32 %v1147, %v1149
        %v1151 = vrot.slane %v1135, %v1150
        %v1153 = vunpack.c.l.s4 1966171168
        %v1154 = vunpack.c.0.s8 %v1153
        %v1155 = vlaneseq
        %v1156 = vshrl.u32 %v1155, 7
        %v1157 = vsub.s32 %v1154, %v1156
        %v1158 = vrot.slane %v1136, %v1157
        %v1160 = vunpack.c.l.s4 1966171168
        %v1161 = vunpack.c.0.s8 %v1160
        %v1162 = vlaneseq
        %v1163 = vshrl.u32 %v1162, 7
        %v1164 = vsub.s32 %v1161, %v1163
        %v1165 = vrot.slane %v1137, %v1164
        %v1166 = vcombine.high %v1144, %v1144
        %v1167 = vcombine.high %v1151, %v1151
        %v1168 = vcombine.high %v1158, %v1158
        %v1169 = vcombine.high %v1165, %v1165
        %v1170 = vlaneseq
        %v1171 = vshrl.u32 %v1170, 7
        %v1172 = vsub.s32 0, %v1171
        %v1173 = vrot.slane %v1144, %v1172
        %v1174 = vlaneseq
        %v1175 = vshrl.u32 %v1174, 7
        %v1176 = vsub.s32 0, %v1175
        %v1177 = vrot.slane %v1158, %v1176
        %v1178 = vlaneseq
        %v1179 = vshrl.u32 %v1178, 7
        %v1180 = vsub.s32 0, %v1179
        %v1181 = vrot.slane %v1166, %v1180
        %v1182 = vlaneseq
        %v1183 = vshrl.u32 %v1182, 7
        %v1184 = vsub.s32 0, %v1183
        %v1185 = vrot.slane %v1168, %v1184
        %v1186 = vlaneseq
        %v1187 = vshrl.u32 %v1186, 7
        %v1188 = vsub.s32 0, %v1187
        %v1189 = vrot.slane %v1151, %v1188
        %v1190 = vlaneseq
        %v1191 = vshrl.u32 %v1190, 7
        %v1192 = vsub.s32 0, %v1191
        %v1193 = vrot.slane %v1165, %v1192
        %v1194 = vlaneseq
        %v1195 = vshrl.u32 %v1194, 7
        %v1196 = vsub.s32 0, %v1195
        %v1197 = vrot.slane %v1167, %v1196
        %v1198 = vlaneseq
        %v1199 = vshrl.u32 %v1198, 7
        %v1200 = vsub.s32 0, %v1199
        %v1201 = vrot.slane %v1169, %v1200
        %v1210 = vmul.f32 %v1173, %v1118
        %v1211 = vmul.f32 %v1173, %v1119
        %v1212 = vmul.f32 %v1177, %v1118
        %v1213 = vmul.f32 %v1177, %v1119
        %v1214 = vmul.f32 %v1181, %v1118
        %v1215 = vmul.f32 %v1181, %v1119
        %v1216 = vmul.f32 %v1185, %v1118
        %v1217 = vmul.f32 %v1185, %v1119
        %v1218 = vmul.f32 %v1189, %v1118
        %v1219 = vmul.f32 %v1189, %v1119
        %v1220 = vmul.f32 %v1193, %v1118
        %v1221 = vmul.f32 %v1193, %v1119
        %v1222 = vmul.f32 %v1197, %v1118
        %v1223 = vmul.f32 %v1197, %v1119
        %v1224 = vmul.f32 %v1201, %v1118
        %v1225 = vmul.f32 %v1201, %v1119
        %v1227 = vcombine.high %v957, %v957
        %v1229 = vunpack.c.l.s4 1966171168
        %v1230 = vunpack.c.0.s8 %v1229
        %v1231 = vlaneseq
        %v1232 = vshrl.u32 %v1231, 7
        %v1233 = vsub.s32 %v1230, %v1232
        %v1234 = vrot.slane %v957, %v1233
        %v1236 = vunpack.c.l.s4 1966171168
        %v1237 = vunpack.c.0.s8 %v1236
        %v1238 = vlaneseq
        %v1239 = vshrl.u32 %v1238, 7
        %v1240 = vsub.s32 %v1237, %v1239
        %v1241 = vrot.slane %v1227, %v1240
        %v1242 = vcombine.high %v1234, %v1234
        %v1243 = vcombine.high %v1241, %v1241
        %v1245 = vunpack.c.l.s4 1966171168
        %v1246 = vunpack.c.0.s8 %v1245
        %v1247 = vlaneseq
        %v1248 = vshrl.u32 %v1247, 7
        %v1249 = vsub.s32 %v1246, %v1248
        %v1250 = vrot.slane %v1234, %v1249
        %v1252 = vunpack.c.l.s4 1966171168
        %v1253 = vunpack.c.0.s8 %v1252
        %v1254 = vlaneseq
        %v1255 = vshrl.u32 %v1254, 7
        %v1256 = vsub.s32 %v1253, %v1255
        %v1257 = vrot.slane %v1241, %v1256
        %v1259 = vunpack.c.l.s4 1966171168
        %v1260 = vunpack.c.0.s8 %v1259
        %v1261 = vlaneseq
        %v1262 = vshrl.u32 %v1261, 7
        %v1263 = vsub.s32 %v1260, %v1262
        %v1264 = vrot.slane %v1242, %v1263
        %v1266 = vunpack.c.l.s4 1966171168
        %v1267 = vunpack.c.0.s8 %v1266
        %v1268 = vlaneseq
        %v1269 = vshrl.u32 %v1268, 7
        %v1270 = vsub.s32 %v1267, %v1269
        %v1271 = vrot.slane %v1243, %v1270
        %v1272 = vcombine.high %v1250, %v1250
        %v1273 = vcombine.high %v1257, %v1257
        %v1274 = vcombine.high %v1264, %v1264
        %v1275 = vcombine.high %v1271, %v1271
        %v1276 = vlaneseq
        %v1277 = vshrl.u32 %v1276, 7
        %v1278 = vsub.s32 0, %v1277
        %v1279 = vrot.slane %v1250, %v1278
        %v1280 = vlaneseq
        %v1281 = vshrl.u32 %v1280, 7
        %v1282 = vsub.s32 0, %v1281
        %v1283 = vrot.slane %v1264, %v1282
        %v1284 = vlaneseq
        %v1285 = vshrl.u32 %v1284, 7
        %v1286 = vsub.s32 0, %v1285
        %v1287 = vrot.slane %v1272, %v1286
        %v1288 = vlaneseq
        %v1289 = vshrl.u32 %v1288, 7
        %v1290 = vsub.s32 0, %v1289
        %v1291 = vrot.slane %v1274, %v1290
        %v1292 = vlaneseq
        %v1293 = vshrl.u32 %v1292, 7
        %v1294 = vsub.s32 0, %v1293
        %v1295 = vrot.slane %v1257, %v1294
        %v1296 = vlaneseq
        %v1297 = vshrl.u32 %v1296, 7
        %v1298 = vsub.s32 0, %v1297
        %v1299 = vrot.slane %v1271, %v1298
        %v1300 = vlaneseq
        %v1301 = vshrl.u32 %v1300, 7
        %v1302 = vsub.s32 0, %v1301
        %v1303 = vrot.slane %v1273, %v1302
        %v1304 = vlaneseq
        %v1305 = vshrl.u32 %v1304, 7
        %v1306 = vsub.s32 0, %v1305
        %v1307 = vrot.slane %v1275, %v1306
        %v1316 = vmul.f32 %v1279, %v1118
        %v1317 = vmul.f32 %v1279, %v1119
        %v1318 = vmul.f32 %v1283, %v1118
        %v1319 = vmul.f32 %v1283, %v1119
        %v1320 = vmul.f32 %v1287, %v1118
        %v1321 = vmul.f32 %v1287, %v1119
        %v1322 = vmul.f32 %v1291, %v1118
        %v1323 = vmul.f32 %v1291, %v1119
        %v1324 = vmul.f32 %v1295, %v1118
        %v1325 = vmul.f32 %v1295, %v1119
        %v1326 = vmul.f32 %v1299, %v1118
        %v1327 = vmul.f32 %v1299, %v1119
        %v1328 = vmul.f32 %v1303, %v1118
        %v1329 = vmul.f32 %v1303, %v1119
        %v1330 = vmul.f32 %v1307, %v1118
        %v1331 = vmul.f32 %v1307, %v1119
        %1348 = vrot.lane.b32.xlu0 %v1316, 32
        %v1349 = vpop.permute.xlu0 %1348
        %1350 = vrot.lane.b32.xlu0 %v1317, 32
        %v1351 = vpop.permute.xlu0 %1350
        %1352 = vrot.lane.b32.xlu0 %v1318, 32
        %v1353 = vpop.permute.xlu0 %1352
        %1354 = vrot.lane.b32.xlu0 %v1319, 32
        %v1355 = vpop.permute.xlu0 %1354
        %1356 = vrot.lane.b32.xlu0 %v1320, 32
        %v1357 = vpop.permute.xlu0 %1356
        %1358 = vrot.lane.b32.xlu0 %v1321, 32
        %v1359 = vpop.permute.xlu0 %1358
        %1360 = vrot.lane.b32.xlu0 %v1322, 32
        %v1361 = vpop.permute.xlu0 %1360
        %1362 = vrot.lane.b32.xlu0 %v1323, 32
        %v1363 = vpop.permute.xlu0 %1362
        %1364 = vrot.lane.b32.xlu0 %v1324, 32
        %v1365 = vpop.permute.xlu0 %1364
        %1366 = vrot.lane.b32.xlu0 %v1325, 32
        %v1367 = vpop.permute.xlu0 %1366
        %1368 = vrot.lane.b32.xlu0 %v1326, 32
        %v1369 = vpop.permute.xlu0 %1368
        %1370 = vrot.lane.b32.xlu0 %v1327, 32
        %v1371 = vpop.permute.xlu0 %1370
        %1372 = vrot.lane.b32.xlu0 %v1328, 32
        %v1373 = vpop.permute.xlu0 %1372
        %1374 = vrot.lane.b32.xlu0 %v1329, 32
        %v1375 = vpop.permute.xlu0 %1374
        %1376 = vrot.lane.b32.xlu0 %v1330, 32
        %v1377 = vpop.permute.xlu0 %1376
        %1378 = vrot.lane.b32.xlu0 %v1331, 32
        %v1379 = vpop.permute.xlu0 %1378
        %v1396 = vsel %vm564, %v1210, %v1349
        %v1397 = vsel %vm564, %v1211, %v1351
        %v1398 = vsel %vm564, %v1212, %v1353
        %v1399 = vsel %vm564, %v1213, %v1355
        %v1400 = vsel %vm564, %v1214, %v1357
        %v1401 = vsel %vm564, %v1215, %v1359
        %v1402 = vsel %vm564, %v1216, %v1361
        %v1403 = vsel %vm564, %v1217, %v1363
        %v1404 = vsel %vm564, %v1218, %v1365
        %v1405 = vsel %vm564, %v1219, %v1367
        %v1406 = vsel %vm564, %v1220, %v1369
        %v1407 = vsel %vm564, %v1221, %v1371
        %v1408 = vsel %vm564, %v1222, %v1373
        %v1409 = vsel %vm564, %v1223, %v1375
        %v1410 = vsel %vm564, %v1224, %v1377
        %v1411 = vsel %vm564, %v1225, %v1379
        %v1412 = vmul.f32 %v1396, 1.442695
        %v1413 = vpow.pop %v1412
        %v1414 = vmul.f32 %v1397, 1.442695
        %v1415 = vpow.pop %v1414
        %v1416 = vmul.f32 %v1398, 1.442695
        %v1417 = vpow.pop %v1416
        %v1418 = vmul.f32 %v1399, 1.442695
        %v1419 = vpow.pop %v1418
        %v1420 = vmul.f32 %v1400, 1.442695
        %v1421 = vpow.pop %v1420
        %v1422 = vmul.f32 %v1401, 1.442695
        %v1423 = vpow.pop %v1422
        %v1424 = vmul.f32 %v1402, 1.442695
        %v1425 = vpow.pop %v1424
        %v1426 = vmul.f32 %v1403, 1.442695
        %v1427 = vpow.pop %v1426
        %v1428 = vmul.f32 %v1404, 1.442695
        %v1429 = vpow.pop %v1428
        %v1430 = vmul.f32 %v1405, 1.442695
        %v1431 = vpow.pop %v1430
        %v1432 = vmul.f32 %v1406, 1.442695
        %v1433 = vpow.pop %v1432
        %v1434 = vmul.f32 %v1407, 1.442695
        %v1435 = vpow.pop %v1434
        %v1436 = vmul.f32 %v1408, 1.442695
        %v1437 = vpow.pop %v1436
        %v1438 = vmul.f32 %v1409, 1.442695
        %v1439 = vpow.pop %v1438
        %v1440 = vmul.f32 %v1410, 1.442695
        %v1441 = vpow.pop %v1440
        %v1442 = vmul.f32 %v1411, 1.442695
        %v1443 = vpow.pop %v1442
        %vm1444 = vcmask 523264
        %1445 = vst.msk [vmem:[#allocation2] sm:$0xff] %vm1444, %v1413
        %1446 = vst.msk [vmem:[#allocation2 + $0x8] sm:$0xff] %vm1444, %v1415
        %1447 = vst.msk [vmem:[#allocation2 + $0x10] sm:$0xff] %vm1444, %v1417
        %1448 = vst.msk [vmem:[#allocation2 + $0x18] sm:$0xff] %vm1444, %v1419
        %1449 = vst.msk [vmem:[#allocation2 + $0x20] sm:$0xff] %vm1444, %v1421
        %1450 = vst.msk [vmem:[#allocation2 + $0x28] sm:$0xff] %vm1444, %v1423
        %1451 = vst.msk [vmem:[#allocation2 + $0x30] sm:$0xff] %vm1444, %v1425
        %1452 = vst.msk [vmem:[#allocation2 + $0x38] sm:$0xff] %vm1444, %v1427
        %1453 = vst.msk [vmem:[#allocation2 + $0x40] sm:$0xff] %vm1444, %v1429
        %1454 = vst.msk [vmem:[#allocation2 + $0x48] sm:$0xff] %vm1444, %v1431
        %1455 = vst.msk [vmem:[#allocation2 + $0x50] sm:$0xff] %vm1444, %v1433
        %1456 = vst.msk [vmem:[#allocation2 + $0x58] sm:$0xff] %vm1444, %v1435
        %1457 = vst.msk [vmem:[#allocation2 + $0x60] sm:$0xff] %vm1444, %v1437
        %1458 = vst.msk [vmem:[#allocation2 + $0x68] sm:$0xff] %vm1444, %v1439
        %1459 = vst.msk [vmem:[#allocation2 + $0x70] sm:$0xff] %vm1444, %v1441
        %1460 = vst.msk [vmem:[#allocation2 + $0x78] sm:$0xff] %vm1444, %v1443
        %v1461 = vlaneseq
        %v1462 = vshrl.u32 %v1461, 7
        %v1463 = vsub.s32 0, %v1462
        %v1464 = vrot.slane %v1029, %v1463
        %1466 = vbcast.lane.b32.xlu0 %v1464, 256
        %v1467 = vpop.permute.xlu0 %1466
        %s1469 = sor.u32 256, 8
        %1470 = vbcast.lane.b32.xlu0 %v1464, %s1469
        %v1471 = vpop.permute.xlu0 %1470
        %v1472 = vlaneseq
        %v1473 = vshrl.u32 %v1472, 7
        %v1474 = vsub.s32 1, %v1473
        %v1475 = vrot.slane %v1029, %v1474
        %1477 = vbcast.lane.b32.xlu0 %v1475, 256
        %v1478 = vpop.permute.xlu0 %1477
        %s1480 = sor.u32 256, 8
        %1481 = vbcast.lane.b32.xlu0 %v1475, %s1480
        %v1482 = vpop.permute.xlu0 %1481
        %v1483 = vlaneseq
        %v1484 = vshrl.u32 %v1483, 7
        %v1485 = vsub.s32 2, %v1484
        %v1486 = vrot.slane %v1029, %v1485
        %1488 = vbcast.lane.b32.xlu0 %v1486, 256
        %v1489 = vpop.permute.xlu0 %1488
        %s1491 = sor.u32 256, 8
        %1492 = vbcast.lane.b32.xlu0 %v1486, %s1491
        %v1493 = vpop.permute.xlu0 %1492
        %v1494 = vlaneseq
        %v1495 = vshrl.u32 %v1494, 7
        %v1496 = vsub.s32 3, %v1495
        %v1497 = vrot.slane %v1029, %v1496
        %1499 = vbcast.lane.b32.xlu0 %v1497, 256
        %v1500 = vpop.permute.xlu0 %1499
        %s1502 = sor.u32 256, 8
        %1503 = vbcast.lane.b32.xlu0 %v1497, %s1502
        %v1504 = vpop.permute.xlu0 %1503
        %v1505 = vlaneseq
        %v1506 = vshrl.u32 %v1505, 7
        %v1507 = vsub.s32 4, %v1506
        %v1508 = vrot.slane %v1029, %v1507
        %1510 = vbcast.lane.b32.xlu0 %v1508, 256
        %v1511 = vpop.permute.xlu0 %1510
        %s1513 = sor.u32 256, 8
        %1514 = vbcast.lane.b32.xlu0 %v1508, %s1513
        %v1515 = vpop.permute.xlu0 %1514
        %v1516 = vlaneseq
        %v1517 = vshrl.u32 %v1516, 7
        %v1518 = vsub.s32 5, %v1517
        %v1519 = vrot.slane %v1029, %v1518
        %1521 = vbcast.lane.b32.xlu0 %v1519, 256
        %v1522 = vpop.permute.xlu0 %1521
        %s1524 = sor.u32 256, 8
        %1525 = vbcast.lane.b32.xlu0 %v1519, %s1524
        %v1526 = vpop.permute.xlu0 %1525
        %v1527 = vlaneseq
        %v1528 = vshrl.u32 %v1527, 7
        %v1529 = vsub.s32 6, %v1528
        %v1530 = vrot.slane %v1029, %v1529
        %1532 = vbcast.lane.b32.xlu0 %v1530, 256
        %v1533 = vpop.permute.xlu0 %1532
        %s1535 = sor.u32 256, 8
        %1536 = vbcast.lane.b32.xlu0 %v1530, %s1535
        %v1537 = vpop.permute.xlu0 %1536
        %v1538 = vlaneseq
        %v1539 = vshrl.u32 %v1538, 7
        %v1540 = vsub.s32 7, %v1539
        %v1541 = vrot.slane %v1029, %v1540
        %1543 = vbcast.lane.b32.xlu0 %v1541, 256
        %v1544 = vpop.permute.xlu0 %1543
        %s1546 = sor.u32 256, 8
        %1547 = vbcast.lane.b32.xlu0 %v1541, %s1546
        %v1548 = vpop.permute.xlu0 %1547
        %v1550 = vcombine.high %v1116, %v1116
        %v1552 = vunpack.c.l.s4 1966171168
        %v1553 = vunpack.c.0.s8 %v1552
        %v1554 = vlaneseq
        %v1555 = vshrl.u32 %v1554, 7
        %v1556 = vsub.s32 %v1553, %v1555
        %v1557 = vrot.slane %v1116, %v1556
        %v1559 = vunpack.c.l.s4 1966171168
        %v1560 = vunpack.c.0.s8 %v1559
        %v1561 = vlaneseq
        %v1562 = vshrl.u32 %v1561, 7
        %v1563 = vsub.s32 %v1560, %v1562
        %v1564 = vrot.slane %v1550, %v1563
        %v1565 = vcombine.high %v1557, %v1557
        %v1566 = vcombine.high %v1564, %v1564
        %v1568 = vunpack.c.l.s4 1966171168
        %v1569 = vunpack.c.0.s8 %v1568
        %v1570 = vlaneseq
        %v1571 = vshrl.u32 %v1570, 7
        %v1572 = vsub.s32 %v1569, %v1571
        %v1573 = vrot.slane %v1557, %v1572
        %v1575 = vunpack.c.l.s4 1966171168
        %v1576 = vunpack.c.0.s8 %v1575
        %v1577 = vlaneseq
        %v1578 = vshrl.u32 %v1577, 7
        %v1579 = vsub.s32 %v1576, %v1578
        %v1580 = vrot.slane %v1564, %v1579
        %v1582 = vunpack.c.l.s4 1966171168
        %v1583 = vunpack.c.0.s8 %v1582
        %v1584 = vlaneseq
        %v1585 = vshrl.u32 %v1584, 7
        %v1586 = vsub.s32 %v1583, %v1585
        %v1587 = vrot.slane %v1565, %v1586
        %v1589 = vunpack.c.l.s4 1966171168
        %v1590 = vunpack.c.0.s8 %v1589
        %v1591 = vlaneseq
        %v1592 = vshrl.u32 %v1591, 7
        %v1593 = vsub.s32 %v1590, %v1592
        %v1594 = vrot.slane %v1566, %v1593
        %v1595 = vcombine.high %v1573, %v1573
        %v1596 = vcombine.high %v1580, %v1580
        %v1597 = vcombine.high %v1587, %v1587
        %v1598 = vcombine.high %v1594, %v1594
        %v1599 = vlaneseq
        %v1600 = vshrl.u32 %v1599, 7
        %v1601 = vsub.s32 0, %v1600
        %v1602 = vrot.slane %v1573, %v1601
        %v1603 = vlaneseq
        %v1604 = vshrl.u32 %v1603, 7
        %v1605 = vsub.s32 0, %v1604
        %v1606 = vrot.slane %v1587, %v1605
        %v1607 = vlaneseq
        %v1608 = vshrl.u32 %v1607, 7
        %v1609 = vsub.s32 0, %v1608
        %v1610 = vrot.slane %v1595, %v1609
        %v1611 = vlaneseq
        %v1612 = vshrl.u32 %v1611, 7
        %v1613 = vsub.s32 0, %v1612
        %v1614 = vrot.slane %v1597, %v1613
        %v1615 = vlaneseq
        %v1616 = vshrl.u32 %v1615, 7
        %v1617 = vsub.s32 0, %v1616
        %v1618 = vrot.slane %v1580, %v1617
        %v1619 = vlaneseq
        %v1620 = vshrl.u32 %v1619, 7
        %v1621 = vsub.s32 0, %v1620
        %v1622 = vrot.slane %v1594, %v1621
        %v1623 = vlaneseq
        %v1624 = vshrl.u32 %v1623, 7
        %v1625 = vsub.s32 0, %v1624
        %v1626 = vrot.slane %v1596, %v1625
        %v1627 = vlaneseq
        %v1628 = vshrl.u32 %v1627, 7
        %v1629 = vsub.s32 0, %v1628
        %v1630 = vrot.slane %v1598, %v1629
        %v1639 = vmul.f32 %v1467, %v1602
        %v1640 = vmul.f32 %v1471, %v1602
        %v1641 = vmul.f32 %v1478, %v1606
        %v1642 = vmul.f32 %v1482, %v1606
        %v1643 = vmul.f32 %v1489, %v1610
        %v1644 = vmul.f32 %v1493, %v1610
        %v1645 = vmul.f32 %v1500, %v1614
        %v1646 = vmul.f32 %v1504, %v1614
        %v1647 = vmul.f32 %v1511, %v1618
        %v1648 = vmul.f32 %v1515, %v1618
        %v1649 = vmul.f32 %v1522, %v1622
        %v1650 = vmul.f32 %v1526, %v1622
        %v1651 = vmul.f32 %v1533, %v1626
        %v1652 = vmul.f32 %v1537, %v1626
        %v1653 = vmul.f32 %v1544, %v1630
        %v1654 = vmul.f32 %v1548, %v1630
        %v1655 = vlaneseq
        %v1656 = vshrl.u32 %v1655, 7
        %v1657 = vsub.s32 0, %v1656
        %v1658 = vrot.slane %v1034, %v1657
        %1660 = vbcast.lane.b32.xlu0 %v1658, 256
        %v1661 = vpop.permute.xlu0 %1660
        %s1663 = sor.u32 256, 8
        %1664 = vbcast.lane.b32.xlu0 %v1658, %s1663
        %v1665 = vpop.permute.xlu0 %1664
        %v1666 = vlaneseq
        %v1667 = vshrl.u32 %v1666, 7
        %v1668 = vsub.s32 1, %v1667
        %v1669 = vrot.slane %v1034, %v1668
        %1671 = vbcast.lane.b32.xlu0 %v1669, 256
        %v1672 = vpop.permute.xlu0 %1671
        %s1674 = sor.u32 256, 8
        %1675 = vbcast.lane.b32.xlu0 %v1669, %s1674
        %v1676 = vpop.permute.xlu0 %1675
        %v1677 = vlaneseq
        %v1678 = vshrl.u32 %v1677, 7
        %v1679 = vsub.s32 2, %v1678
        %v1680 = vrot.slane %v1034, %v1679
        %1682 = vbcast.lane.b32.xlu0 %v1680, 256
        %v1683 = vpop.permute.xlu0 %1682
        %s1685 = sor.u32 256, 8
        %1686 = vbcast.lane.b32.xlu0 %v1680, %s1685
        %v1687 = vpop.permute.xlu0 %1686
        %v1688 = vlaneseq
        %v1689 = vshrl.u32 %v1688, 7
        %v1690 = vsub.s32 3, %v1689
        %v1691 = vrot.slane %v1034, %v1690
        %1693 = vbcast.lane.b32.xlu0 %v1691, 256
        %v1694 = vpop.permute.xlu0 %1693
        %s1696 = sor.u32 256, 8
        %1697 = vbcast.lane.b32.xlu0 %v1691, %s1696
        %v1698 = vpop.permute.xlu0 %1697
        %v1699 = vlaneseq
        %v1700 = vshrl.u32 %v1699, 7
        %v1701 = vsub.s32 4, %v1700
        %v1702 = vrot.slane %v1034, %v1701
        %1704 = vbcast.lane.b32.xlu0 %v1702, 256
        %v1705 = vpop.permute.xlu0 %1704
        %s1707 = sor.u32 256, 8
        %1708 = vbcast.lane.b32.xlu0 %v1702, %s1707
        %v1709 = vpop.permute.xlu0 %1708
        %v1710 = vlaneseq
        %v1711 = vshrl.u32 %v1710, 7
        %v1712 = vsub.s32 5, %v1711
        %v1713 = vrot.slane %v1034, %v1712
        %1715 = vbcast.lane.b32.xlu0 %v1713, 256
        %v1716 = vpop.permute.xlu0 %1715
        %s1718 = sor.u32 256, 8
        %1719 = vbcast.lane.b32.xlu0 %v1713, %s1718
        %v1720 = vpop.permute.xlu0 %1719
        %v1721 = vlaneseq
        %v1722 = vshrl.u32 %v1721, 7
        %v1723 = vsub.s32 6, %v1722
        %v1724 = vrot.slane %v1034, %v1723
        %1726 = vbcast.lane.b32.xlu0 %v1724, 256
        %v1727 = vpop.permute.xlu0 %1726
        %s1729 = sor.u32 256, 8
        %1730 = vbcast.lane.b32.xlu0 %v1724, %s1729
        %v1731 = vpop.permute.xlu0 %1730
        %v1732 = vlaneseq
        %v1733 = vshrl.u32 %v1732, 7
        %v1734 = vsub.s32 7, %v1733
        %v1735 = vrot.slane %v1034, %v1734
        %1737 = vbcast.lane.b32.xlu0 %v1735, 256
        %v1738 = vpop.permute.xlu0 %1737
        %s1740 = sor.u32 256, 8
        %1741 = vbcast.lane.b32.xlu0 %v1735, %s1740
        %v1742 = vpop.permute.xlu0 %1741
        %v1744 = vcombine.high %v1117, %v1117
        %v1746 = vunpack.c.l.s4 1966171168
        %v1747 = vunpack.c.0.s8 %v1746
        %v1748 = vlaneseq
        %v1749 = vshrl.u32 %v1748, 7
        %v1750 = vsub.s32 %v1747, %v1749
        %v1751 = vrot.slane %v1117, %v1750
        %v1753 = vunpack.c.l.s4 1966171168
        %v1754 = vunpack.c.0.s8 %v1753
        %v1755 = vlaneseq
        %v1756 = vshrl.u32 %v1755, 7
        %v1757 = vsub.s32 %v1754, %v1756
        %v1758 = vrot.slane %v1744, %v1757
        %v1759 = vcombine.high %v1751, %v1751
        %v1760 = vcombine.high %v1758, %v1758
        %v1762 = vunpack.c.l.s4 1966171168
        %v1763 = vunpack.c.0.s8 %v1762
        %v1764 = vlaneseq
        %v1765 = vshrl.u32 %v1764, 7
        %v1766 = vsub.s32 %v1763, %v1765
        %v1767 = vrot.slane %v1751, %v1766
        %v1769 = vunpack.c.l.s4 1966171168
        %v1770 = vunpack.c.0.s8 %v1769
        %v1771 = vlaneseq
        %v1772 = vshrl.u32 %v1771, 7
        %v1773 = vsub.s32 %v1770, %v1772
        %v1774 = vrot.slane %v1758, %v1773
        %v1776 = vunpack.c.l.s4 1966171168
        %v1777 = vunpack.c.0.s8 %v1776
        %v1778 = vlaneseq
        %v1779 = vshrl.u32 %v1778, 7
        %v1780 = vsub.s32 %v1777, %v1779
        %v1781 = vrot.slane %v1759, %v1780
        %v1783 = vunpack.c.l.s4 1966171168
        %v1784 = vunpack.c.0.s8 %v1783
        %v1785 = vlaneseq
        %v1786 = vshrl.u32 %v1785, 7
        %v1787 = vsub.s32 %v1784, %v1786
        %v1788 = vrot.slane %v1760, %v1787
        %v1789 = vcombine.high %v1767, %v1767
        %v1790 = vcombine.high %v1774, %v1774
        %v1791 = vcombine.high %v1781, %v1781
        %v1792 = vcombine.high %v1788, %v1788
        %v1793 = vlaneseq
        %v1794 = vshrl.u32 %v1793, 7
        %v1795 = vsub.s32 0, %v1794
        %v1796 = vrot.slane %v1767, %v1795
        %v1797 = vlaneseq
        %v1798 = vshrl.u32 %v1797, 7
        %v1799 = vsub.s32 0, %v1798
        %v1800 = vrot.slane %v1781, %v1799
        %v1801 = vlaneseq
        %v1802 = vshrl.u32 %v1801, 7
        %v1803 = vsub.s32 0, %v1802
        %v1804 = vrot.slane %v1789, %v1803
        %v1805 = vlaneseq
        %v1806 = vshrl.u32 %v1805, 7
        %v1807 = vsub.s32 0, %v1806
        %v1808 = vrot.slane %v1791, %v1807
        %v1809 = vlaneseq
        %v1810 = vshrl.u32 %v1809, 7
        %v1811 = vsub.s32 0, %v1810
        %v1812 = vrot.slane %v1774, %v1811
        %v1813 = vlaneseq
        %v1814 = vshrl.u32 %v1813, 7
        %v1815 = vsub.s32 0, %v1814
        %v1816 = vrot.slane %v1788, %v1815
        %v1817 = vlaneseq
        %v1818 = vshrl.u32 %v1817, 7
        %v1819 = vsub.s32 0, %v1818
        %v1820 = vrot.slane %v1790, %v1819
        %v1821 = vlaneseq
        %v1822 = vshrl.u32 %v1821, 7
        %v1823 = vsub.s32 0, %v1822
        %v1824 = vrot.slane %v1792, %v1823
        %v1833 = vmul.f32 %v1661, %v1796
        %v1834 = vmul.f32 %v1665, %v1796
        %v1835 = vmul.f32 %v1672, %v1800
        %v1836 = vmul.f32 %v1676, %v1800
        %v1837 = vmul.f32 %v1683, %v1804
        %v1838 = vmul.f32 %v1687, %v1804
        %v1839 = vmul.f32 %v1694, %v1808
        %v1840 = vmul.f32 %v1698, %v1808
        %v1841 = vmul.f32 %v1705, %v1812
        %v1842 = vmul.f32 %v1709, %v1812
        %v1843 = vmul.f32 %v1716, %v1816
        %v1844 = vmul.f32 %v1720, %v1816
        %v1845 = vmul.f32 %v1727, %v1820
        %v1846 = vmul.f32 %v1731, %v1820
        %v1847 = vmul.f32 %v1738, %v1824
        %v1848 = vmul.f32 %v1742, %v1824
        %1865 = vrot.lane.b32.xlu0 %v1833, 32
        %v1866 = vpop.permute.xlu0 %1865
        %1867 = vrot.lane.b32.xlu0 %v1834, 32
        %v1868 = vpop.permute.xlu0 %1867
        %1869 = vrot.lane.b32.xlu0 %v1835, 32
        %v1870 = vpop.permute.xlu0 %1869
        %1871 = vrot.lane.b32.xlu0 %v1836, 32
        %v1872 = vpop.permute.xlu0 %1871
        %1873 = vrot.lane.b32.xlu0 %v1837, 32
        %v1874 = vpop.permute.xlu0 %1873
        %1875 = vrot.lane.b32.xlu0 %v1838, 32
        %v1876 = vpop.permute.xlu0 %1875
        %1877 = vrot.lane.b32.xlu0 %v1839, 32
        %v1878 = vpop.permute.xlu0 %1877
        %1879 = vrot.lane.b32.xlu0 %v1840, 32
        %v1880 = vpop.permute.xlu0 %1879
        %1881 = vrot.lane.b32.xlu0 %v1841, 32
        %v1882 = vpop.permute.xlu0 %1881
        %1883 = vrot.lane.b32.xlu0 %v1842, 32
        %v1884 = vpop.permute.xlu0 %1883
        %1885 = vrot.lane.b32.xlu0 %v1843, 32
        %v1886 = vpop.permute.xlu0 %1885
        %1887 = vrot.lane.b32.xlu0 %v1844, 32
        %v1888 = vpop.permute.xlu0 %1887
        %1889 = vrot.lane.b32.xlu0 %v1845, 32
        %v1890 = vpop.permute.xlu0 %1889
        %1891 = vrot.lane.b32.xlu0 %v1846, 32
        %v1892 = vpop.permute.xlu0 %1891
        %1893 = vrot.lane.b32.xlu0 %v1847, 32
        %v1894 = vpop.permute.xlu0 %1893
        %1895 = vrot.lane.b32.xlu0 %v1848, 32
        %v1896 = vpop.permute.xlu0 %1895
        %v1913 = vsel %vm564, %v1639, %v1866
        %v1914 = vsel %vm564, %v1640, %v1868
        %v1915 = vsel %vm564, %v1641, %v1870
        %v1916 = vsel %vm564, %v1642, %v1872
        %v1917 = vsel %vm564, %v1643, %v1874
        %v1918 = vsel %vm564, %v1644, %v1876
        %v1919 = vsel %vm564, %v1645, %v1878
        %v1920 = vsel %vm564, %v1646, %v1880
        %v1921 = vsel %vm564, %v1647, %v1882
        %v1922 = vsel %vm564, %v1648, %v1884
        %v1923 = vsel %vm564, %v1649, %v1886
        %v1924 = vsel %vm564, %v1650, %v1888
        %v1925 = vsel %vm564, %v1651, %v1890
        %v1926 = vsel %vm564, %v1652, %v1892
        %v1927 = vsel %vm564, %v1653, %v1894
        %v1928 = vsel %vm564, %v1654, %v1896
        %1929 = vst.msk [vmem:[#allocation3] sm:$0xff] %vm1444, %v1913
        %1930 = vst.msk [vmem:[#allocation3 + $0x8] sm:$0xff] %vm1444, %v1914
        %1931 = vst.msk [vmem:[#allocation3 + $0x10] sm:$0xff] %vm1444, %v1915
        %1932 = vst.msk [vmem:[#allocation3 + $0x18] sm:$0xff] %vm1444, %v1916
        %1933 = vst.msk [vmem:[#allocation3 + $0x20] sm:$0xff] %vm1444, %v1917
        %1934 = vst.msk [vmem:[#allocation3 + $0x28] sm:$0xff] %vm1444, %v1918
        %1935 = vst.msk [vmem:[#allocation3 + $0x30] sm:$0xff] %vm1444, %v1919
        %1936 = vst.msk [vmem:[#allocation3 + $0x38] sm:$0xff] %vm1444, %v1920
        %1937 = vst.msk [vmem:[#allocation3 + $0x40] sm:$0xff] %vm1444, %v1921
        %1938 = vst.msk [vmem:[#allocation3 + $0x48] sm:$0xff] %vm1444, %v1922
        %1939 = vst.msk [vmem:[#allocation3 + $0x50] sm:$0xff] %vm1444, %v1923
        %1940 = vst.msk [vmem:[#allocation3 + $0x58] sm:$0xff] %vm1444, %v1924
        %1941 = vst.msk [vmem:[#allocation3 + $0x60] sm:$0xff] %vm1444, %v1925
        %1942 = vst.msk [vmem:[#allocation3 + $0x68] sm:$0xff] %vm1444, %v1926
        %1943 = vst.msk [vmem:[#allocation3 + $0x70] sm:$0xff] %vm1444, %v1927
        %1944 = vst.msk [vmem:[#allocation3 + $0x78] sm:$0xff] %vm1444, %v1928
        %v1945 = vlaneseq
        %v1946 = vshrl.u32 %v1945, 7
        %v1947 = vsub.s32 0, %v1946
        %v1948 = vrot.slane %v1108, %v1947
        %1950 = vbcast.lane.b32.xlu0 %v1948, 256
        %v1951 = vpop.permute.xlu0 %1950
        %s1953 = sor.u32 256, 8
        %1954 = vbcast.lane.b32.xlu0 %v1948, %s1953
        %v1955 = vpop.permute.xlu0 %1954
        %v1956 = vlaneseq
        %v1957 = vshrl.u32 %v1956, 7
        %v1958 = vsub.s32 1, %v1957
        %v1959 = vrot.slane %v1108, %v1958
        %1961 = vbcast.lane.b32.xlu0 %v1959, 256
        %v1962 = vpop.permute.xlu0 %1961
        %s1964 = sor.u32 256, 8
        %1965 = vbcast.lane.b32.xlu0 %v1959, %s1964
        %v1966 = vpop.permute.xlu0 %1965
        %v1967 = vlaneseq
        %v1968 = vshrl.u32 %v1967, 7
        %v1969 = vsub.s32 2, %v1968
        %v1970 = vrot.slane %v1108, %v1969
        %1972 = vbcast.lane.b32.xlu0 %v1970, 256
        %v1973 = vpop.permute.xlu0 %1972
        %s1975 = sor.u32 256, 8
        %1976 = vbcast.lane.b32.xlu0 %v1970, %s1975
        %v1977 = vpop.permute.xlu0 %1976
        %v1978 = vlaneseq
        %v1979 = vshrl.u32 %v1978, 7
        %v1980 = vsub.s32 3, %v1979
        %v1981 = vrot.slane %v1108, %v1980
        %1983 = vbcast.lane.b32.xlu0 %v1981, 256
        %v1984 = vpop.permute.xlu0 %1983
        %s1986 = sor.u32 256, 8
        %1987 = vbcast.lane.b32.xlu0 %v1981, %s1986
        %v1988 = vpop.permute.xlu0 %1987
        %v1989 = vlaneseq
        %v1990 = vshrl.u32 %v1989, 7
        %v1991 = vsub.s32 4, %v1990
        %v1992 = vrot.slane %v1108, %v1991
        %1994 = vbcast.lane.b32.xlu0 %v1992, 256
        %v1995 = vpop.permute.xlu0 %1994
        %s1997 = sor.u32 256, 8
        %1998 = vbcast.lane.b32.xlu0 %v1992, %s1997
        %v1999 = vpop.permute.xlu0 %1998
        %v2000 = vlaneseq
        %v2001 = vshrl.u32 %v2000, 7
        %v2002 = vsub.s32 5, %v2001
        %v2003 = vrot.slane %v1108, %v2002
        %2005 = vbcast.lane.b32.xlu0 %v2003, 256
        %v2006 = vpop.permute.xlu0 %2005
        %s2008 = sor.u32 256, 8
        %2009 = vbcast.lane.b32.xlu0 %v2003, %s2008
        %v2010 = vpop.permute.xlu0 %2009
        %v2011 = vlaneseq
        %v2012 = vshrl.u32 %v2011, 7
        %v2013 = vsub.s32 6, %v2012
        %v2014 = vrot.slane %v1108, %v2013
        %2016 = vbcast.lane.b32.xlu0 %v2014, 256
        %v2017 = vpop.permute.xlu0 %2016
        %s2019 = sor.u32 256, 8
        %2020 = vbcast.lane.b32.xlu0 %v2014, %s2019
        %v2021 = vpop.permute.xlu0 %2020
        %v2022 = vlaneseq
        %v2023 = vshrl.u32 %v2022, 7
        %v2024 = vsub.s32 7, %v2023
        %v2025 = vrot.slane %v1108, %v2024
        %2027 = vbcast.lane.b32.xlu0 %v2025, 256
        %v2028 = vpop.permute.xlu0 %2027
        %s2030 = sor.u32 256, 8
        %2031 = vbcast.lane.b32.xlu0 %v2025, %s2030
        %v2032 = vpop.permute.xlu0 %2031
        %v2034 = vcombine.high %v845, %v845
        %v2036 = vunpack.c.l.s4 1966171168
        %v2037 = vunpack.c.0.s8 %v2036
        %v2038 = vlaneseq
        %v2039 = vshrl.u32 %v2038, 7
        %v2040 = vsub.s32 %v2037, %v2039
        %v2041 = vrot.slane %v845, %v2040
        %v2043 = vunpack.c.l.s4 1966171168
        %v2044 = vunpack.c.0.s8 %v2043
        %v2045 = vlaneseq
        %v2046 = vshrl.u32 %v2045, 7
        %v2047 = vsub.s32 %v2044, %v2046
        %v2048 = vrot.slane %v2034, %v2047
        %v2049 = vcombine.high %v2041, %v2041
        %v2050 = vcombine.high %v2048, %v2048
        %v2052 = vunpack.c.l.s4 1966171168
        %v2053 = vunpack.c.0.s8 %v2052
        %v2054 = vlaneseq
        %v2055 = vshrl.u32 %v2054, 7
        %v2056 = vsub.s32 %v2053, %v2055
        %v2057 = vrot.slane %v2041, %v2056
        %v2059 = vunpack.c.l.s4 1966171168
        %v2060 = vunpack.c.0.s8 %v2059
        %v2061 = vlaneseq
        %v2062 = vshrl.u32 %v2061, 7
        %v2063 = vsub.s32 %v2060, %v2062
        %v2064 = vrot.slane %v2048, %v2063
        %v2066 = vunpack.c.l.s4 1966171168
        %v2067 = vunpack.c.0.s8 %v2066
        %v2068 = vlaneseq
        %v2069 = vshrl.u32 %v2068, 7
        %v2070 = vsub.s32 %v2067, %v2069
        %v2071 = vrot.slane %v2049, %v2070
        %v2073 = vunpack.c.l.s4 1966171168
        %v2074 = vunpack.c.0.s8 %v2073
        %v2075 = vlaneseq
        %v2076 = vshrl.u32 %v2075, 7
        %v2077 = vsub.s32 %v2074, %v2076
        %v2078 = vrot.slane %v2050, %v2077
        %v2079 = vcombine.high %v2057, %v2057
        %v2080 = vcombine.high %v2064, %v2064
        %v2081 = vcombine.high %v2071, %v2071
        %v2082 = vcombine.high %v2078, %v2078
        %v2083 = vlaneseq
        %v2084 = vshrl.u32 %v2083, 7
        %v2085 = vsub.s32 0, %v2084
        %v2086 = vrot.slane %v2057, %v2085
        %v2087 = vlaneseq
        %v2088 = vshrl.u32 %v2087, 7
        %v2089 = vsub.s32 0, %v2088
        %v2090 = vrot.slane %v2071, %v2089
        %v2091 = vlaneseq
        %v2092 = vshrl.u32 %v2091, 7
        %v2093 = vsub.s32 0, %v2092
        %v2094 = vrot.slane %v2079, %v2093
        %v2095 = vlaneseq
        %v2096 = vshrl.u32 %v2095, 7
        %v2097 = vsub.s32 0, %v2096
        %v2098 = vrot.slane %v2081, %v2097
        %v2099 = vlaneseq
        %v2100 = vshrl.u32 %v2099, 7
        %v2101 = vsub.s32 0, %v2100
        %v2102 = vrot.slane %v2064, %v2101
        %v2103 = vlaneseq
        %v2104 = vshrl.u32 %v2103, 7
        %v2105 = vsub.s32 0, %v2104
        %v2106 = vrot.slane %v2078, %v2105
        %v2107 = vlaneseq
        %v2108 = vshrl.u32 %v2107, 7
        %v2109 = vsub.s32 0, %v2108
        %v2110 = vrot.slane %v2080, %v2109
        %v2111 = vlaneseq
        %v2112 = vshrl.u32 %v2111, 7
        %v2113 = vsub.s32 0, %v2112
        %v2114 = vrot.slane %v2082, %v2113
        %v2123 = vmul.f32 %v1951, %v2086
        %v2124 = vmul.f32 %v1955, %v2086
        %v2125 = vmul.f32 %v1962, %v2090
        %v2126 = vmul.f32 %v1966, %v2090
        %v2127 = vmul.f32 %v1973, %v2094
        %v2128 = vmul.f32 %v1977, %v2094
        %v2129 = vmul.f32 %v1984, %v2098
        %v2130 = vmul.f32 %v1988, %v2098
        %v2131 = vmul.f32 %v1995, %v2102
        %v2132 = vmul.f32 %v1999, %v2102
        %v2133 = vmul.f32 %v2006, %v2106
        %v2134 = vmul.f32 %v2010, %v2106
        %v2135 = vmul.f32 %v2017, %v2110
        %v2136 = vmul.f32 %v2021, %v2110
        %v2137 = vmul.f32 %v2028, %v2114
        %v2138 = vmul.f32 %v2032, %v2114
        %v2139 = vlaneseq
        %v2140 = vshrl.u32 %v2139, 7
        %v2141 = vsub.s32 0, %v2140
        %v2142 = vrot.slane %v1113, %v2141
        %2144 = vbcast.lane.b32.xlu0 %v2142, 256
        %v2145 = vpop.permute.xlu0 %2144
        %s2147 = sor.u32 256, 8
        %2148 = vbcast.lane.b32.xlu0 %v2142, %s2147
        %v2149 = vpop.permute.xlu0 %2148
        %v2150 = vlaneseq
        %v2151 = vshrl.u32 %v2150, 7
        %v2152 = vsub.s32 1, %v2151
        %v2153 = vrot.slane %v1113, %v2152
        %2155 = vbcast.lane.b32.xlu0 %v2153, 256
        %v2156 = vpop.permute.xlu0 %2155
        %s2158 = sor.u32 256, 8
        %2159 = vbcast.lane.b32.xlu0 %v2153, %s2158
        %v2160 = vpop.permute.xlu0 %2159
        %v2161 = vlaneseq
        %v2162 = vshrl.u32 %v2161, 7
        %v2163 = vsub.s32 2, %v2162
        %v2164 = vrot.slane %v1113, %v2163
        %2166 = vbcast.lane.b32.xlu0 %v2164, 256
        %v2167 = vpop.permute.xlu0 %2166
        %s2169 = sor.u32 256, 8
        %2170 = vbcast.lane.b32.xlu0 %v2164, %s2169
        %v2171 = vpop.permute.xlu0 %2170
        %v2172 = vlaneseq
        %v2173 = vshrl.u32 %v2172, 7
        %v2174 = vsub.s32 3, %v2173
        %v2175 = vrot.slane %v1113, %v2174
        %2177 = vbcast.lane.b32.xlu0 %v2175, 256
        %v2178 = vpop.permute.xlu0 %2177
        %s2180 = sor.u32 256, 8
        %2181 = vbcast.lane.b32.xlu0 %v2175, %s2180
        %v2182 = vpop.permute.xlu0 %2181
        %v2183 = vlaneseq
        %v2184 = vshrl.u32 %v2183, 7
        %v2185 = vsub.s32 4, %v2184
        %v2186 = vrot.slane %v1113, %v2185
        %2188 = vbcast.lane.b32.xlu0 %v2186, 256
        %v2189 = vpop.permute.xlu0 %2188
        %s2191 = sor.u32 256, 8
        %2192 = vbcast.lane.b32.xlu0 %v2186, %s2191
        %v2193 = vpop.permute.xlu0 %2192
        %v2194 = vlaneseq
        %v2195 = vshrl.u32 %v2194, 7
        %v2196 = vsub.s32 5, %v2195
        %v2197 = vrot.slane %v1113, %v2196
        %2199 = vbcast.lane.b32.xlu0 %v2197, 256
        %v2200 = vpop.permute.xlu0 %2199
        %s2202 = sor.u32 256, 8
        %2203 = vbcast.lane.b32.xlu0 %v2197, %s2202
        %v2204 = vpop.permute.xlu0 %2203
        %v2205 = vlaneseq
        %v2206 = vshrl.u32 %v2205, 7
        %v2207 = vsub.s32 6, %v2206
        %v2208 = vrot.slane %v1113, %v2207
        %2210 = vbcast.lane.b32.xlu0 %v2208, 256
        %v2211 = vpop.permute.xlu0 %2210
        %s2213 = sor.u32 256, 8
        %2214 = vbcast.lane.b32.xlu0 %v2208, %s2213
        %v2215 = vpop.permute.xlu0 %2214
        %v2216 = vlaneseq
        %v2217 = vshrl.u32 %v2216, 7
        %v2218 = vsub.s32 7, %v2217
        %v2219 = vrot.slane %v1113, %v2218
        %2221 = vbcast.lane.b32.xlu0 %v2219, 256
        %v2222 = vpop.permute.xlu0 %2221
        %s2224 = sor.u32 256, 8
        %2225 = vbcast.lane.b32.xlu0 %v2219, %s2224
        %v2226 = vpop.permute.xlu0 %2225
        %v2228 = vcombine.high %v847, %v847
        %v2230 = vunpack.c.l.s4 1966171168
        %v2231 = vunpack.c.0.s8 %v2230
        %v2232 = vlaneseq
        %v2233 = vshrl.u32 %v2232, 7
        %v2234 = vsub.s32 %v2231, %v2233
        %v2235 = vrot.slane %v847, %v2234
        %v2237 = vunpack.c.l.s4 1966171168
        %v2238 = vunpack.c.0.s8 %v2237
        %v2239 = vlaneseq
        %v2240 = vshrl.u32 %v2239, 7
        %v2241 = vsub.s32 %v2238, %v2240
        %v2242 = vrot.slane %v2228, %v2241
        %v2243 = vcombine.high %v2235, %v2235
        %v2244 = vcombine.high %v2242, %v2242
        %v2246 = vunpack.c.l.s4 1966171168
        %v2247 = vunpack.c.0.s8 %v2246
        %v2248 = vlaneseq
        %v2249 = vshrl.u32 %v2248, 7
        %v2250 = vsub.s32 %v2247, %v2249
        %v2251 = vrot.slane %v2235, %v2250
        %v2253 = vunpack.c.l.s4 1966171168
        %v2254 = vunpack.c.0.s8 %v2253
        %v2255 = vlaneseq
        %v2256 = vshrl.u32 %v2255, 7
        %v2257 = vsub.s32 %v2254, %v2256
        %v2258 = vrot.slane %v2242, %v2257
        %v2260 = vunpack.c.l.s4 1966171168
        %v2261 = vunpack.c.0.s8 %v2260
        %v2262 = vlaneseq
        %v2263 = vshrl.u32 %v2262, 7
        %v2264 = vsub.s32 %v2261, %v2263
        %v2265 = vrot.slane %v2243, %v2264
        %v2267 = vunpack.c.l.s4 1966171168
        %v2268 = vunpack.c.0.s8 %v2267
        %v2269 = vlaneseq
        %v2270 = vshrl.u32 %v2269, 7
        %v2271 = vsub.s32 %v2268, %v2270
        %v2272 = vrot.slane %v2244, %v2271
        %v2273 = vcombine.high %v2251, %v2251
        %v2274 = vcombine.high %v2258, %v2258
        %v2275 = vcombine.high %v2265, %v2265
        %v2276 = vcombine.high %v2272, %v2272
        %v2277 = vlaneseq
        %v2278 = vshrl.u32 %v2277, 7
        %v2279 = vsub.s32 0, %v2278
        %v2280 = vrot.slane %v2251, %v2279
        %v2281 = vlaneseq
        %v2282 = vshrl.u32 %v2281, 7
        %v2283 = vsub.s32 0, %v2282
        %v2284 = vrot.slane %v2265, %v2283
        %v2285 = vlaneseq
        %v2286 = vshrl.u32 %v2285, 7
        %v2287 = vsub.s32 0, %v2286
        %v2288 = vrot.slane %v2273, %v2287
        %v2289 = vlaneseq
        %v2290 = vshrl.u32 %v2289, 7
        %v2291 = vsub.s32 0, %v2290
        %v2292 = vrot.slane %v2275, %v2291
        %v2293 = vlaneseq
        %v2294 = vshrl.u32 %v2293, 7
        %v2295 = vsub.s32 0, %v2294
        %v2296 = vrot.slane %v2258, %v2295
        %v2297 = vlaneseq
        %v2298 = vshrl.u32 %v2297, 7
        %v2299 = vsub.s32 0, %v2298
        %v2300 = vrot.slane %v2272, %v2299
        %v2301 = vlaneseq
        %v2302 = vshrl.u32 %v2301, 7
        %v2303 = vsub.s32 0, %v2302
        %v2304 = vrot.slane %v2274, %v2303
        %v2305 = vlaneseq
        %v2306 = vshrl.u32 %v2305, 7
        %v2307 = vsub.s32 0, %v2306
        %v2308 = vrot.slane %v2276, %v2307
        %v2317 = vmul.f32 %v2145, %v2280
        %v2318 = vmul.f32 %v2149, %v2280
        %v2319 = vmul.f32 %v2156, %v2284
        %v2320 = vmul.f32 %v2160, %v2284
        %v2321 = vmul.f32 %v2167, %v2288
        %v2322 = vmul.f32 %v2171, %v2288
        %v2323 = vmul.f32 %v2178, %v2292
        %v2324 = vmul.f32 %v2182, %v2292
        %v2325 = vmul.f32 %v2189, %v2296
        %v2326 = vmul.f32 %v2193, %v2296
        %v2327 = vmul.f32 %v2200, %v2300
        %v2328 = vmul.f32 %v2204, %v2300
        %v2329 = vmul.f32 %v2211, %v2304
        %v2330 = vmul.f32 %v2215, %v2304
        %v2331 = vmul.f32 %v2222, %v2308
        %v2332 = vmul.f32 %v2226, %v2308
        %2349 = vrot.lane.b32.xlu0 %v2317, 32
        %v2350 = vpop.permute.xlu0 %2349
        %2351 = vrot.lane.b32.xlu0 %v2318, 32
        %v2352 = vpop.permute.xlu0 %2351
        %2353 = vrot.lane.b32.xlu0 %v2319, 32
        %v2354 = vpop.permute.xlu0 %2353
        %2355 = vrot.lane.b32.xlu0 %v2320, 32
        %v2356 = vpop.permute.xlu0 %2355
        %2357 = vrot.lane.b32.xlu0 %v2321, 32
        %v2358 = vpop.permute.xlu0 %2357
        %2359 = vrot.lane.b32.xlu0 %v2322, 32
        %v2360 = vpop.permute.xlu0 %2359
        %2361 = vrot.lane.b32.xlu0 %v2323, 32
        %v2362 = vpop.permute.xlu0 %2361
        %2363 = vrot.lane.b32.xlu0 %v2324, 32
        %v2364 = vpop.permute.xlu0 %2363
        %2365 = vrot.lane.b32.xlu0 %v2325, 32
        %v2366 = vpop.permute.xlu0 %2365
        %2367 = vrot.lane.b32.xlu0 %v2326, 32
        %v2368 = vpop.permute.xlu0 %2367
        %2369 = vrot.lane.b32.xlu0 %v2327, 32
        %v2370 = vpop.permute.xlu0 %2369
        %2371 = vrot.lane.b32.xlu0 %v2328, 32
        %v2372 = vpop.permute.xlu0 %2371
        %2373 = vrot.lane.b32.xlu0 %v2329, 32
        %v2374 = vpop.permute.xlu0 %2373
        %2375 = vrot.lane.b32.xlu0 %v2330, 32
        %v2376 = vpop.permute.xlu0 %2375
        %2377 = vrot.lane.b32.xlu0 %v2331, 32
        %v2378 = vpop.permute.xlu0 %2377
        %2379 = vrot.lane.b32.xlu0 %v2332, 32
        %v2380 = vpop.permute.xlu0 %2379
        %v2397 = vsel %vm564, %v2123, %v2350
        %v2398 = vsel %vm564, %v2124, %v2352
        %v2399 = vsel %vm564, %v2125, %v2354
        %v2400 = vsel %vm564, %v2126, %v2356
        %v2401 = vsel %vm564, %v2127, %v2358
        %v2402 = vsel %vm564, %v2128, %v2360
        %v2403 = vsel %vm564, %v2129, %v2362
        %v2404 = vsel %vm564, %v2130, %v2364
        %v2405 = vsel %vm564, %v2131, %v2366
        %v2406 = vsel %vm564, %v2132, %v2368
        %v2407 = vsel %vm564, %v2133, %v2370
        %v2408 = vsel %vm564, %v2134, %v2372
        %v2409 = vsel %vm564, %v2135, %v2374
        %v2410 = vsel %vm564, %v2136, %v2376
        %v2411 = vsel %vm564, %v2137, %v2378
        %v2412 = vsel %vm564, %v2138, %v2380
        %2413 = vst.msk [vmem:[#allocation4] sm:$0xff] %vm1444, %v2397
        %2414 = vst.msk [vmem:[#allocation4 + $0x8] sm:$0xff] %vm1444, %v2398
        %2415 = vst.msk [vmem:[#allocation4 + $0x10] sm:$0xff] %vm1444, %v2399
        %2416 = vst.msk [vmem:[#allocation4 + $0x18] sm:$0xff] %vm1444, %v2400
        %2417 = vst.msk [vmem:[#allocation4 + $0x20] sm:$0xff] %vm1444, %v2401
        %2418 = vst.msk [vmem:[#allocation4 + $0x28] sm:$0xff] %vm1444, %v2402
        %2419 = vst.msk [vmem:[#allocation4 + $0x30] sm:$0xff] %vm1444, %v2403
        %2420 = vst.msk [vmem:[#allocation4 + $0x38] sm:$0xff] %vm1444, %v2404
        %2421 = vst.msk [vmem:[#allocation4 + $0x40] sm:$0xff] %vm1444, %v2405
        %2422 = vst.msk [vmem:[#allocation4 + $0x48] sm:$0xff] %vm1444, %v2406
        %2423 = vst.msk [vmem:[#allocation4 + $0x50] sm:$0xff] %vm1444, %v2407
        %2424 = vst.msk [vmem:[#allocation4 + $0x58] sm:$0xff] %vm1444, %v2408
        %2425 = vst.msk [vmem:[#allocation4 + $0x60] sm:$0xff] %vm1444, %v2409
        %2426 = vst.msk [vmem:[#allocation4 + $0x68] sm:$0xff] %vm1444, %v2410
        %2427 = vst.msk [vmem:[#allocation4 + $0x70] sm:$0xff] %vm1444, %v2411
        %2428 = vst.msk [vmem:[#allocation4 + $0x78] sm:$0xff] %vm1444, %v2412
        %v2429 = vld [vmem:[#allocation2] sm:$0xff]
        %v2430 = vld [vmem:[#allocation2 + $0x8] sm:$0xff]
        %v2431 = vmul.f32 %v2429, 0.0
        %v2432 = vmul.f32 %v2430, 0.0
        %v2433 = vld [vmem:[#allocation3] sm:$0xff]
        %v2434 = vld [vmem:[#allocation3 + $0x8] sm:$0xff]
        %v2435 = vadd.f32 %v2431, %v2433
        %v2436 = vadd.f32 %v2432, %v2434
        %v2437 = vld [vmem:[#allocation4] sm:$0xff]
        %v2438 = vld [vmem:[#allocation4 + $0x8] sm:$0xff]
        %v2439 = vmul.f32 %v2435, %v2437
        %v2440 = vmul.f32 %v2436, %v2438
        %v2441 = vsel %vm1444, %v2439, 0.0
        %v2442 = vsel %vm1444, %v2440, 0.0
        %v2443 = vadd.f32 %v2441, %v2442
        %v2444 = vrot.slane %v2443, 4
        %v2445 = vadd.f32 %v2443, %v2444
        %v2446 = vrot.slane %v2445, 2
        %v2447 = vadd.f32 %v2445, %v2446
        %v2448 = vrot.slane %v2447, 1
        %v2449 = vadd.f32 %v2447, %v2448
        %v2450 = vadd.f32 %v2449, 0.0
        %s2451 = scalar_lea.vmem [#allocation2], 16
        %v2452 = vld [vmem:[%s2451] sm:$0xff]
        %v2453 = vld [vmem:[%s2451 + $0x8] sm:$0xff]
        %v2454 = vmul.f32 %v2452, %v2435
        %v2455 = vmul.f32 %v2453, %v2436
        %s2456 = scalar_lea.vmem [#allocation3], 16
        %v2457 = vld [vmem:[%s2456] sm:$0xff]
        %v2458 = vld [vmem:[%s2456 + $0x8] sm:$0xff]
        %v2459 = vadd.f32 %v2454, %v2457
        %v2460 = vadd.f32 %v2455, %v2458
        %s2461 = scalar_lea.vmem [#allocation4], 16
        %v2462 = vld [vmem:[%s2461] sm:$0xff]
        %v2463 = vld [vmem:[%s2461 + $0x8] sm:$0xff]
        %v2464 = vmul.f32 %v2459, %v2462
        %v2465 = vmul.f32 %v2460, %v2463
        %v2466 = vsel %vm1444, %v2464, 0.0
        %v2467 = vsel %vm1444, %v2465, 0.0
        %v2468 = vadd.f32 %v2466, %v2467
        %v2469 = vrot.slane %v2468, 4
        %v2470 = vadd.f32 %v2468, %v2469
        %v2471 = vrot.slane %v2470, 2
        %v2472 = vadd.f32 %v2470, %v2471
        %v2473 = vrot.slane %v2472, 1
        %v2474 = vadd.f32 %v2472, %v2473
        %v2475 = vadd.f32 %v2450, %v2474
        %s2476 = scalar_lea.vmem [#allocation2], 32
        %v2477 = vld [vmem:[%s2476] sm:$0xff]
        %v2478 = vld [vmem:[%s2476 + $0x8] sm:$0xff]
        %v2479 = vmul.f32 %v2477, %v2459
        %v2480 = vmul.f32 %v2478, %v2460
        %s2481 = scalar_lea.vmem [#allocation3], 32
        %v2482 = vld [vmem:[%s2481] sm:$0xff]
        %v2483 = vld [vmem:[%s2481 + $0x8] sm:$0xff]
        %v2484 = vadd.f32 %v2479, %v2482
        %v2485 = vadd.f32 %v2480, %v2483
        %s2486 = scalar_lea.vmem [#allocation4], 32
        %v2487 = vld [vmem:[%s2486] sm:$0xff]
        %v2488 = vld [vmem:[%s2486 + $0x8] sm:$0xff]
        %v2489 = vmul.f32 %v2484, %v2487
        %v2490 = vmul.f32 %v2485, %v2488
        %v2491 = vsel %vm1444, %v2489, 0.0
        %v2492 = vsel %vm1444, %v2490, 0.0
        %v2493 = vadd.f32 %v2491, %v2492
        %v2494 = vrot.slane %v2493, 4
        %v2495 = vadd.f32 %v2493, %v2494
        %v2496 = vrot.slane %v2495, 2
        %v2497 = vadd.f32 %v2495, %v2496
        %v2498 = vrot.slane %v2497, 1
        %v2499 = vadd.f32 %v2497, %v2498
        %v2500 = vadd.f32 %v2475, %v2499
        %s2501 = scalar_lea.vmem [#allocation2], 48
        %v2502 = vld [vmem:[%s2501] sm:$0xff]
        %v2503 = vld [vmem:[%s2501 + $0x8] sm:$0xff]
        %v2504 = vmul.f32 %v2502, %v2484
        %v2505 = vmul.f32 %v2503, %v2485
        %s2506 = scalar_lea.vmem [#allocation3], 48
        %v2507 = vld [vmem:[%s2506] sm:$0xff]
        %v2508 = vld [vmem:[%s2506 + $0x8] sm:$0xff]
        %v2509 = vadd.f32 %v2504, %v2507
        %v2510 = vadd.f32 %v2505, %v2508
        %s2511 = scalar_lea.vmem [#allocation4], 48
        %v2512 = vld [vmem:[%s2511] sm:$0xff]
        %v2513 = vld [vmem:[%s2511 + $0x8] sm:$0xff]
        %v2514 = vmul.f32 %v2509, %v2512
        %v2515 = vmul.f32 %v2510, %v2513
        %v2516 = vsel %vm1444, %v2514, 0.0
        %v2517 = vsel %vm1444, %v2515, 0.0
        %v2518 = vadd.f32 %v2516, %v2517
        %v2519 = vrot.slane %v2518, 4
        %v2520 = vadd.f32 %v2518, %v2519
        %v2521 = vrot.slane %v2520, 2
        %v2522 = vadd.f32 %v2520, %v2521
        %v2523 = vrot.slane %v2522, 1
        %v2524 = vadd.f32 %v2522, %v2523
        %v2525 = vadd.f32 %v2500, %v2524
        %s2526 = scalar_lea.vmem [#allocation2], 64
        %v2527 = vld [vmem:[%s2526] sm:$0xff]
        %v2528 = vld [vmem:[%s2526 + $0x8] sm:$0xff]
        %v2529 = vmul.f32 %v2527, %v2509
        %v2530 = vmul.f32 %v2528, %v2510
        %s2531 = scalar_lea.vmem [#allocation3], 64
        %v2532 = vld [vmem:[%s2531] sm:$0xff]
        %v2533 = vld [vmem:[%s2531 + $0x8] sm:$0xff]
        %v2534 = vadd.f32 %v2529, %v2532
        %v2535 = vadd.f32 %v2530, %v2533
        %s2536 = scalar_lea.vmem [#allocation4], 64
        %v2537 = vld [vmem:[%s2536] sm:$0xff]
        %v2538 = vld [vmem:[%s2536 + $0x8] sm:$0xff]
        %v2539 = vmul.f32 %v2534, %v2537
        %v2540 = vmul.f32 %v2535, %v2538
        %v2541 = vsel %vm1444, %v2539, 0.0
        %v2542 = vsel %vm1444, %v2540, 0.0
        %v2543 = vadd.f32 %v2541, %v2542
        %v2544 = vrot.slane %v2543, 4
        %v2545 = vadd.f32 %v2543, %v2544
        %v2546 = vrot.slane %v2545, 2
        %v2547 = vadd.f32 %v2545, %v2546
        %v2548 = vrot.slane %v2547, 1
        %v2549 = vadd.f32 %v2547, %v2548
        %v2550 = vadd.f32 %v2525, %v2549
        %s2551 = scalar_lea.vmem [#allocation2], 80
        %v2552 = vld [vmem:[%s2551] sm:$0xff]
        %v2553 = vld [vmem:[%s2551 + $0x8] sm:$0xff]
        %v2554 = vmul.f32 %v2552, %v2534
        %v2555 = vmul.f32 %v2553, %v2535
        %s2556 = scalar_lea.vmem [#allocation3], 80
        %v2557 = vld [vmem:[%s2556] sm:$0xff]
        %v2558 = vld [vmem:[%s2556 + $0x8] sm:$0xff]
        %v2559 = vadd.f32 %v2554, %v2557
        %v2560 = vadd.f32 %v2555, %v2558
        %s2561 = scalar_lea.vmem [#allocation4], 80
        %v2562 = vld [vmem:[%s2561] sm:$0xff]
        %v2563 = vld [vmem:[%s2561 + $0x8] sm:$0xff]
        %v2564 = vmul.f32 %v2559, %v2562
        %v2565 = vmul.f32 %v2560, %v2563
        %v2566 = vsel %vm1444, %v2564, 0.0
        %v2567 = vsel %vm1444, %v2565, 0.0
        %v2568 = vadd.f32 %v2566, %v2567
        %v2569 = vrot.slane %v2568, 4
        %v2570 = vadd.f32 %v2568, %v2569
        %v2571 = vrot.slane %v2570, 2
        %v2572 = vadd.f32 %v2570, %v2571
        %v2573 = vrot.slane %v2572, 1
        %v2574 = vadd.f32 %v2572, %v2573
        %v2575 = vadd.f32 %v2550, %v2574
        %s2576 = scalar_lea.vmem [#allocation2], 96
        %v2577 = vld [vmem:[%s2576] sm:$0xff]
        %v2578 = vld [vmem:[%s2576 + $0x8] sm:$0xff]
        %v2579 = vmul.f32 %v2577, %v2559
        %v2580 = vmul.f32 %v2578, %v2560
        %s2581 = scalar_lea.vmem [#allocation3], 96
        %v2582 = vld [vmem:[%s2581] sm:$0xff]
        %v2583 = vld [vmem:[%s2581 + $0x8] sm:$0xff]
        %v2584 = vadd.f32 %v2579, %v2582
        %v2585 = vadd.f32 %v2580, %v2583
        %s2586 = scalar_lea.vmem [#allocation4], 96
        %v2587 = vld [vmem:[%s2586] sm:$0xff]
        %v2588 = vld [vmem:[%s2586 + $0x8] sm:$0xff]
        %v2589 = vmul.f32 %v2584, %v2587
        %v2590 = vmul.f32 %v2585, %v2588
        %v2591 = vsel %vm1444, %v2589, 0.0
        %v2592 = vsel %vm1444, %v2590, 0.0
        %v2593 = vadd.f32 %v2591, %v2592
        %v2594 = vrot.slane %v2593, 4
        %v2595 = vadd.f32 %v2593, %v2594
        %v2596 = vrot.slane %v2595, 2
        %v2597 = vadd.f32 %v2595, %v2596
        %v2598 = vrot.slane %v2597, 1
        %v2599 = vadd.f32 %v2597, %v2598
        %v2600 = vadd.f32 %v2575, %v2599
        %s2601 = scalar_lea.vmem [#allocation2], 112
        %v2602 = vld [vmem:[%s2601] sm:$0xff]
        %v2603 = vld [vmem:[%s2601 + $0x8] sm:$0xff]
        %v2604 = vmul.f32 %v2602, %v2584
        %v2605 = vmul.f32 %v2603, %v2585
        %s2606 = scalar_lea.vmem [#allocation3], 112
        %v2607 = vld [vmem:[%s2606] sm:$0xff]
        %v2608 = vld [vmem:[%s2606 + $0x8] sm:$0xff]
        %v2609 = vadd.f32 %v2604, %v2607
        %v2610 = vadd.f32 %v2605, %v2608
        %s2611 = scalar_lea.vmem [#allocation4], 112
        %v2612 = vld [vmem:[%s2611] sm:$0xff]
        %v2613 = vld [vmem:[%s2611 + $0x8] sm:$0xff]
        %v2614 = vmul.f32 %v2609, %v2612
        %v2615 = vmul.f32 %v2610, %v2613
        %v2616 = vsel %vm1444, %v2614, 0.0
        %v2617 = vsel %vm1444, %v2615, 0.0
        %v2618 = vadd.f32 %v2616, %v2617
        %v2619 = vrot.slane %v2618, 4
        %v2620 = vadd.f32 %v2618, %v2619
        %v2621 = vrot.slane %v2620, 2
        %v2622 = vadd.f32 %v2620, %v2621
        %v2623 = vrot.slane %v2622, 1
        %v2624 = vadd.f32 %v2622, %v2623
        %v2625 = vadd.f32 %v2600, %v2624
        %v2626 = vmul.f32 %v833, %v845
        %v2627 = vmul.f32 %v835, %v847
        %v2628 = vld [vmem:[#allocation11] sm:$0x1]
        %v2630 = vlaneseq
        %v2631 = vshrl.u32 %v2630, 7
        %v2632 = vsub.s32 0, %v2631
        %v2633 = vrot.slane %v2628, %v2632
        %v2635 = vmul.f32 %v2626, %v2633
        %v2636 = vmul.f32 %v2627, %v2633
        %v2637 = vsel %vm564, %v2635, 0.0
        %v2638 = vrot.slane %v2637, 4
        %v2639 = vadd.f32 %v2637, %v2638
        %v2640 = vrot.slane %v2639, 2
        %v2641 = vadd.f32 %v2639, %v2640
        %v2642 = vrot.slane %v2641, 1
        %v2643 = vadd.f32 %v2641, %v2642
        %v2644 = vadd.f32 %v2625, %v2643
        %v2645 = vmul.f32 %v2644, 0.125
        %v2646 = vsel %vm564, %v2636, 0.0
        %v2647 = vrot.slane %v2646, 4
        %v2648 = vadd.f32 %v2646, %v2647
        %v2649 = vrot.slane %v2648, 2
        %v2650 = vadd.f32 %v2648, %v2649
        %v2651 = vrot.slane %v2650, 1
        %v2652 = vadd.f32 %v2650, %v2651
        %2654 = vrot.lane.b32.xlu0 %v2652, 32
        %v2655 = vpop.permute.xlu0 %2654
        %v2657 = vadd.f32 %v2625, %v2655
        %v2658 = vmul.f32 %v2657, 0.125
        %v2660 = vrot.slane %v2658, 7
        %2661 = vrot.lane.b32.xlu0 %v2660, 96
        %v2662 = vpop.permute.xlu0 %2661
        %vm2664 = vcmask 1040384
        %v2665 = vsel %vm2664, %v2645, %v2662
        %v2666 = vld [vmem:[%s11] sm:$0xff]
        %v2667 = vld [vmem:[%s11 + $0x8] sm:$0xff]
        %v2668 = vld [vmem:[%s11 + $0x10] sm:$0xff]
        %v2669 = vld [vmem:[%s11 + $0x18] sm:$0xff]
        %v2670 = vld [vmem:[#allocation13] sm:$0x1]
        %v2672 = vlaneseq
        %v2673 = vshrl.u32 %v2672, 7
        %v2674 = vsub.s32 0, %v2673
        %v2675 = vrot.slane %v2670, %v2674
        %v2678 = vsel %vm564, %v2665, 0
        %2680 = vmatprep.subr.mxu0 0.0
        %2681 = vmatpush1.msra.mxu0 %v2666
        %2682 = vmatprep.subr.mxu0 0.0
        %2683 = vmatpush1.msra.mxu0 %v2667
        %2684 = vmatprep.subr.mxu0 0.0
        %2685 = vmatpush1.msra.mxu0 %v2668
        %2686 = vmatprep.subr.mxu0 0.0
        %2687 = vmatpush1.msra.mxu0 %v2669
        %2688 = vmatprep.subr.mxu0 0.0
        %2689 = vmatpush1.msra.mxu0 0.0
        %2690 = vmatprep.subr.mxu0 0.0
        %2691 = vmatpush1.msra.mxu0 0.0
        %2692 = vmatprep.subr.mxu0 0.0
        %2693 = vmatpush1.msra.mxu0 0.0
        %2694 = vmatprep.subr.mxu0 0.0
        %2695 = vmatpush1.msra.mxu0 0.0
        %2696 = vmatprep.subr.mxu0 0.0
        %2697 = vmatpush1.msra.mxu0 0.0
        %2698 = vmatprep.subr.mxu0 0.0
        %2699 = vmatpush1.msra.mxu0 0.0
        %2700 = vmatprep.subr.mxu0 0.0
        %2701 = vmatpush1.msra.mxu0 0.0
        %2702 = vmatprep.subr.mxu0 0.0
        %2703 = vmatpush1.msra.mxu0 0.0
        %2704 = vmatprep.subr.mxu0 0.0
        %2705 = vmatpush1.msra.mxu0 0.0
        %2706 = vmatprep.subr.mxu0 0.0
        %2707 = vmatpush1.msra.mxu0 0.0
        %2708 = vmatprep.subr.mxu0 0.0
        %2709 = vmatpush1.msra.mxu0 0.0
        %2710 = vmatprep.subr.mxu0 0.0
        %2711 = vmatpush1.msra.mxu0 0.0
        %2712 = vmatprep.subr.mxu0 0.0
        %2713 = vmatpush1.msra.mxu0 0.0
        %2714 = vmatprep.subr.mxu0 0.0
        %2715 = vmatpush1.msra.mxu0 0.0
        %2716 = vmatprep.subr.mxu0 0.0
        %2717 = vmatpush1.msra.mxu0 0.0
        %2718 = vmatprep.subr.mxu0 0.0
        %2719 = vmatpush1.msra.mxu0 0.0
        %2720 = vmatprep.subr.mxu0 0.0
        %2721 = vmatpush1.msra.mxu0 0.0
        %2722 = vmatprep.subr.mxu0 0.0
        %2723 = vmatpush1.msra.mxu0 0.0
        %2724 = vmatprep.subr.mxu0 0.0
        %2725 = vmatpush1.msra.mxu0 0.0
        %2726 = vmatprep.subr.mxu0 0.0
        %2727 = vmatpush1.msra.mxu0 0.0
        %2728 = vmatprep.subr.mxu0 0.0
        %2729 = vmatpush1.msra.mxu0 0.0
        %2730 = vmatprep.subr.mxu0 0.0
        %2731 = vmatpush1.msra.mxu0 0.0
        %2732 = vmatprep.subr.mxu0 0.0
        %2733 = vmatpush1.msra.mxu0 0.0
        %2734 = vmatprep.subr.mxu0 0.0
        %2735 = vmatpush1.msra.mxu0 0.0
        %2736 = vmatprep.subr.mxu0 0.0
        %2737 = vmatpush1.msra.mxu0 0.0
        %2738 = vmatprep.subr.mxu0 0.0
        %2739 = vmatpush1.msra.mxu0 0.0
        %2740 = vmatprep.subr.mxu0 0.0
        %2741 = vmatpush1.msra.mxu0 0.0
        %2742 = vmatprep.subr.mxu0 0.0
        %2743 = vmatpush1.msra.mxu0 0.0
        %2744 = vmatprep.mubr.f32.mxu0 0.0
        %2745 = vmatmul.mubr.f32.gmra.mrb[0].mxu0 %v2678
        %v2746 = vpop.f32.mrb[0].mxu0
        %v2747 = vadd.f32 %v2675, %v2746
        %v2748 = vpop.f32.mrb[0].mxu0
        %2749 = vdwg.mxu0
        %v2750 = vtanh.pop %v2747
        %vm2751 = vcmp.gt.f32.partialorder %v2750, 0.0
        %v2752 = vmin.f32 %v2750, 0.0
        %v2753 = vmul.f32 %v2752, 1.442695
        %v2754 = vpow.pop %v2753
        %v2755 = vsub.f32 %v2754, 1.0
        %v2756 = vsel %vm2751, %v2750, %v2755
        %v2757 = vld [vmem:[%s13] sm:$0xff]
        %v2758 = vld [vmem:[%s13 + $0x8] sm:$0xff]
        %v2759 = vld [vmem:[%s14] sm:$0x1]
        %v2761 = vlaneseq
        %v2762 = vshrl.u32 %v2761, 7
        %v2763 = vsub.s32 0, %v2762
        %v2764 = vrot.slane %v2759, %v2763
        %vm2766 = vcmask 130048
        %v2768 = vsel %vm2766, %v2756, 0
        %2770 = vmatprep.subr.mxu0 0.0
        %2771 = vmatpush1.msra.mxu0 %v2757
        %2772 = vmatprep.subr.mxu0 0.0
        %2773 = vmatpush1.msra.mxu0 %v2758
        %2774 = vmatprep.subr.mxu0 0.0
        %2775 = vmatpush1.msra.mxu0 0.0
        %2776 = vmatprep.subr.mxu0 0.0
        %2777 = vmatpush1.msra.mxu0 0.0
        %2778 = vmatprep.subr.mxu0 0.0
        %2779 = vmatpush1.msra.mxu0 0.0
        %2780 = vmatprep.subr.mxu0 0.0
        %2781 = vmatpush1.msra.mxu0 0.0
        %2782 = vmatprep.subr.mxu0 0.0
        %2783 = vmatpush1.msra.mxu0 0.0
        %2784 = vmatprep.subr.mxu0 0.0
        %2785 = vmatpush1.msra.mxu0 0.0
        %2786 = vmatprep.subr.mxu0 0.0
        %2787 = vmatpush1.msra.mxu0 0.0
        %2788 = vmatprep.subr.mxu0 0.0
        %2789 = vmatpush1.msra.mxu0 0.0
        %2790 = vmatprep.subr.mxu0 0.0
        %2791 = vmatpush1.msra.mxu0 0.0
        %2792 = vmatprep.subr.mxu0 0.0
        %2793 = vmatpush1.msra.mxu0 0.0
        %2794 = vmatprep.subr.mxu0 0.0
        %2795 = vmatpush1.msra.mxu0 0.0
        %2796 = vmatprep.subr.mxu0 0.0
        %2797 = vmatpush1.msra.mxu0 0.0
        %2798 = vmatprep.subr.mxu0 0.0
        %2799 = vmatpush1.msra.mxu0 0.0
        %2800 = vmatprep.subr.mxu0 0.0
        %2801 = vmatpush1.msra.mxu0 0.0
        %2802 = vmatprep.subr.mxu0 0.0
        %2803 = vmatpush1.msra.mxu0 0.0
        %2804 = vmatprep.subr.mxu0 0.0
        %2805 = vmatpush1.msra.mxu0 0.0
        %2806 = vmatprep.subr.mxu0 0.0
        %2807 = vmatpush1.msra.mxu0 0.0
        %2808 = vmatprep.subr.mxu0 0.0
        %2809 = vmatpush1.msra.mxu0 0.0
        %2810 = vmatprep.subr.mxu0 0.0
        %2811 = vmatpush1.msra.mxu0 0.0
        %2812 = vmatprep.subr.mxu0 0.0
        %2813 = vmatpush1.msra.mxu0 0.0
        %2814 = vmatprep.subr.mxu0 0.0
        %2815 = vmatpush1.msra.mxu0 0.0
        %2816 = vmatprep.subr.mxu0 0.0
        %2817 = vmatpush1.msra.mxu0 0.0
        %2818 = vmatprep.subr.mxu0 0.0
        %2819 = vmatpush1.msra.mxu0 0.0
        %2820 = vmatprep.subr.mxu0 0.0
        %2821 = vmatpush1.msra.mxu0 0.0
        %2822 = vmatprep.subr.mxu0 0.0
        %2823 = vmatpush1.msra.mxu0 0.0
        %2824 = vmatprep.subr.mxu0 0.0
        %2825 = vmatpush1.msra.mxu0 0.0
        %2826 = vmatprep.subr.mxu0 0.0
        %2827 = vmatpush1.msra.mxu0 0.0
        %2828 = vmatprep.subr.mxu0 0.0
        %2829 = vmatpush1.msra.mxu0 0.0
        %2830 = vmatprep.subr.mxu0 0.0
        %2831 = vmatpush1.msra.mxu0 0.0
        %2832 = vmatprep.subr.mxu0 0.0
        %2833 = vmatpush1.msra.mxu0 0.0
        %2834 = vmatprep.mubr.f32.mxu0 0.0
        %2835 = vmatmul.mubr.f32.gmra.mrb[0].mxu0 %v2768
        %v2836 = vpop.f32.mrb[0].mxu0
        %v2837 = vadd.f32 %v2764, %v2836
        %v2838 = vpop.f32.mrb[0].mxu0
        %2839 = vdwg.mxu0
        %vm2840 = vcmp.gt.f32.partialorder %v2837, 0.0
        %v2841 = vmin.f32 %v2837, 0.0
        %v2842 = vmul.f32 %v2841, 1.442695
        %v2843 = vpow.pop %v2842
        %v2844 = vsub.f32 %v2843, 1.0
        %v2845 = vsel %vm2840, %v2837, %v2844
        %v2846 = vadd.f32 %v2845, 1.0
        %2848 = vrot.lane.b32.xlu0 %v2837, 16
        %v2849 = vpop.permute.xlu0 %2848
        %2852 = vrot.lane.b32.xlu0 %v2846, 16
        %v2853 = vpop.permute.xlu0 %2852
        %v2855 = vsel %vm2766, %v2756, %v2849
        %vm2856 = vcmask 195584
        %v2857 = vsel %vm2856, %v2855, %v2853
        %vm2858 = vcmask 254976
        %2859 = vst.msk [vmem:[%s552] sm:$0x3] %vm2858, %v2857
        %s2860 = sand.u32 %s360, 1
        %s2861 = scalar_lea.sflag [#allocation7], %s2860
        %s2862 = sand.u32 %s360, 1
        %s2863 = smul.addr %s2862, 2
        %s2864 = scalar_lea.vmem [#allocation14], %s2863
        // Predicated region
        $region101: #{tpu_custom_call.1} parent=79 // pred_check
          %p2865 = pneg %p370
        $region102: #{tpu_custom_call.1} parent=79 // pred_check_branch
          %2867 = sbr.rel (%p2865) target = $region104
        $region103: #{tpu_custom_call.1} parent=79 // pred_region
          %s2869 = ssub.s32 32, 32
          %2870 = vsyncadd %s2861, %s2869
          %s2871 = smul.addr %s32, 32
          %s2872 = scalar_lea.hbm %s15, %s2871
          %s2874 = sshll.u32 %s2864, 4
          %s2875 = int_to_ptr.vmem [resolvable:$true] %s2874
          %2877 = dma.vmem_to_hbm [thread:$0]  %s2875, 32, %s2872, %s2861
        $region104: #{tpu_custom_call.1} parent=79 // pred_fallthru
          _
      $region80: #{tpu_custom_call.1} parent=5 // pred_fallthru
        _
      %p2878 = scmp.le.s32.totalorder 2, %s27
      // Predicated region
      $region105: #{tpu_custom_call.1} parent=5 // pred_check
        %p2879 = pneg %p2878
      $region106: #{tpu_custom_call.1} parent=5 // pred_check_branch
        %2881 = sbr.rel (%p2879) target = $region108
      $region107: #{tpu_custom_call.1} parent=5 // pred_region
        %s2882 = ssub.s32 %s27, 2
        // Predicated region
        $region109: #{tpu_custom_call.1} parent=107 // pred_check
          %p2883 = pneg %p376
        $region110: #{tpu_custom_call.1} parent=107 // pred_check_branch
          %2885 = sbr.rel (%p2883) target = $region112
        $region111: #{tpu_custom_call.1} parent=107 // pred_region
          %s2886 = sand.u32 %s361, 1
          %s2887 = scalar_lea.sflag [#allocation7], %s2886
          %s2888 = sand.u32 %s361, 1
          %s2889 = smul.addr %s2888, 2
          %s2890 = scalar_lea.vmem [#allocation14], %s2889
          %2891 = dma.done %s2887, 32
        $region112: #{tpu_custom_call.1} parent=107 // pred_fallthru
          _
      $region108: #{tpu_custom_call.1} parent=5 // pred_fallthru
        _
    $region6: #{tpu_custom_call.1} parent=1 // loop_footer
      %s31 = sadd.s32 1, %s27
    $region7: #{tpu_custom_call.1} parent=1 // loop_footer_branch
      %26 = sbr.rel target = $region3
    $region8: #{tpu_custom_call.1} parent=1 // loop_exit
      _
    %2892 = vsyncpa [#allocation6], 1
    %s2893 = scalar_lea.sflag [#allocation6], 1
    %2894 = vsyncpa %s2893, 1
    %2895 = vsyncpa [#allocation9], 1
    %2896 = vsyncpa [#allocation12], 1
    %2897 = vsyncpa [#allocation7], 1
    %s2898 = scalar_lea.sflag [#allocation7], 1
    %2899 = vsyncpa %s2898, 1

</llo_original>
